<compile_context>
chip_gen: v7x
topology: tpu7x:2x2x1
jax: 0.10.0
libtpu: 0.0.40
codegen_flags: <defaults>
</compile_context>

<pallas_src>
import numpy as np

import jax
import jax.numpy as jnp
from jax import lax
from jax.experimental import pallas as pl
from jax.experimental.pallas import tpu as pltpu

# ----------------------------- geometry -------------------------------------
K = 5                       # conv kernel size
C1I, C1O = 3, 6             # conv1 channels
H1 = W1 = 32
OH1 = OW1 = H1 - K + 1      # 28
PH1 = PW1 = OH1 // 2        # 14

C2I, C2O = 6, 16            # conv2 channels
H2 = W2 = PH1               # 14
OH2 = OW2 = H2 - K + 1      # 10
PH2 = PW2 = OH2 // 2        # 5

FC_PAD = 128                # lane-dense width for all FC tensors / logits
B_TILE = 8                  # images per grid step (multiple of 8 -> aligned rows)


# ----------------------------- Pallas kernel --------------------------------
def _convnet_kernel(x_ref, g1_ref, b1_ref, sw1e_ref, sw1o_ref,
                    g2_ref, b2_ref, sw2e_ref, sw2o_ref,
                    wf1_ref, bf1_ref, wf2_ref, bf2_ref, wf3_ref, bf3_ref,
                    out_ref):
    f32 = jnp.float32
    B = B_TILE

    # conv1 (3->6, 5x5): rows are (h*B + b); each kh-shift is an aligned
    # contiguous window of the padded input block; kw and Cin are folded into
    # the (96, 168) weight slabs -> 5 stacked matmuls with M = 29*B.
    m1 = (OH1 + 1) * B                                   # 232 (last B rows junk)
    c1 = [jnp.dot(x_ref[pl.ds(i * B, m1), :], g1_ref[i],
                  preferred_element_type=f32) for i in range(K)]
    y1 = ((c1[0] + c1[1]) + (c1[2] + c1[3])) + \
         (c1[4] + jnp.broadcast_to(b1_ref[...], (m1, OW1 * C1O)))
    y1 = jnp.maximum(y1, 0.0)

    # maxpool 2x2: row direction = aligned-slice max on the VPU (pooled rows
    # land at 2*B*ph + b, odd B-blocks become junk carried along); lane
    # direction = 0/1 selector matmuls (lane-strided selection stays on MXU).
    r1 = jnp.maximum(y1[:OH1 * B, :], y1[B:(OH1 + 1) * B, :])          # (28B, 168)
    p1 = jnp.maximum(jnp.dot(r1, sw1e_ref[...], preferred_element_type=f32),
                     jnp.dot(r1, sw1o_ref[...], preferred_element_type=f32))

    # conv2 (6->16, 5x5) on the (28B, 84) pooled map; valid output rows live at
    # 2*B*oh2 + b (junk blocks interleaved, never read by valid rows later).
    m2 = 2 * B * OH2                                     # 160
    c2 = [jnp.dot(p1[2 * B * i:2 * B * i + m2, :], g2_ref[i],
                  preferred_element_type=f32) for i in range(K)]
    y2 = ((c2[0] + c2[1]) + (c2[2] + c2[3])) + \
         (c2[4] + jnp.broadcast_to(b2_ref[...], (m2, OW2 * C2O)))
    y2 = jnp.maximum(y2, 0.0)

    # maxpool 2x2 -> valid pooled rows at 4*B*ph + b, lanes pw*16 + co.
    r2 = jnp.maximum(y2[:m2 - 2 * B, :], y2[2 * B:, :])                # (18B, 160)
    p2 = jnp.maximum(jnp.dot(r2, sw2e_ref[...], preferred_element_type=f32),
                     jnp.dot(r2, sw2o_ref[...], preferred_element_type=f32))

    # fc1 (400 -> 120, padded 128) + ReLU: the torch NCHW flatten permutation is
    # folded into wf1; each ph term is an aligned (B, 80) slice -> 5 matmuls.
    f1 = [jnp.dot(p2[4 * B * ph:4 * B * ph + B, :], wf1_ref[ph],
                  preferred_element_type=f32) for ph in range(PH2)]
    h1 = ((f1[0] + f1[1]) + (f1[2] + f1[3])) + \
         (f1[4] + jnp.broadcast_to(bf1_ref[...], (B, FC_PAD)))
    h1 = jnp.maximum(h1, 0.0)

    # fc2 (120 -> 84) + ReLU, fc3 (84 -> 10); everything lane-padded to 128.
    h2 = jnp.maximum(jnp.dot(h1, wf2_ref[...], preferred_element_type=f32)
                     + jnp.broadcast_to(bf2_ref[...], (B, FC_PAD)), 0.0)
    out_ref[...] = (jnp.dot(h2, wf3_ref[...], preferred_element_type=f32)
                    + jnp.broadcast_to(bf3_ref[...], (B, FC_PAD)))


# ----------------------------- parameters -----------------------------------
def init_params(key):
    """Deterministic PyTorch-default-style uniform init (U(-1/sqrt(fan_in), ...))."""
    ks = jax.random.split(key, 10)

    def u(k, shape, fan_in):
        bound = 1.0 / float(fan_in) ** 0.5
        return jax.random.uniform(k, shape, jnp.float32, -bound, bound)

    return {
        "conv1_w": u(ks[0], (6, 3, 5, 5), 3 * 5 * 5),
        "conv1_b": u(ks[1], (6,), 3 * 5 * 5),
        "conv2_w": u(ks[2], (16, 6, 5, 5), 6 * 5 * 5),
        "conv2_b": u(ks[3], (16,), 6 * 5 * 5),
        "fc1_w":   u(ks[4], (120, 16 * 5 * 5), 16 * 5 * 5),
        "fc1_b":   u(ks[5], (120,), 16 * 5 * 5),
        "fc2_w":   u(ks[6], (84, 120), 120),
        "fc2_b":   u(ks[7], (84,), 120),
        "fc3_w":   u(ks[8], (10, 84), 84),
        "fc3_b":   u(ks[9], (10,), 84),
    }


def _lane_pool_selectors(ow, c):
    """0/1 matrices implementing the lane-direction half of MaxPool(2,2) on the
    (rows, W*C) channel-interleaved layout."""
    pw = ow // 2
    sw_e = np.zeros((ow * c, pw * c), np.float32)
    sw_o = np.zeros((ow * c, pw * c), np.float32)
    for p in range(pw):
        for ch in range(c):
            sw_e[(2 * p) * c + ch, p * c + ch] = 1.0
            sw_o[(2 * p + 1) * c + ch, p * c + ch] = 1.0
    return sw_e, sw_o


def prepare_params(params):
    """One-time host-side weight expansion: conv-as-matmul slabs (Cin folded),
    tiled biases, lane-pool selectors, permuted + 128-lane-padded FC weights."""
    w1 = np.asarray(params["conv1_w"], np.float32)      # (6, 3, 5, 5)
    b1 = np.asarray(params["conv1_b"], np.float32)
    w2 = np.asarray(params["conv2_w"], np.float32)      # (16, 6, 5, 5)
    b2 = np.asarray(params["conv2_b"], np.float32)
    f1w = np.asarray(params["fc1_w"], np.float32)       # (120, 400)
    f1b = np.asarray(params["fc1_b"], np.float32)
    f2w = np.asarray(params["fc2_w"], np.float32)       # (84, 120)
    f2b = np.asarray(params["fc2_b"], np.float32)
    f3w = np.asarray(params["fc3_w"], np.float32)       # (10, 84)
    f3b = np.asarray(params["fc3_b"], np.float32)
    assert w1.shape == (C1O, C1I, K, K) and w2.shape == (C2O, C2I, K, K)

    # conv1 as matmul with Cin folded into the contraction: per-kh slab of
    # shape (W1*C1I, OW1*C1O); input lanes are (w*3 + cin) interleaved.
    g1 = np.zeros((K, W1 * C1I, OW1 * C1O), np.float32)
    for i in range(K):
        for j in range(K):
            for ow in range(OW1):
                for c in range(C1I):
                    g1[i, (ow + j) * C1I + c, ow * C1O:(ow + 1) * C1O] = w1[:, c, i, j]

    # conv2 as matmul: per-kh slab (W2*C2I, OW2*C2O); input lanes (w*6 + cin)
    # interleaved — exactly the layout pool1 produces.
    g2 = np.zeros((K, W2 * C2I, OW2 * C2O), np.float32)
    for i in range(K):
        for j in range(K):
            for ow in range(OW2):
                for c in range(C2I):
                    g2[i, (ow + j) * C2I + c, ow * C2O:(ow + 1) * C2O] = w2[:, c, i, j]

    sw1e, sw1o = _lane_pool_selectors(OW1, C1O)
    sw2e, sw2o = _lane_pool_selectors(OW2, C2O)

    # fc1: fold torch's NCHW flatten order (co*25 + ph*5 + pw) into the weight,
    # split by ph so the kernel contracts 5 (B,80)x(80,128) blocks.
    wf1 = f1w.reshape(120, C2O, PH2, PW2).transpose(2, 3, 1, 0).reshape(PH2, PW2 * C2O, 120)
    wf1p = np.zeros((PH2, PW2 * C2O, FC_PAD), np.float32)
    wf1p[:, :, :120] = wf1
    bf1 = np.zeros((1, FC_PAD), np.float32); bf1[0, :120] = f1b
    wf2p = np.zeros((FC_PAD, FC_PAD), np.float32); wf2p[:120, :84] = f2w.T
    bf2 = np.zeros((1, FC_PAD), np.float32); bf2[0, :84] = f2b
    wf3p = np.zeros((FC_PAD, FC_PAD), np.float32); wf3p[:84, :10] = f3w.T
    bf3 = np.zeros((1, FC_PAD), np.float32); bf3[0, :10] = f3b

    prep = dict(
        g1=g1, b1=np.tile(b1, OW1).reshape(1, OW1 * C1O),
        sw1e=sw1e, sw1o=sw1o,
        g2=g2, b2=np.tile(b2, OW2).reshape(1, OW2 * C2O),
        sw2e=sw2e, sw2o=sw2o,
        wf1=wf1p, bf1=bf1, wf2=wf2p, bf2=bf2, wf3=wf3p, bf3=bf3,
    )
    return {k: jnp.asarray(v) for k, v in prep.items()}


# ----------------------------- forward pass ----------------------------------
def _broadcast_spec(shape):
    zeros = (0,) * len(shape)
    return pl.BlockSpec(shape, lambda i, _z=zeros: _z)


@jax.jit
def convnet_forward(prep, x_nchw):
    n = x_nchw.shape[0]
    n_pad = ((n + B_TILE - 1) // B_TILE) * B_TILE
    n_tiles = n_pad // B_TILE

    # Layout plumbing (wrapper-side): NCHW -> channel-interleaved lanes
    # (w*3 + c) and h-major / batch-minor rows (h*B_TILE + b) per batch tile,
    # plus B_TILE pad rows so every kh-shifted conv1 window is in bounds.
    x = jnp.pad(x_nchw, ((0, n_pad - n), (0, 0), (0, 0), (0, 0)))
    x = jnp.transpose(x, (0, 2, 3, 1)).reshape(n_pad, H1, W1 * C1I)
    x = x.reshape(n_tiles, B_TILE, H1, W1 * C1I)
    x = jnp.transpose(x, (0, 2, 1, 3)).reshape(n_tiles, H1 * B_TILE, W1 * C1I)
    x = jnp.pad(x, ((0, 0), (0, B_TILE), (0, 0)))        # (T, 33*B_TILE, 96)

    out = pl.pallas_call(
        _convnet_kernel,
        out_shape=jax.ShapeDtypeStruct((n_pad, FC_PAD), jnp.float32),
        grid=(n_tiles,),
        in_specs=[
            pl.BlockSpec((None, (H1 + 1) * B_TILE, W1 * C1I), lambda i: (i, 0, 0)),
            _broadcast_spec((K, W1 * C1I, OW1 * C1O)),                 # g1
            _broadcast_spec((1, OW1 * C1O)),                           # conv1 bias
            _broadcast_spec((OW1 * C1O, PW1 * C1O)),                   # sw1e
            _broadcast_spec((OW1 * C1O, PW1 * C1O)),                   # sw1o
            _broadcast_spec((K, W2 * C2I, OW2 * C2O)),                 # g2
            _broadcast_spec((1, OW2 * C2O)),                           # conv2 bias
            _broadcast_spec((OW2 * C2O, PW2 * C2O)),                   # sw2e
            _broadcast_spec((OW2 * C2O, PW2 * C2O)),                   # sw2o
            _broadcast_spec((PH2, PW2 * C2O, FC_PAD)),                 # fc1 weight blocks
            _broadcast_spec((1, FC_PAD)),                              # fc1 bias
            _broadcast_spec((FC_PAD, FC_PAD)),                         # fc2 weight
            _broadcast_spec((1, FC_PAD)),                              # fc2 bias
            _broadcast_spec((FC_PAD, FC_PAD)),                         # fc3 weight
            _broadcast_spec((1, FC_PAD)),                              # fc3 bias
        ],
        out_specs=pl.BlockSpec((B_TILE, FC_PAD), lambda i: (i, 0)),
        compiler_params=pltpu.CompilerParams(
            dimension_semantics=("parallel",),
            vmem_limit_bytes=32 * 1024 * 1024,
        ),
    )(x, prep["g1"], prep["b1"], prep["sw1e"], prep["sw1o"],
      prep["g2"], prep["b2"], prep["sw2e"], prep["sw2o"],
      prep["wf1"], prep["bf1"], prep["wf2"], prep["bf2"],
      prep["wf3"], prep["bf3"])
    return out[:n, :10]


# ----------------------------- pure-JAX reference ----------------------------
def convnet_reference(params, x):
    def conv(t, w, b):
        y = lax.conv_general_dilated(t, w, (1, 1), "VALID",
                                     dimension_numbers=("NCHW", "OIHW", "NCHW"))
        return y + b.reshape(1, -1, 1, 1)

    def pool(t):
        n, c, h, w = t.shape
        return t.reshape(n, c, h // 2, 2, w // 2, 2).max(axis=(3, 5))

    x = pool(jax.nn.relu(conv(x, params["conv1_w"], params["conv1_b"])))
    x = pool(jax.nn.relu(conv(x, params["conv2_w"], params["conv2_b"])))
    x = x.reshape(x.shape[0], -1)
    x = jax.nn.relu(x @ params["fc1_w"].T + params["fc1_b"])
    x = jax.nn.relu(x @ params["fc2_w"].T + params["fc2_b"])
    return x @ params["fc3_w"].T + params["fc3_b"]


if __name__ == "__main__":
    key = jax.random.PRNGKey(0)
    pkey, xkey = jax.random.split(key)
    params = init_params(pkey)
    prep = prepare_params(params)
    # Input geometry is fixed by fc1 (16*5*5): NCHW = (2, 3, 32, 32).
    x = jax.random.normal(xkey, (2, 3, 32, 32), dtype=jnp.float32)

    logits = convnet_forward(prep, x)
    jax.block_until_ready(logits)
    assert logits.shape == (2, 10) and logits.dtype == jnp.float32

    ref = convnet_reference(params, x)
    err = float(jnp.max(jnp.abs(logits - ref)))
    assert err < 1e-3, f"mismatch vs reference: {err}"
    print("KERNEL_OK")
</pallas_src>

<mosaic_0001>
module attributes {stable_mosaic.version = 11 : i64} {
  func.func @_convnet_kernel(%arg0: i32, %arg1: memref<1x264x96xf32, #tpu.memory_space<vmem>>, %arg2: memref<5x96x168xf32, #tpu.memory_space<vmem>>, %arg3: memref<1x168xf32, #tpu.memory_space<vmem>>, %arg4: memref<168x84xf32, #tpu.memory_space<vmem>>, %arg5: memref<168x84xf32, #tpu.memory_space<vmem>>, %arg6: memref<5x84x160xf32, #tpu.memory_space<vmem>>, %arg7: memref<1x160xf32, #tpu.memory_space<vmem>>, %arg8: memref<160x80xf32, #tpu.memory_space<vmem>>, %arg9: memref<160x80xf32, #tpu.memory_space<vmem>>, %arg10: memref<5x80x128xf32, #tpu.memory_space<vmem>>, %arg11: memref<1x128xf32, #tpu.memory_space<vmem>>, %arg12: memref<128x128xf32, #tpu.memory_space<vmem>>, %arg13: memref<1x128xf32, #tpu.memory_space<vmem>>, %arg14: memref<128x128xf32, #tpu.memory_space<vmem>>, %arg15: memref<1x128xf32, #tpu.memory_space<vmem>>, %arg16: memref<8x128xf32, #tpu.memory_space<vmem>>) attributes {dimension_semantics = [#tpu.dimension_semantics<parallel>], iteration_bounds = array<i64: 1>, scalar_prefetch = 0 : i64, scratch_operands = 0 : i64, tpu.core_type = #tpu.core_type<tc>, window_params = [{transform_indices = @transform_0, window_bounds = array<i64: 1, 264, 96>}, {pipeline_mode = #tpu.pipeline_mode<synchronous>, transform_indices = @transform_1, window_bounds = array<i64: 5, 96, 168>}, {pipeline_mode = #tpu.pipeline_mode<synchronous>, transform_indices = @transform_2, window_bounds = array<i64: 1, 168>}, {pipeline_mode = #tpu.pipeline_mode<synchronous>, transform_indices = @transform_3, window_bounds = array<i64: 168, 84>}, {pipeline_mode = #tpu.pipeline_mode<synchronous>, transform_indices = @transform_4, window_bounds = array<i64: 168, 84>}, {pipeline_mode = #tpu.pipeline_mode<synchronous>, transform_indices = @transform_5, window_bounds = array<i64: 5, 84, 160>}, {pipeline_mode = #tpu.pipeline_mode<synchronous>, transform_indices = @transform_6, window_bounds = array<i64: 1, 160>}, {pipeline_mode = #tpu.pipeline_mode<synchronous>, transform_indices = @transform_7, window_bounds = array<i64: 160, 80>}, {pipeline_mode = #tpu.pipeline_mode<synchronous>, transform_indices = @transform_8, window_bounds = array<i64: 160, 80>}, {pipeline_mode = #tpu.pipeline_mode<synchronous>, transform_indices = @transform_9, window_bounds = array<i64: 5, 80, 128>}, {pipeline_mode = #tpu.pipeline_mode<synchronous>, transform_indices = @transform_10, window_bounds = array<i64: 1, 128>}, {pipeline_mode = #tpu.pipeline_mode<synchronous>, transform_indices = @transform_11, window_bounds = array<i64: 128, 128>}, {pipeline_mode = #tpu.pipeline_mode<synchronous>, transform_indices = @transform_12, window_bounds = array<i64: 1, 128>}, {pipeline_mode = #tpu.pipeline_mode<synchronous>, transform_indices = @transform_13, window_bounds = array<i64: 128, 128>}, {pipeline_mode = #tpu.pipeline_mode<synchronous>, transform_indices = @transform_14, window_bounds = array<i64: 1, 128>}, {transform_indices = @transform_15, window_bounds = array<i64: 8, 128>}]} {
    %c0 = arith.constant 0 : index
    %c0_0 = arith.constant 0 : index
    %c0_1 = arith.constant 0 : index
    %0 = vector.load %arg1[%c0, %c0_0, %c0_1] : memref<1x264x96xf32, #tpu.memory_space<vmem>>, vector<1x232x96xf32>
    %1 = vector.shape_cast %0 : vector<1x232x96xf32> to vector<232x96xf32>
    %c0_2 = arith.constant 0 : index
    %c0_3 = arith.constant 0 : index
    %c0_4 = arith.constant 0 : index
    %2 = vector.load %arg2[%c0_2, %c0_3, %c0_4] : memref<5x96x168xf32, #tpu.memory_space<vmem>>, vector<1x96x168xf32>
    %3 = vector.shape_cast %2 : vector<1x96x168xf32> to vector<96x168xf32>
    %cst = arith.constant dense<0.000000e+00> : vector<232x168xf32>
    %4 = tpu.matmul %1, %3, %cst {dimension_numbers = #tpu.dot_dimension_numbers<[1], [0], [0], [1], [0, 0, 1, 1], [], []>} : vector<232x96xf32>, vector<96x168xf32>, vector<232x168xf32> -> vector<232x168xf32>
    %c0_5 = arith.constant 0 : index
    %c8 = arith.constant 8 : index
    %c0_6 = arith.constant 0 : index
    %5 = vector.load %arg1[%c0_5, %c8, %c0_6] : memref<1x264x96xf32, #tpu.memory_space<vmem>>, vector<1x232x96xf32>
    %6 = vector.shape_cast %5 : vector<1x232x96xf32> to vector<232x96xf32>
    %c1 = arith.constant 1 : index
    %c0_7 = arith.constant 0 : index
    %c0_8 = arith.constant 0 : index
    %7 = vector.load %arg2[%c1, %c0_7, %c0_8] : memref<5x96x168xf32, #tpu.memory_space<vmem>>, vector<1x96x168xf32>
    %8 = vector.shape_cast %7 : vector<1x96x168xf32> to vector<96x168xf32>
    %cst_9 = arith.constant dense<0.000000e+00> : vector<232x168xf32>
    %9 = tpu.matmul %6, %8, %cst_9 {dimension_numbers = #tpu.dot_dimension_numbers<[1], [0], [0], [1], [0, 0, 1, 1], [], []>} : vector<232x96xf32>, vector<96x168xf32>, vector<232x168xf32> -> vector<232x168xf32>
    %c0_10 = arith.constant 0 : index
    %c16 = arith.constant 16 : index
    %c0_11 = arith.constant 0 : index
    %10 = vector.load %arg1[%c0_10, %c16, %c0_11] : memref<1x264x96xf32, #tpu.memory_space<vmem>>, vector<1x232x96xf32>
    %11 = vector.shape_cast %10 : vector<1x232x96xf32> to vector<232x96xf32>
    %c2 = arith.constant 2 : index
    %c0_12 = arith.constant 0 : index
    %c0_13 = arith.constant 0 : index
    %12 = vector.load %arg2[%c2, %c0_12, %c0_13] : memref<5x96x168xf32, #tpu.memory_space<vmem>>, vector<1x96x168xf32>
    %13 = vector.shape_cast %12 : vector<1x96x168xf32> to vector<96x168xf32>
    %cst_14 = arith.constant dense<0.000000e+00> : vector<232x168xf32>
    %14 = tpu.matmul %11, %13, %cst_14 {dimension_numbers = #tpu.dot_dimension_numbers<[1], [0], [0], [1], [0, 0, 1, 1], [], []>} : vector<232x96xf32>, vector<96x168xf32>, vector<232x168xf32> -> vector<232x168xf32>
    %c0_15 = arith.constant 0 : index
    %c24 = arith.constant 24 : index
    %c0_16 = arith.constant 0 : index
    %15 = vector.load %arg1[%c0_15, %c24, %c0_16] : memref<1x264x96xf32, #tpu.memory_space<vmem>>, vector<1x232x96xf32>
    %16 = vector.shape_cast %15 : vector<1x232x96xf32> to vector<232x96xf32>
    %c3 = arith.constant 3 : index
    %c0_17 = arith.constant 0 : index
    %c0_18 = arith.constant 0 : index
    %17 = vector.load %arg2[%c3, %c0_17, %c0_18] : memref<5x96x168xf32, #tpu.memory_space<vmem>>, vector<1x96x168xf32>
    %18 = vector.shape_cast %17 : vector<1x96x168xf32> to vector<96x168xf32>
    %cst_19 = arith.constant dense<0.000000e+00> : vector<232x168xf32>
    %19 = tpu.matmul %16, %18, %cst_19 {dimension_numbers = #tpu.dot_dimension_numbers<[1], [0], [0], [1], [0, 0, 1, 1], [], []>} : vector<232x96xf32>, vector<96x168xf32>, vector<232x168xf32> -> vector<232x168xf32>
    %c0_20 = arith.constant 0 : index
    %c32 = arith.constant 32 : index
    %c0_21 = arith.constant 0 : index
    %20 = vector.load %arg1[%c0_20, %c32, %c0_21] : memref<1x264x96xf32, #tpu.memory_space<vmem>>, vector<1x232x96xf32>
    %21 = vector.shape_cast %20 : vector<1x232x96xf32> to vector<232x96xf32>
    %c4 = arith.constant 4 : index
    %c0_22 = arith.constant 0 : index
    %c0_23 = arith.constant 0 : index
    %22 = vector.load %arg2[%c4, %c0_22, %c0_23] : memref<5x96x168xf32, #tpu.memory_space<vmem>>, vector<1x96x168xf32>
    %23 = vector.shape_cast %22 : vector<1x96x168xf32> to vector<96x168xf32>
    %cst_24 = arith.constant dense<0.000000e+00> : vector<232x168xf32>
    %24 = tpu.matmul %21, %23, %cst_24 {dimension_numbers = #tpu.dot_dimension_numbers<[1], [0], [0], [1], [0, 0, 1, 1], [], []>} : vector<232x96xf32>, vector<96x168xf32>, vector<232x168xf32> -> vector<232x168xf32>
    %25 = arith.addf %4, %9 : vector<232x168xf32>
    %26 = arith.addf %14, %19 : vector<232x168xf32>
    %27 = arith.addf %25, %26 : vector<232x168xf32>
    %c0_25 = arith.constant 0 : index
    %c0_26 = arith.constant 0 : index
    %28 = vector.load %arg3[%c0_25, %c0_26] : memref<1x168xf32, #tpu.memory_space<vmem>>, vector<1x168xf32>
    %29 = vector.shape_cast %28 : vector<1x168xf32> to vector<1x168xf32>
    %30 = vector.broadcast %29 : vector<1x168xf32> to vector<232x168xf32>
    %31 = arith.addf %24, %30 : vector<232x168xf32>
    %32 = arith.addf %27, %31 : vector<232x168xf32>
    %cst_27 = arith.constant 0.000000e+00 : f32
    %33 = vector.broadcast %cst_27 : f32 to vector<232x168xf32>
    %34 = arith.maximumf %32, %33 : vector<232x168xf32>
    %35 = vector.extract_strided_slice %34 {offsets = [0, 0], sizes = [224, 168], strides = [1, 1]} : vector<232x168xf32> to vector<224x168xf32>
    %36 = vector.extract_strided_slice %34 {offsets = [8, 0], sizes = [224, 168], strides = [1, 1]} : vector<232x168xf32> to vector<224x168xf32>
    %37 = arith.maximumf %35, %36 : vector<224x168xf32>
    %c0_28 = arith.constant 0 : index
    %c0_29 = arith.constant 0 : index
    %38 = vector.load %arg4[%c0_28, %c0_29] : memref<168x84xf32, #tpu.memory_space<vmem>>, vector<168x84xf32>
    %cst_30 = arith.constant dense<0.000000e+00> : vector<224x84xf32>
    %39 = tpu.matmul %37, %38, %cst_30 {dimension_numbers = #tpu.dot_dimension_numbers<[1], [0], [0], [1], [0, 0, 1, 1], [], []>} : vector<224x168xf32>, vector<168x84xf32>, vector<224x84xf32> -> vector<224x84xf32>
    %c0_31 = arith.constant 0 : index
    %c0_32 = arith.constant 0 : index
    %40 = vector.load %arg5[%c0_31, %c0_32] : memref<168x84xf32, #tpu.memory_space<vmem>>, vector<168x84xf32>
    %cst_33 = arith.constant dense<0.000000e+00> : vector<224x84xf32>
    %41 = tpu.matmul %37, %40, %cst_33 {dimension_numbers = #tpu.dot_dimension_numbers<[1], [0], [0], [1], [0, 0, 1, 1], [], []>} : vector<224x168xf32>, vector<168x84xf32>, vector<224x84xf32> -> vector<224x84xf32>
    %42 = arith.maximumf %39, %41 : vector<224x84xf32>
    %43 = vector.extract_strided_slice %42 {offsets = [0, 0], sizes = [160, 84], strides = [1, 1]} : vector<224x84xf32> to vector<160x84xf32>
    %c0_34 = arith.constant 0 : index
    %c0_35 = arith.constant 0 : index
    %c0_36 = arith.constant 0 : index
    %44 = vector.load %arg6[%c0_34, %c0_35, %c0_36] : memref<5x84x160xf32, #tpu.memory_space<vmem>>, vector<1x84x160xf32>
    %45 = vector.shape_cast %44 : vector<1x84x160xf32> to vector<84x160xf32>
    %cst_37 = arith.constant dense<0.000000e+00> : vector<160x160xf32>
    %46 = tpu.matmul %43, %45, %cst_37 {dimension_numbers = #tpu.dot_dimension_numbers<[1], [0], [0], [1], [0, 0, 1, 1], [], []>} : vector<160x84xf32>, vector<84x160xf32>, vector<160x160xf32> -> vector<160x160xf32>
    %47 = vector.extract_strided_slice %42 {offsets = [16, 0], sizes = [160, 84], strides = [1, 1]} : vector<224x84xf32> to vector<160x84xf32>
    %c1_38 = arith.constant 1 : index
    %c0_39 = arith.constant 0 : index
    %c0_40 = arith.constant 0 : index
    %48 = vector.load %arg6[%c1_38, %c0_39, %c0_40] : memref<5x84x160xf32, #tpu.memory_space<vmem>>, vector<1x84x160xf32>
    %49 = vector.shape_cast %48 : vector<1x84x160xf32> to vector<84x160xf32>
    %cst_41 = arith.constant dense<0.000000e+00> : vector<160x160xf32>
    %50 = tpu.matmul %47, %49, %cst_41 {dimension_numbers = #tpu.dot_dimension_numbers<[1], [0], [0], [1], [0, 0, 1, 1], [], []>} : vector<160x84xf32>, vector<84x160xf32>, vector<160x160xf32> -> vector<160x160xf32>
    %51 = vector.extract_strided_slice %42 {offsets = [32, 0], sizes = [160, 84], strides = [1, 1]} : vector<224x84xf32> to vector<160x84xf32>
    %c2_42 = arith.constant 2 : index
    %c0_43 = arith.constant 0 : index
    %c0_44 = arith.constant 0 : index
    %52 = vector.load %arg6[%c2_42, %c0_43, %c0_44] : memref<5x84x160xf32, #tpu.memory_space<vmem>>, vector<1x84x160xf32>
    %53 = vector.shape_cast %52 : vector<1x84x160xf32> to vector<84x160xf32>
    %cst_45 = arith.constant dense<0.000000e+00> : vector<160x160xf32>
    %54 = tpu.matmul %51, %53, %cst_45 {dimension_numbers = #tpu.dot_dimension_numbers<[1], [0], [0], [1], [0, 0, 1, 1], [], []>} : vector<160x84xf32>, vector<84x160xf32>, vector<160x160xf32> -> vector<160x160xf32>
    %55 = vector.extract_strided_slice %42 {offsets = [48, 0], sizes = [160, 84], strides = [1, 1]} : vector<224x84xf32> to vector<160x84xf32>
    %c3_46 = arith.constant 3 : index
    %c0_47 = arith.constant 0 : index
    %c0_48 = arith.constant 0 : index
    %56 = vector.load %arg6[%c3_46, %c0_47, %c0_48] : memref<5x84x160xf32, #tpu.memory_space<vmem>>, vector<1x84x160xf32>
    %57 = vector.shape_cast %56 : vector<1x84x160xf32> to vector<84x160xf32>
    %cst_49 = arith.constant dense<0.000000e+00> : vector<160x160xf32>
    %58 = tpu.matmul %55, %57, %cst_49 {dimension_numbers = #tpu.dot_dimension_numbers<[1], [0], [0], [1], [0, 0, 1, 1], [], []>} : vector<160x84xf32>, vector<84x160xf32>, vector<160x160xf32> -> vector<160x160xf32>
    %59 = vector.extract_strided_slice %42 {offsets = [64, 0], sizes = [160, 84], strides = [1, 1]} : vector<224x84xf32> to vector<160x84xf32>
    %c4_50 = arith.constant 4 : index
    %c0_51 = arith.constant 0 : index
    %c0_52 = arith.constant 0 : index
    %60 = vector.load %arg6[%c4_50, %c0_51, %c0_52] : memref<5x84x160xf32, #tpu.memory_space<vmem>>, vector<1x84x160xf32>
    %61 = vector.shape_cast %60 : vector<1x84x160xf32> to vector<84x160xf32>
    %cst_53 = arith.constant dense<0.000000e+00> : vector<160x160xf32>
    %62 = tpu.matmul %59, %61, %cst_53 {dimension_numbers = #tpu.dot_dimension_numbers<[1], [0], [0], [1], [0, 0, 1, 1], [], []>} : vector<160x84xf32>, vector<84x160xf32>, vector<160x160xf32> -> vector<160x160xf32>
    %63 = arith.addf %46, %50 : vector<160x160xf32>
    %64 = arith.addf %54, %58 : vector<160x160xf32>
    %65 = arith.addf %63, %64 : vector<160x160xf32>
    %c0_54 = arith.constant 0 : index
    %c0_55 = arith.constant 0 : index
    %66 = vector.load %arg7[%c0_54, %c0_55] : memref<1x160xf32, #tpu.memory_space<vmem>>, vector<1x160xf32>
    %67 = vector.shape_cast %66 : vector<1x160xf32> to vector<1x160xf32>
    %68 = vector.broadcast %67 : vector<1x160xf32> to vector<160x160xf32>
    %69 = arith.addf %62, %68 : vector<160x160xf32>
    %70 = arith.addf %65, %69 : vector<160x160xf32>
    %cst_56 = arith.constant 0.000000e+00 : f32
    %71 = vector.broadcast %cst_56 : f32 to vector<160x160xf32>
    %72 = arith.maximumf %70, %71 : vector<160x160xf32>
    %73 = vector.extract_strided_slice %72 {offsets = [0, 0], sizes = [144, 160], strides = [1, 1]} : vector<160x160xf32> to vector<144x160xf32>
    %74 = vector.extract_strided_slice %72 {offsets = [16, 0], sizes = [144, 160], strides = [1, 1]} : vector<160x160xf32> to vector<144x160xf32>
    %75 = arith.maximumf %73, %74 : vector<144x160xf32>
    %c0_57 = arith.constant 0 : index
    %c0_58 = arith.constant 0 : index
    %76 = vector.load %arg8[%c0_57, %c0_58] : memref<160x80xf32, #tpu.memory_space<vmem>>, vector<160x80xf32>
    %cst_59 = arith.constant dense<0.000000e+00> : vector<144x80xf32>
    %77 = tpu.matmul %75, %76, %cst_59 {dimension_numbers = #tpu.dot_dimension_numbers<[1], [0], [0], [1], [0, 0, 1, 1], [], []>} : vector<144x160xf32>, vector<160x80xf32>, vector<144x80xf32> -> vector<144x80xf32>
    %c0_60 = arith.constant 0 : index
    %c0_61 = arith.constant 0 : index
    %78 = vector.load %arg9[%c0_60, %c0_61] : memref<160x80xf32, #tpu.memory_space<vmem>>, vector<160x80xf32>
    %cst_62 = arith.constant dense<0.000000e+00> : vector<144x80xf32>
    %79 = tpu.matmul %75, %78, %cst_62 {dimension_numbers = #tpu.dot_dimension_numbers<[1], [0], [0], [1], [0, 0, 1, 1], [], []>} : vector<144x160xf32>, vector<160x80xf32>, vector<144x80xf32> -> vector<144x80xf32>
    %80 = arith.maximumf %77, %79 : vector<144x80xf32>
    %81 = vector.extract_strided_slice %80 {offsets = [0, 0], sizes = [8, 80], strides = [1, 1]} : vector<144x80xf32> to vector<8x80xf32>
    %c0_63 = arith.constant 0 : index
    %c0_64 = arith.constant 0 : index
    %c0_65 = arith.constant 0 : index
    %82 = vector.load %arg10[%c0_63, %c0_64, %c0_65] : memref<5x80x128xf32, #tpu.memory_space<vmem>>, vector<1x80x128xf32>
    %83 = vector.shape_cast %82 : vector<1x80x128xf32> to vector<80x128xf32>
    %cst_66 = arith.constant dense<0.000000e+00> : vector<8x128xf32>
    %84 = tpu.matmul %81, %83, %cst_66 {dimension_numbers = #tpu.dot_dimension_numbers<[1], [0], [0], [1], [0, 0, 1, 1], [], []>} : vector<8x80xf32>, vector<80x128xf32>, vector<8x128xf32> -> vector<8x128xf32>
    %85 = vector.extract_strided_slice %80 {offsets = [32, 0], sizes = [8, 80], strides = [1, 1]} : vector<144x80xf32> to vector<8x80xf32>
    %c1_67 = arith.constant 1 : index
    %c0_68 = arith.constant 0 : index
    %c0_69 = arith.constant 0 : index
    %86 = vector.load %arg10[%c1_67, %c0_68, %c0_69] : memref<5x80x128xf32, #tpu.memory_space<vmem>>, vector<1x80x128xf32>
    %87 = vector.shape_cast %86 : vector<1x80x128xf32> to vector<80x128xf32>
    %cst_70 = arith.constant dense<0.000000e+00> : vector<8x128xf32>
    %88 = tpu.matmul %85, %87, %cst_70 {dimension_numbers = #tpu.dot_dimension_numbers<[1], [0], [0], [1], [0, 0, 1, 1], [], []>} : vector<8x80xf32>, vector<80x128xf32>, vector<8x128xf32> -> vector<8x128xf32>
    %89 = vector.extract_strided_slice %80 {offsets = [64, 0], sizes = [8, 80], strides = [1, 1]} : vector<144x80xf32> to vector<8x80xf32>
    %c2_71 = arith.constant 2 : index
    %c0_72 = arith.constant 0 : index
    %c0_73 = arith.constant 0 : index
    %90 = vector.load %arg10[%c2_71, %c0_72, %c0_73] : memref<5x80x128xf32, #tpu.memory_space<vmem>>, vector<1x80x128xf32>
    %91 = vector.shape_cast %90 : vector<1x80x128xf32> to vector<80x128xf32>
    %cst_74 = arith.constant dense<0.000000e+00> : vector<8x128xf32>
    %92 = tpu.matmul %89, %91, %cst_74 {dimension_numbers = #tpu.dot_dimension_numbers<[1], [0], [0], [1], [0, 0, 1, 1], [], []>} : vector<8x80xf32>, vector<80x128xf32>, vector<8x128xf32> -> vector<8x128xf32>
    %93 = vector.extract_strided_slice %80 {offsets = [96, 0], sizes = [8, 80], strides = [1, 1]} : vector<144x80xf32> to vector<8x80xf32>
    %c3_75 = arith.constant 3 : index
    %c0_76 = arith.constant 0 : index
    %c0_77 = arith.constant 0 : index
    %94 = vector.load %arg10[%c3_75, %c0_76, %c0_77] : memref<5x80x128xf32, #tpu.memory_space<vmem>>, vector<1x80x128xf32>
    %95 = vector.shape_cast %94 : vector<1x80x128xf32> to vector<80x128xf32>
    %cst_78 = arith.constant dense<0.000000e+00> : vector<8x128xf32>
    %96 = tpu.matmul %93, %95, %cst_78 {dimension_numbers = #tpu.dot_dimension_numbers<[1], [0], [0], [1], [0, 0, 1, 1], [], []>} : vector<8x80xf32>, vector<80x128xf32>, vector<8x128xf32> -> vector<8x128xf32>
    %97 = vector.extract_strided_slice %80 {offsets = [128, 0], sizes = [8, 80], strides = [1, 1]} : vector<144x80xf32> to vector<8x80xf32>
    %c4_79 = arith.constant 4 : index
    %c0_80 = arith.constant 0 : index
    %c0_81 = arith.constant 0 : index
    %98 = vector.load %arg10[%c4_79, %c0_80, %c0_81] : memref<5x80x128xf32, #tpu.memory_space<vmem>>, vector<1x80x128xf32>
    %99 = vector.shape_cast %98 : vector<1x80x128xf32> to vector<80x128xf32>
    %cst_82 = arith.constant dense<0.000000e+00> : vector<8x128xf32>
    %100 = tpu.matmul %97, %99, %cst_82 {dimension_numbers = #tpu.dot_dimension_numbers<[1], [0], [0], [1], [0, 0, 1, 1], [], []>} : vector<8x80xf32>, vector<80x128xf32>, vector<8x128xf32> -> vector<8x128xf32>
    %101 = arith.addf %84, %88 : vector<8x128xf32>
    %102 = arith.addf %92, %96 : vector<8x128xf32>
    %103 = arith.addf %101, %102 : vector<8x128xf32>
    %c0_83 = arith.constant 0 : index
    %c0_84 = arith.constant 0 : index
    %104 = vector.load %arg11[%c0_83, %c0_84] : memref<1x128xf32, #tpu.memory_space<vmem>>, vector<1x128xf32>
    %105 = vector.shape_cast %104 : vector<1x128xf32> to vector<1x128xf32>
    %106 = vector.broadcast %105 : vector<1x128xf32> to vector<8x128xf32>
    %107 = arith.addf %100, %106 : vector<8x128xf32>
    %108 = arith.addf %103, %107 : vector<8x128xf32>
    %cst_85 = arith.constant 0.000000e+00 : f32
    %109 = vector.broadcast %cst_85 : f32 to vector<8x128xf32>
    %110 = arith.maximumf %108, %109 : vector<8x128xf32>
    %c0_86 = arith.constant 0 : index
    %c0_87 = arith.constant 0 : index
    %111 = vector.load %arg12[%c0_86, %c0_87] : memref<128x128xf32, #tpu.memory_space<vmem>>, vector<128x128xf32>
    %cst_88 = arith.constant dense<0.000000e+00> : vector<8x128xf32>
    %112 = tpu.matmul %110, %111, %cst_88 {dimension_numbers = #tpu.dot_dimension_numbers<[1], [0], [0], [1], [0, 0, 1, 1], [], []>} : vector<8x128xf32>, vector<128x128xf32>, vector<8x128xf32> -> vector<8x128xf32>
    %c0_89 = arith.constant 0 : index
    %c0_90 = arith.constant 0 : index
    %113 = vector.load %arg13[%c0_89, %c0_90] : memref<1x128xf32, #tpu.memory_space<vmem>>, vector<1x128xf32>
    %114 = vector.shape_cast %113 : vector<1x128xf32> to vector<1x128xf32>
    %115 = vector.broadcast %114 : vector<1x128xf32> to vector<8x128xf32>
    %116 = arith.addf %112, %115 : vector<8x128xf32>
    %cst_91 = arith.constant 0.000000e+00 : f32
    %117 = vector.broadcast %cst_91 : f32 to vector<8x128xf32>
    %118 = arith.maximumf %116, %117 : vector<8x128xf32>
    %c0_92 = arith.constant 0 : index
    %c0_93 = arith.constant 0 : index
    %119 = vector.load %arg14[%c0_92, %c0_93] : memref<128x128xf32, #tpu.memory_space<vmem>>, vector<128x128xf32>
    %cst_94 = arith.constant dense<0.000000e+00> : vector<8x128xf32>
    %120 = tpu.matmul %118, %119, %cst_94 {dimension_numbers = #tpu.dot_dimension_numbers<[1], [0], [0], [1], [0, 0, 1, 1], [], []>} : vector<8x128xf32>, vector<128x128xf32>, vector<8x128xf32> -> vector<8x128xf32>
    %c0_95 = arith.constant 0 : index
    %c0_96 = arith.constant 0 : index
    %121 = vector.load %arg15[%c0_95, %c0_96] : memref<1x128xf32, #tpu.memory_space<vmem>>, vector<1x128xf32>
    %122 = vector.shape_cast %121 : vector<1x128xf32> to vector<1x128xf32>
    %123 = vector.broadcast %122 : vector<1x128xf32> to vector<8x128xf32>
    %124 = arith.addf %120, %123 : vector<8x128xf32>
    %c0_97 = arith.constant 0 : index
    %c0_98 = arith.constant 0 : index
    %125 = vector.load %arg16[%c0_97, %c0_98] : memref<8x128xf32, #tpu.memory_space<vmem>>, vector<8x128xf32>
    tpu.vector_store %arg16[%c0_97, %c0_98], %124 {strides = array<i32>} : memref<8x128xf32, #tpu.memory_space<vmem>>, vector<8x128xf32>,
    return
  }
  func.func @transform_0(%arg0: i32) -> (i32, i32, i32) {
    %c0_i32 = arith.constant 0 : i32
    %c0_i32_0 = arith.constant 0 : i32
    %c0_i32_1 = arith.constant 0 : i32
    return %arg0, %c0_i32, %c0_i32_0 : i32, i32, i32
  }
  func.func @transform_1(%arg0: i32) -> (i32, i32, i32) {
    %c0_i32 = arith.constant 0 : i32
    %c0_i32_0 = arith.constant 0 : i32
    %c0_i32_1 = arith.constant 0 : i32
    %c0_i32_2 = arith.constant 0 : i32
    return %c0_i32, %c0_i32_0, %c0_i32_1 : i32, i32, i32
  }
  func.func @transform_2(%arg0: i32) -> (i32, i32) {
    %c0_i32 = arith.constant 0 : i32
    %c0_i32_0 = arith.constant 0 : i32
    %c0_i32_1 = arith.constant 0 : i32
    return %c0_i32, %c0_i32_0 : i32, i32
  }
  func.func @transform_3(%arg0: i32) -> (i32, i32) {
    %c0_i32 = arith.constant 0 : i32
    %c0_i32_0 = arith.constant 0 : i32
    %c0_i32_1 = arith.constant 0 : i32
    return %c0_i32, %c0_i32_0 : i32, i32
  }
  func.func @transform_4(%arg0: i32) -> (i32, i32) {
    %c0_i32 = arith.constant 0 : i32
    %c0_i32_0 = arith.constant 0 : i32
    %c0_i32_1 = arith.constant 0 : i32
    return %c0_i32, %c0_i32_0 : i32, i32
  }
  func.func @transform_5(%arg0: i32) -> (i32, i32, i32) {
    %c0_i32 = arith.constant 0 : i32
    %c0_i32_0 = arith.constant 0 : i32
    %c0_i32_1 = arith.constant 0 : i32
    %c0_i32_2 = arith.constant 0 : i32
    return %c0_i32, %c0_i32_0, %c0_i32_1 : i32, i32, i32
  }
  func.func @transform_6(%arg0: i32) -> (i32, i32) {
    %c0_i32 = arith.constant 0 : i32
    %c0_i32_0 = arith.constant 0 : i32
    %c0_i32_1 = arith.constant 0 : i32
    return %c0_i32, %c0_i32_0 : i32, i32
  }
  func.func @transform_7(%arg0: i32) -> (i32, i32) {
    %c0_i32 = arith.constant 0 : i32
    %c0_i32_0 = arith.constant 0 : i32
    %c0_i32_1 = arith.constant 0 : i32
    return %c0_i32, %c0_i32_0 : i32, i32
  }
  func.func @transform_8(%arg0: i32) -> (i32, i32) {
    %c0_i32 = arith.constant 0 : i32
    %c0_i32_0 = arith.constant 0 : i32
    %c0_i32_1 = arith.constant 0 : i32
    return %c0_i32, %c0_i32_0 : i32, i32
  }
  func.func @transform_9(%arg0: i32) -> (i32, i32, i32) {
    %c0_i32 = arith.constant 0 : i32
    %c0_i32_0 = arith.constant 0 : i32
    %c0_i32_1 = arith.constant 0 : i32
    %c0_i32_2 = arith.constant 0 : i32
    return %c0_i32, %c0_i32_0, %c0_i32_1 : i32, i32, i32
  }
  func.func @transform_10(%arg0: i32) -> (i32, i32) {
    %c0_i32 = arith.constant 0 : i32
    %c0_i32_0 = arith.constant 0 : i32
    %c0_i32_1 = arith.constant 0 : i32
    return %c0_i32, %c0_i32_0 : i32, i32
  }
  func.func @transform_11(%arg0: i32) -> (i32, i32) {
    %c0_i32 = arith.constant 0 : i32
    %c0_i32_0 = arith.constant 0 : i32
    %c0_i32_1 = arith.constant 0 : i32
    return %c0_i32, %c0_i32_0 : i32, i32
  }
  func.func @transform_12(%arg0: i32) -> (i32, i32) {
    %c0_i32 = arith.constant 0 : i32
    %c0_i32_0 = arith.constant 0 : i32
    %c0_i32_1 = arith.constant 0 : i32
    return %c0_i32, %c0_i32_0 : i32, i32
  }
  func.func @transform_13(%arg0: i32) -> (i32, i32) {
    %c0_i32 = arith.constant 0 : i32
    %c0_i32_0 = arith.constant 0 : i32
    %c0_i32_1 = arith.constant 0 : i32
    return %c0_i32, %c0_i32_0 : i32, i32
  }
  func.func @transform_14(%arg0: i32) -> (i32, i32) {
    %c0_i32 = arith.constant 0 : i32
    %c0_i32_0 = arith.constant 0 : i32
    %c0_i32_1 = arith.constant 0 : i32
    return %c0_i32, %c0_i32_0 : i32, i32
  }
  func.func @transform_15(%arg0: i32) -> (i32, i32) {
    %c0_i32 = arith.constant 0 : i32
    %c0_i32_0 = arith.constant 0 : i32
    return %arg0, %c0_i32 : i32, i32
  }
}

</mosaic_0001>

<llo_original>
// kernel: convnet_forward.1
$region0: #{convnet_forward.1}
  #allocation0 [shape = 'u32[]', space=smem, size = 0x4, offset = 0x4, fixed_abs, tag = 'smem constant byte address 0x4 - core index']
  #allocation1 [shape = 'u32[144,128]{1,0:T(1,128)}', space=vmem, size = 0x12000, scoped, tag = 'internal scratch']
  %s0 = inlined_call_operand.vmem [shape: f32[1,264,96], index: 0, kind: input, shape index: {}]
  %s1 = inlined_call_operand.vmem [shape: f32[5,96,168], index: 1, kind: input, shape index: {}]
  %s2 = inlined_call_operand.vmem [shape: f32[1,168], index: 2, kind: input, shape index: {}]
  %s3 = inlined_call_operand.vmem [shape: f32[168,84], index: 3, kind: input, shape index: {}]
  %s4 = inlined_call_operand.vmem [shape: f32[168,84], index: 4, kind: input, shape index: {}]
  %s5 = inlined_call_operand.vmem [shape: f32[5,84,160], index: 5, kind: input, shape index: {}]
  %s6 = inlined_call_operand.vmem [shape: f32[1,160], index: 6, kind: input, shape index: {}]
  %s7 = inlined_call_operand.vmem [shape: f32[160,80], index: 7, kind: input, shape index: {}]
  %s8 = inlined_call_operand.vmem [shape: f32[160,80], index: 8, kind: input, shape index: {}]
  %s9 = inlined_call_operand.vmem [shape: f32[5,80,128], index: 9, kind: input, shape index: {}]
  %s10 = inlined_call_operand.vmem [shape: f32[1,128], index: 10, kind: input, shape index: {}]
  %s11 = inlined_call_operand.vmem [shape: f32[128,128], index: 11, kind: input, shape index: {}]
  %s12 = inlined_call_operand.vmem [shape: f32[1,128], index: 12, kind: input, shape index: {}]
  %s13 = inlined_call_operand.vmem [shape: f32[128,128], index: 13, kind: input, shape index: {}]
  %s14 = inlined_call_operand.vmem [shape: f32[1,128], index: 14, kind: input, shape index: {}]
  %s15 = inlined_call_operand.vmem [shape: f32[8,128], index: 15, kind: output, shape index: {}]
  %s16 = sld [smem:[#allocation0]]
  $region70: #{convnet_forward.1} parent=0
    _
  %s18 = ssub.s32 1, %s16
  %s19 = scalar_select 0, %s18, %s16
  // Predicated region
  $region2: #{convnet_forward.1} parent=0 // pred_check
    _
  $region3: #{convnet_forward.1} parent=0 // pred_check_branch
    %21 = sbr.rel (0) target = $region5
  $region4: #{convnet_forward.1} parent=0 // pred_region
    _
  $region5: #{convnet_forward.1} parent=0 // pred_fallthru
    _
  // Predicated region
  $region6: #{convnet_forward.1} parent=0 // pred_check
    _
  $region7: #{convnet_forward.1} parent=0 // pred_check_branch
    %23 = sbr.rel (0) target = $region9
  $region8: #{convnet_forward.1} parent=0 // pred_region
    _
  $region9: #{convnet_forward.1} parent=0 // pred_fallthru
    _
  // Predicated region
  $region10: #{convnet_forward.1} parent=0 // pred_check
    _
  $region11: #{convnet_forward.1} parent=0 // pred_check_branch
    %25 = sbr.rel (0) target = $region13
  $region12: #{convnet_forward.1} parent=0 // pred_region
    _
  $region13: #{convnet_forward.1} parent=0 // pred_fallthru
    _
  // Predicated region
  $region14: #{convnet_forward.1} parent=0 // pred_check
    _
  $region15: #{convnet_forward.1} parent=0 // pred_check_branch
    %27 = sbr.rel (0) target = $region17
  $region16: #{convnet_forward.1} parent=0 // pred_region
    _
  $region17: #{convnet_forward.1} parent=0 // pred_fallthru
    _
  // Predicated region
  $region18: #{convnet_forward.1} parent=0 // pred_check
    _
  $region19: #{convnet_forward.1} parent=0 // pred_check_branch
    %29 = sbr.rel (0) target = $region21
  $region20: #{convnet_forward.1} parent=0 // pred_region
    _
  $region21: #{convnet_forward.1} parent=0 // pred_fallthru
    _
  // Predicated region
  $region22: #{convnet_forward.1} parent=0 // pred_check
    _
  $region23: #{convnet_forward.1} parent=0 // pred_check_branch
    %31 = sbr.rel (0) target = $region25
  $region24: #{convnet_forward.1} parent=0 // pred_region
    _
  $region25: #{convnet_forward.1} parent=0 // pred_fallthru
    _
  // Predicated region
  $region26: #{convnet_forward.1} parent=0 // pred_check
    _
  $region27: #{convnet_forward.1} parent=0 // pred_check_branch
    %33 = sbr.rel (0) target = $region29
  $region28: #{convnet_forward.1} parent=0 // pred_region
    _
  $region29: #{convnet_forward.1} parent=0 // pred_fallthru
    _
  // Predicated region
  $region30: #{convnet_forward.1} parent=0 // pred_check
    _
  $region31: #{convnet_forward.1} parent=0 // pred_check_branch
    %35 = sbr.rel (0) target = $region33
  $region32: #{convnet_forward.1} parent=0 // pred_region
    _
  $region33: #{convnet_forward.1} parent=0 // pred_fallthru
    _
  // Predicated region
  $region34: #{convnet_forward.1} parent=0 // pred_check
    _
  $region35: #{convnet_forward.1} parent=0 // pred_check_branch
    %37 = sbr.rel (0) target = $region37
  $region36: #{convnet_forward.1} parent=0 // pred_region
    _
  $region37: #{convnet_forward.1} parent=0 // pred_fallthru
    _
  // Predicated region
  $region38: #{convnet_forward.1} parent=0 // pred_check
    _
  $region39: #{convnet_forward.1} parent=0 // pred_check_branch
    %39 = sbr.rel (0) target = $region41
  $region40: #{convnet_forward.1} parent=0 // pred_region
    _
  $region41: #{convnet_forward.1} parent=0 // pred_fallthru
    _
  // Predicated region
  $region42: #{convnet_forward.1} parent=0 // pred_check
    _
  $region43: #{convnet_forward.1} parent=0 // pred_check_branch
    %41 = sbr.rel (0) target = $region45
  $region44: #{convnet_forward.1} parent=0 // pred_region
    _
  $region45: #{convnet_forward.1} parent=0 // pred_fallthru
    _
  // Predicated region
  $region46: #{convnet_forward.1} parent=0 // pred_check
    _
  $region47: #{convnet_forward.1} parent=0 // pred_check_branch
    %43 = sbr.rel (0) target = $region49
  $region48: #{convnet_forward.1} parent=0 // pred_region
    _
  $region49: #{convnet_forward.1} parent=0 // pred_fallthru
    _
  // Predicated region
  $region50: #{convnet_forward.1} parent=0 // pred_check
    _
  $region51: #{convnet_forward.1} parent=0 // pred_check_branch
    %45 = sbr.rel (0) target = $region53
  $region52: #{convnet_forward.1} parent=0 // pred_region
    _
  $region53: #{convnet_forward.1} parent=0 // pred_fallthru
    _
  // Predicated region
  $region54: #{convnet_forward.1} parent=0 // pred_check
    _
  $region55: #{convnet_forward.1} parent=0 // pred_check_branch
    %47 = sbr.rel (0) target = $region57
  $region56: #{convnet_forward.1} parent=0 // pred_region
    _
  $region57: #{convnet_forward.1} parent=0 // pred_fallthru
    _
  // Predicated region
  $region58: #{convnet_forward.1} parent=0 // pred_check
    _
  $region59: #{convnet_forward.1} parent=0 // pred_check_branch
    %49 = sbr.rel (0) target = $region61
  $region60: #{convnet_forward.1} parent=0 // pred_region
    _
  $region61: #{convnet_forward.1} parent=0 // pred_fallthru
    _
  %v50 = vld [vmem:[%s0] sm:$0xff]
  %v51 = vld [vmem:[%s0 + $0x8] sm:$0xff]
  %v52 = vld [vmem:[%s0 + $0x10] sm:$0xff]
  %v53 = vld [vmem:[%s0 + $0x18] sm:$0xff]
  %v54 = vld [vmem:[%s0 + $0x20] sm:$0xff]
  %v55 = vld [vmem:[%s0 + $0x28] sm:$0xff]
  %v56 = vld [vmem:[%s0 + $0x30] sm:$0xff]
  %v57 = vld [vmem:[%s0 + $0x38] sm:$0xff]
  %v58 = vld [vmem:[%s0 + $0x40] sm:$0xff]
  %v59 = vld [vmem:[%s0 + $0x48] sm:$0xff]
  %v60 = vld [vmem:[%s0 + $0x50] sm:$0xff]
  %v61 = vld [vmem:[%s0 + $0x58] sm:$0xff]
  %v62 = vld [vmem:[%s0 + $0x60] sm:$0xff]
  %v63 = vld [vmem:[%s0 + $0x68] sm:$0xff]
  %v64 = vld [vmem:[%s0 + $0x70] sm:$0xff]
  %v65 = vld [vmem:[%s0 + $0x78] sm:$0xff]
  %v66 = vld [vmem:[%s0 + $0x80] sm:$0xff]
  %v67 = vld [vmem:[%s0 + $0x88] sm:$0xff]
  %v68 = vld [vmem:[%s0 + $0x90] sm:$0xff]
  %v69 = vld [vmem:[%s0 + $0x98] sm:$0xff]
  %v70 = vld [vmem:[%s0 + $0xa0] sm:$0xff]
  %v71 = vld [vmem:[%s0 + $0xa8] sm:$0xff]
  %v72 = vld [vmem:[%s0 + $0xb0] sm:$0xff]
  %v73 = vld [vmem:[%s0 + $0xb8] sm:$0xff]
  %v74 = vld [vmem:[%s0 + $0xc0] sm:$0xff]
  %v75 = vld [vmem:[%s0 + $0xc8] sm:$0xff]
  %v76 = vld [vmem:[%s0 + $0xd0] sm:$0xff]
  %v77 = vld [vmem:[%s0 + $0xd8] sm:$0xff]
  %v78 = vld [vmem:[%s0 + $0xe0] sm:$0xff]
  %v79 = vld [vmem:[%s1] sm:$0xff]
  %v80 = vld [vmem:[%s1 + $0x8] sm:$0xff]
  %v81 = vld [vmem:[%s1 + $0x10] sm:$0xff]
  %v82 = vld [vmem:[%s1 + $0x18] sm:$0xff]
  %v83 = vld [vmem:[%s1 + $0x20] sm:$0xff]
  %v84 = vld [vmem:[%s1 + $0x28] sm:$0xff]
  %v85 = vld [vmem:[%s1 + $0x30] sm:$0xff]
  %v86 = vld [vmem:[%s1 + $0x38] sm:$0xff]
  %v87 = vld [vmem:[%s1 + $0x40] sm:$0xff]
  %v88 = vld [vmem:[%s1 + $0x48] sm:$0xff]
  %v89 = vld [vmem:[%s1 + $0x50] sm:$0xff]
  %v90 = vld [vmem:[%s1 + $0x58] sm:$0xff]
  %v91 = vld [vmem:[%s1 + $0x60] sm:$0xff]
  %v92 = vld [vmem:[%s1 + $0x68] sm:$0xff]
  %v93 = vld [vmem:[%s1 + $0x70] sm:$0xff]
  %v94 = vld [vmem:[%s1 + $0x78] sm:$0xff]
  %v95 = vld [vmem:[%s1 + $0x80] sm:$0xff]
  %v96 = vld [vmem:[%s1 + $0x88] sm:$0xff]
  %v97 = vld [vmem:[%s1 + $0x90] sm:$0xff]
  %v98 = vld [vmem:[%s1 + $0x98] sm:$0xff]
  %v99 = vld [vmem:[%s1 + $0xa0] sm:$0xff]
  %v100 = vld [vmem:[%s1 + $0xa8] sm:$0xff]
  %v101 = vld [vmem:[%s1 + $0xb0] sm:$0xff]
  %v102 = vld [vmem:[%s1 + $0xb8] sm:$0xff]
  %v103 = vld [vmem:[%s0 + $0xe8] sm:$0xff]
  %s104 = scalar_lea.vmem %s1, 192
  %v105 = vld [vmem:[%s104] sm:$0xff]
  %v106 = vld [vmem:[%s104 + $0x8] sm:$0xff]
  %v107 = vld [vmem:[%s104 + $0x10] sm:$0xff]
  %v108 = vld [vmem:[%s104 + $0x18] sm:$0xff]
  %v109 = vld [vmem:[%s104 + $0x20] sm:$0xff]
  %v110 = vld [vmem:[%s104 + $0x28] sm:$0xff]
  %v111 = vld [vmem:[%s104 + $0x30] sm:$0xff]
  %v112 = vld [vmem:[%s104 + $0x38] sm:$0xff]
  %v113 = vld [vmem:[%s104 + $0x40] sm:$0xff]
  %v114 = vld [vmem:[%s104 + $0x48] sm:$0xff]
  %v115 = vld [vmem:[%s104 + $0x50] sm:$0xff]
  %v116 = vld [vmem:[%s104 + $0x58] sm:$0xff]
  %v117 = vld [vmem:[%s104 + $0x60] sm:$0xff]
  %v118 = vld [vmem:[%s104 + $0x68] sm:$0xff]
  %v119 = vld [vmem:[%s104 + $0x70] sm:$0xff]
  %v120 = vld [vmem:[%s104 + $0x78] sm:$0xff]
  %v121 = vld [vmem:[%s104 + $0x80] sm:$0xff]
  %v122 = vld [vmem:[%s104 + $0x88] sm:$0xff]
  %v123 = vld [vmem:[%s104 + $0x90] sm:$0xff]
  %v124 = vld [vmem:[%s104 + $0x98] sm:$0xff]
  %v125 = vld [vmem:[%s104 + $0xa0] sm:$0xff]
  %v126 = vld [vmem:[%s104 + $0xa8] sm:$0xff]
  %v127 = vld [vmem:[%s104 + $0xb0] sm:$0xff]
  %v128 = vld [vmem:[%s104 + $0xb8] sm:$0xff]
  %vm129 = vcmask 785408
  %v131 = vsel %vm129, %v51, 0
  %v134 = vsel %vm129, %v52, 0
  %v137 = vsel %vm129, %v53, 0
  %v140 = vsel %vm129, %v54, 0
  %v143 = vsel %vm129, %v55, 0
  %v146 = vsel %vm129, %v56, 0
  %v149 = vsel %vm129, %v57, 0
  %v152 = vsel %vm129, %v58, 0
  %v155 = vsel %vm129, %v59, 0
  %v158 = vsel %vm129, %v60, 0
  %v161 = vsel %vm129, %v61, 0
  %v164 = vsel %vm129, %v62, 0
  %v167 = vsel %vm129, %v63, 0
  %v170 = vsel %vm129, %v64, 0
  %v173 = vsel %vm129, %v65, 0
  %v176 = vsel %vm129, %v66, 0
  %v179 = vsel %vm129, %v67, 0
  %v182 = vsel %vm129, %v68, 0
  %v185 = vsel %vm129, %v69, 0
  %v188 = vsel %vm129, %v70, 0
  %v191 = vsel %vm129, %v71, 0
  %v194 = vsel %vm129, %v72, 0
  %v197 = vsel %vm129, %v73, 0
  %v200 = vsel %vm129, %v74, 0
  %v203 = vsel %vm129, %v75, 0
  %v206 = vsel %vm129, %v76, 0
  %v209 = vsel %vm129, %v77, 0
  %v212 = vsel %vm129, %v78, 0
  %v215 = vsel %vm129, %v103, 0
  %217 = vmatprep.subr.mxu0 %v106
  %218 = vmatpush1.msra.mxu0 %v105
  %219 = vmatprep.subr.mxu0 %v108
  %220 = vmatpush1.msra.mxu0 %v107
  %221 = vmatprep.subr.mxu0 %v110
  %222 = vmatpush1.msra.mxu0 %v109
  %223 = vmatprep.subr.mxu0 %v112
  %224 = vmatpush1.msra.mxu0 %v111
  %225 = vmatprep.subr.mxu0 %v114
  %226 = vmatpush1.msra.mxu0 %v113
  %227 = vmatprep.subr.mxu0 %v116
  %228 = vmatpush1.msra.mxu0 %v115
  %229 = vmatprep.subr.mxu0 %v118
  %230 = vmatpush1.msra.mxu0 %v117
  %231 = vmatprep.subr.mxu0 %v120
  %232 = vmatpush1.msra.mxu0 %v119
  %233 = vmatprep.subr.mxu0 %v122
  %234 = vmatpush1.msra.mxu0 %v121
  %235 = vmatprep.subr.mxu0 %v124
  %236 = vmatpush1.msra.mxu0 %v123
  %237 = vmatprep.subr.mxu0 %v126
  %238 = vmatpush1.msra.mxu0 %v125
  %239 = vmatprep.subr.mxu0 %v128
  %240 = vmatpush1.msra.mxu0 %v127
  %241 = vmatprep.subr.mxu0 0.0
  %242 = vmatpush1.msra.mxu0 0.0
  %243 = vmatprep.subr.mxu0 0.0
  %244 = vmatpush1.msra.mxu0 0.0
  %245 = vmatprep.subr.mxu0 0.0
  %246 = vmatpush1.msra.mxu0 0.0
  %247 = vmatprep.subr.mxu0 0.0
  %248 = vmatpush1.msra.mxu0 0.0
  %249 = vmatprep.subr.mxu0 0.0
  %250 = vmatpush1.msra.mxu0 0.0
  %251 = vmatprep.subr.mxu0 0.0
  %252 = vmatpush1.msra.mxu0 0.0
  %253 = vmatprep.subr.mxu0 0.0
  %254 = vmatpush1.msra.mxu0 0.0
  %255 = vmatprep.subr.mxu0 0.0
  %256 = vmatpush1.msra.mxu0 0.0
  %257 = vmatprep.subr.mxu0 0.0
  %258 = vmatpush1.msra.mxu0 0.0
  %259 = vmatprep.subr.mxu0 0.0
  %260 = vmatpush1.msra.mxu0 0.0
  %261 = vmatprep.subr.mxu0 0.0
  %262 = vmatpush1.msra.mxu0 0.0
  %263 = vmatprep.subr.mxu0 0.0
  %264 = vmatpush1.msra.mxu0 0.0
  %265 = vmatprep.subr.mxu0 0.0
  %266 = vmatpush1.msra.mxu0 0.0
  %267 = vmatprep.subr.mxu0 0.0
  %268 = vmatpush1.msra.mxu0 0.0
  %269 = vmatprep.subr.mxu0 0.0
  %270 = vmatpush1.msra.mxu0 0.0
  %271 = vmatprep.subr.mxu0 0.0
  %272 = vmatpush1.msra.mxu0 0.0
  %273 = vmatprep.subr.mxu0 0.0
  %274 = vmatpush1.msra.mxu0 0.0
  %275 = vmatprep.subr.mxu0 0.0
  %276 = vmatpush1.msra.mxu0 0.0
  %277 = vmatprep.subr.mxu0 0.0
  %278 = vmatpush1.msra.mxu0 0.0
  %279 = vmatprep.subr.mxu0 0.0
  %280 = vmatpush1.msra.mxu0 0.0
  %281 = vmatprep.mubr.f32.mxu0 0.0
  %282 = vmatmul.mubr.f32.gmra.mrb[0].mxu0 %v131
  %v283 = vpop.f32.mrb[0].mxu0
  %v284 = vadd.f32 0.0, %v283
  %v285 = vpop.f32.mrb[0].mxu0
  %v286 = vadd.f32 0.0, %v285
  %287 = vmatprep.mubr.f32.mxu0 0.0
  %288 = vmatmul.mubr.f32.gmra.mrb[0].mxu0 %v134
  %v289 = vpop.f32.mrb[0].mxu0
  %v290 = vadd.f32 0.0, %v289
  %v291 = vpop.f32.mrb[0].mxu0
  %v292 = vadd.f32 0.0, %v291
  %293 = vmatprep.mubr.f32.mxu0 0.0
  %294 = vmatmul.mubr.f32.gmra.mrb[0].mxu0 %v137
  %v295 = vpop.f32.mrb[0].mxu0
  %v296 = vadd.f32 0.0, %v295
  %v297 = vpop.f32.mrb[0].mxu0
  %v298 = vadd.f32 0.0, %v297
  %299 = vmatprep.mubr.f32.mxu0 0.0
  %300 = vmatmul.mubr.f32.gmra.mrb[0].mxu0 %v140
  %v301 = vpop.f32.mrb[0].mxu0
  %v302 = vadd.f32 0.0, %v301
  %v303 = vpop.f32.mrb[0].mxu0
  %v304 = vadd.f32 0.0, %v303
  %305 = vmatprep.mubr.f32.mxu0 0.0
  %306 = vmatmul.mubr.f32.gmra.mrb[0].mxu0 %v143
  %v307 = vpop.f32.mrb[0].mxu0
  %v308 = vadd.f32 0.0, %v307
  %v309 = vpop.f32.mrb[0].mxu0
  %v310 = vadd.f32 0.0, %v309
  %311 = vmatprep.mubr.f32.mxu0 0.0
  %312 = vmatmul.mubr.f32.gmra.mrb[0].mxu0 %v146
  %v313 = vpop.f32.mrb[0].mxu0
  %v314 = vadd.f32 0.0, %v313
  %v315 = vpop.f32.mrb[0].mxu0
  %v316 = vadd.f32 0.0, %v315
  %317 = vmatprep.mubr.f32.mxu0 0.0
  %318 = vmatmul.mubr.f32.gmra.mrb[0].mxu0 %v149
  %v319 = vpop.f32.mrb[0].mxu0
  %v320 = vadd.f32 0.0, %v319
  %v321 = vpop.f32.mrb[0].mxu0
  %v322 = vadd.f32 0.0, %v321
  %323 = vmatprep.mubr.f32.mxu0 0.0
  %324 = vmatmul.mubr.f32.gmra.mrb[0].mxu0 %v152
  %v325 = vpop.f32.mrb[0].mxu0
  %v326 = vadd.f32 0.0, %v325
  %v327 = vpop.f32.mrb[0].mxu0
  %v328 = vadd.f32 0.0, %v327
  %329 = vmatprep.mubr.f32.mxu0 0.0
  %330 = vmatmul.mubr.f32.gmra.mrb[0].mxu0 %v155
  %v331 = vpop.f32.mrb[0].mxu0
  %v332 = vadd.f32 0.0, %v331
  %v333 = vpop.f32.mrb[0].mxu0
  %v334 = vadd.f32 0.0, %v333
  %335 = vmatprep.mubr.f32.mxu0 0.0
  %336 = vmatmul.mubr.f32.gmra.mrb[0].mxu0 %v158
  %v337 = vpop.f32.mrb[0].mxu0
  %v338 = vadd.f32 0.0, %v337
  %v339 = vpop.f32.mrb[0].mxu0
  %v340 = vadd.f32 0.0, %v339
  %341 = vmatprep.mubr.f32.mxu0 0.0
  %342 = vmatmul.mubr.f32.gmra.mrb[0].mxu0 %v161
  %v343 = vpop.f32.mrb[0].mxu0
  %v344 = vadd.f32 0.0, %v343
  %v345 = vpop.f32.mrb[0].mxu0
  %v346 = vadd.f32 0.0, %v345
  %347 = vmatprep.mubr.f32.mxu0 0.0
  %348 = vmatmul.mubr.f32.gmra.mrb[0].mxu0 %v164
  %v349 = vpop.f32.mrb[0].mxu0
  %v350 = vadd.f32 0.0, %v349
  %v351 = vpop.f32.mrb[0].mxu0
  %v352 = vadd.f32 0.0, %v351
  %353 = vmatprep.mubr.f32.mxu0 0.0
  %354 = vmatmul.mubr.f32.gmra.mrb[0].mxu0 %v167
  %v355 = vpop.f32.mrb[0].mxu0
  %v356 = vadd.f32 0.0, %v355
  %v357 = vpop.f32.mrb[0].mxu0
  %v358 = vadd.f32 0.0, %v357
  %359 = vmatprep.mubr.f32.mxu0 0.0
  %360 = vmatmul.mubr.f32.gmra.mrb[0].mxu0 %v170
  %v361 = vpop.f32.mrb[0].mxu0
  %v362 = vadd.f32 0.0, %v361
  %v363 = vpop.f32.mrb[0].mxu0
  %v364 = vadd.f32 0.0, %v363
  %365 = vmatprep.mubr.f32.mxu0 0.0
  %366 = vmatmul.mubr.f32.gmra.mrb[0].mxu0 %v173
  %v367 = vpop.f32.mrb[0].mxu0
  %v368 = vadd.f32 0.0, %v367
  %v369 = vpop.f32.mrb[0].mxu0
  %v370 = vadd.f32 0.0, %v369
  %371 = vmatprep.mubr.f32.mxu0 0.0
  %372 = vmatmul.mubr.f32.gmra.mrb[0].mxu0 %v176
  %v373 = vpop.f32.mrb[0].mxu0
  %v374 = vadd.f32 0.0, %v373
  %v375 = vpop.f32.mrb[0].mxu0
  %v376 = vadd.f32 0.0, %v375
  %377 = vmatprep.mubr.f32.mxu0 0.0
  %378 = vmatmul.mubr.f32.gmra.mrb[0].mxu0 %v179
  %v379 = vpop.f32.mrb[0].mxu0
  %v380 = vadd.f32 0.0, %v379
  %v381 = vpop.f32.mrb[0].mxu0
  %v382 = vadd.f32 0.0, %v381
  %383 = vmatprep.mubr.f32.mxu0 0.0
  %384 = vmatmul.mubr.f32.gmra.mrb[0].mxu0 %v182
  %v385 = vpop.f32.mrb[0].mxu0
  %v386 = vadd.f32 0.0, %v385
  %v387 = vpop.f32.mrb[0].mxu0
  %v388 = vadd.f32 0.0, %v387
  %389 = vmatprep.mubr.f32.mxu0 0.0
  %390 = vmatmul.mubr.f32.gmra.mrb[0].mxu0 %v185
  %v391 = vpop.f32.mrb[0].mxu0
  %v392 = vadd.f32 0.0, %v391
  %v393 = vpop.f32.mrb[0].mxu0
  %v394 = vadd.f32 0.0, %v393
  %395 = vmatprep.mubr.f32.mxu0 0.0
  %396 = vmatmul.mubr.f32.gmra.mrb[0].mxu0 %v188
  %v397 = vpop.f32.mrb[0].mxu0
  %v398 = vadd.f32 0.0, %v397
  %v399 = vpop.f32.mrb[0].mxu0
  %v400 = vadd.f32 0.0, %v399
  %401 = vmatprep.mubr.f32.mxu0 0.0
  %402 = vmatmul.mubr.f32.gmra.mrb[0].mxu0 %v191
  %v403 = vpop.f32.mrb[0].mxu0
  %v404 = vadd.f32 0.0, %v403
  %v405 = vpop.f32.mrb[0].mxu0
  %v406 = vadd.f32 0.0, %v405
  %407 = vmatprep.mubr.f32.mxu0 0.0
  %408 = vmatmul.mubr.f32.gmra.mrb[0].mxu0 %v194
  %v409 = vpop.f32.mrb[0].mxu0
  %v410 = vadd.f32 0.0, %v409
  %v411 = vpop.f32.mrb[0].mxu0
  %v412 = vadd.f32 0.0, %v411
  %413 = vmatprep.mubr.f32.mxu0 0.0
  %414 = vmatmul.mubr.f32.gmra.mrb[0].mxu0 %v197
  %v415 = vpop.f32.mrb[0].mxu0
  %v416 = vadd.f32 0.0, %v415
  %v417 = vpop.f32.mrb[0].mxu0
  %v418 = vadd.f32 0.0, %v417
  %419 = vmatprep.mubr.f32.mxu0 0.0
  %420 = vmatmul.mubr.f32.gmra.mrb[0].mxu0 %v200
  %v421 = vpop.f32.mrb[0].mxu0
  %v422 = vadd.f32 0.0, %v421
  %v423 = vpop.f32.mrb[0].mxu0
  %v424 = vadd.f32 0.0, %v423
  %425 = vmatprep.mubr.f32.mxu0 0.0
  %426 = vmatmul.mubr.f32.gmra.mrb[0].mxu0 %v203
  %v427 = vpop.f32.mrb[0].mxu0
  %v428 = vadd.f32 0.0, %v427
  %v429 = vpop.f32.mrb[0].mxu0
  %v430 = vadd.f32 0.0, %v429
  %431 = vmatprep.mubr.f32.mxu0 0.0
  %432 = vmatmul.mubr.f32.gmra.mrb[0].mxu0 %v206
  %v433 = vpop.f32.mrb[0].mxu0
  %v434 = vadd.f32 0.0, %v433
  %v435 = vpop.f32.mrb[0].mxu0
  %v436 = vadd.f32 0.0, %v435
  %437 = vmatprep.mubr.f32.mxu0 0.0
  %438 = vmatmul.mubr.f32.gmra.mrb[0].mxu0 %v209
  %v439 = vpop.f32.mrb[0].mxu0
  %v440 = vadd.f32 0.0, %v439
  %v441 = vpop.f32.mrb[0].mxu0
  %v442 = vadd.f32 0.0, %v441
  %443 = vmatprep.mubr.f32.mxu0 0.0
  %444 = vmatmul.mubr.f32.gmra.mrb[0].mxu0 %v212
  %v445 = vpop.f32.mrb[0].mxu0
  %v446 = vadd.f32 0.0, %v445
  %v447 = vpop.f32.mrb[0].mxu0
  %v448 = vadd.f32 0.0, %v447
  %449 = vmatprep.mubr.f32.mxu0 0.0
  %450 = vmatmul.mubr.f32.gmra.mrb[0].mxu0 %v215
  %v451 = vpop.f32.mrb[0].mxu0
  %v452 = vadd.f32 0.0, %v451
  %v453 = vpop.f32.mrb[0].mxu0
  %v454 = vadd.f32 0.0, %v453
  %455 = vdwg.mxu0
  %v456 = vld [vmem:[%s0 + $0x10] sm:$0xff]
  %v457 = vld [vmem:[%s0 + $0x18] sm:$0xff]
  %v458 = vld [vmem:[%s0 + $0x20] sm:$0xff]
  %v459 = vld [vmem:[%s0 + $0x28] sm:$0xff]
  %v460 = vld [vmem:[%s0 + $0x30] sm:$0xff]
  %v461 = vld [vmem:[%s0 + $0x38] sm:$0xff]
  %v462 = vld [vmem:[%s0 + $0x40] sm:$0xff]
  %v463 = vld [vmem:[%s0 + $0x48] sm:$0xff]
  %v464 = vld [vmem:[%s0 + $0x50] sm:$0xff]
  %v465 = vld [vmem:[%s0 + $0x58] sm:$0xff]
  %v466 = vld [vmem:[%s0 + $0x60] sm:$0xff]
  %v467 = vld [vmem:[%s0 + $0x68] sm:$0xff]
  %v468 = vld [vmem:[%s0 + $0x70] sm:$0xff]
  %v469 = vld [vmem:[%s0 + $0x78] sm:$0xff]
  %v470 = vld [vmem:[%s0 + $0x80] sm:$0xff]
  %v471 = vld [vmem:[%s0 + $0x88] sm:$0xff]
  %v472 = vld [vmem:[%s0 + $0x90] sm:$0xff]
  %v473 = vld [vmem:[%s0 + $0x98] sm:$0xff]
  %v474 = vld [vmem:[%s0 + $0xa0] sm:$0xff]
  %v475 = vld [vmem:[%s0 + $0xa8] sm:$0xff]
  %v476 = vld [vmem:[%s0 + $0xb0] sm:$0xff]
  %v477 = vld [vmem:[%s0 + $0xb8] sm:$0xff]
  %v478 = vld [vmem:[%s0 + $0xc0] sm:$0xff]
  %v479 = vld [vmem:[%s0 + $0xc8] sm:$0xff]
  %v480 = vld [vmem:[%s0 + $0xd0] sm:$0xff]
  %v481 = vld [vmem:[%s0 + $0xd8] sm:$0xff]
  %v482 = vld [vmem:[%s0 + $0xe0] sm:$0xff]
  %v483 = vld [vmem:[%s0 + $0xe8] sm:$0xff]
  %v484 = vld [vmem:[%s0 + $0xf0] sm:$0xff]
  %s485 = scalar_lea.vmem %s1, 384
  %v486 = vld [vmem:[%s485] sm:$0xff]
  %v487 = vld [vmem:[%s485 + $0x8] sm:$0xff]
  %v488 = vld [vmem:[%s485 + $0x10] sm:$0xff]
  %v489 = vld [vmem:[%s485 + $0x18] sm:$0xff]
  %v490 = vld [vmem:[%s485 + $0x20] sm:$0xff]
  %v491 = vld [vmem:[%s485 + $0x28] sm:$0xff]
  %v492 = vld [vmem:[%s485 + $0x30] sm:$0xff]
  %v493 = vld [vmem:[%s485 + $0x38] sm:$0xff]
  %v494 = vld [vmem:[%s485 + $0x40] sm:$0xff]
  %v495 = vld [vmem:[%s485 + $0x48] sm:$0xff]
  %v496 = vld [vmem:[%s485 + $0x50] sm:$0xff]
  %v497 = vld [vmem:[%s485 + $0x58] sm:$0xff]
  %v498 = vld [vmem:[%s485 + $0x60] sm:$0xff]
  %v499 = vld [vmem:[%s485 + $0x68] sm:$0xff]
  %v500 = vld [vmem:[%s485 + $0x70] sm:$0xff]
  %v501 = vld [vmem:[%s485 + $0x78] sm:$0xff]
  %v502 = vld [vmem:[%s485 + $0x80] sm:$0xff]
  %v503 = vld [vmem:[%s485 + $0x88] sm:$0xff]
  %v504 = vld [vmem:[%s485 + $0x90] sm:$0xff]
  %v505 = vld [vmem:[%s485 + $0x98] sm:$0xff]
  %v506 = vld [vmem:[%s485 + $0xa0] sm:$0xff]
  %v507 = vld [vmem:[%s485 + $0xa8] sm:$0xff]
  %v508 = vld [vmem:[%s485 + $0xb0] sm:$0xff]
  %v509 = vld [vmem:[%s485 + $0xb8] sm:$0xff]
  %v510 = vld [vmem:[%s0 + $0xf8] sm:$0xff]
  %s511 = scalar_lea.vmem %s1, 576
  %v512 = vld [vmem:[%s511] sm:$0xff]
  %v513 = vld [vmem:[%s511 + $0x8] sm:$0xff]
  %v514 = vld [vmem:[%s511 + $0x10] sm:$0xff]
  %v515 = vld [vmem:[%s511 + $0x18] sm:$0xff]
  %v516 = vld [vmem:[%s511 + $0x20] sm:$0xff]
  %v517 = vld [vmem:[%s511 + $0x28] sm:$0xff]
  %v518 = vld [vmem:[%s511 + $0x30] sm:$0xff]
  %v519 = vld [vmem:[%s511 + $0x38] sm:$0xff]
  %v520 = vld [vmem:[%s511 + $0x40] sm:$0xff]
  %v521 = vld [vmem:[%s511 + $0x48] sm:$0xff]
  %v522 = vld [vmem:[%s511 + $0x50] sm:$0xff]
  %v523 = vld [vmem:[%s511 + $0x58] sm:$0xff]
  %v524 = vld [vmem:[%s511 + $0x60] sm:$0xff]
  %v525 = vld [vmem:[%s511 + $0x68] sm:$0xff]
  %v526 = vld [vmem:[%s511 + $0x70] sm:$0xff]
  %v527 = vld [vmem:[%s511 + $0x78] sm:$0xff]
  %v528 = vld [vmem:[%s511 + $0x80] sm:$0xff]
  %v529 = vld [vmem:[%s511 + $0x88] sm:$0xff]
  %v530 = vld [vmem:[%s511 + $0x90] sm:$0xff]
  %v531 = vld [vmem:[%s511 + $0x98] sm:$0xff]
  %v532 = vld [vmem:[%s511 + $0xa0] sm:$0xff]
  %v533 = vld [vmem:[%s511 + $0xa8] sm:$0xff]
  %v534 = vld [vmem:[%s511 + $0xb0] sm:$0xff]
  %v535 = vld [vmem:[%s511 + $0xb8] sm:$0xff]
  %v537 = vsel %vm129, %v457, 0
  %v540 = vsel %vm129, %v458, 0
  %v543 = vsel %vm129, %v459, 0
  %v546 = vsel %vm129, %v460, 0
  %v549 = vsel %vm129, %v461, 0
  %v552 = vsel %vm129, %v462, 0
  %v555 = vsel %vm129, %v463, 0
  %v558 = vsel %vm129, %v464, 0
  %v561 = vsel %vm129, %v465, 0
  %v564 = vsel %vm129, %v466, 0
  %v567 = vsel %vm129, %v467, 0
  %v570 = vsel %vm129, %v468, 0
  %v573 = vsel %vm129, %v469, 0
  %v576 = vsel %vm129, %v470, 0
  %v579 = vsel %vm129, %v471, 0
  %v582 = vsel %vm129, %v472, 0
  %v585 = vsel %vm129, %v473, 0
  %v588 = vsel %vm129, %v474, 0
  %v591 = vsel %vm129, %v475, 0
  %v594 = vsel %vm129, %v476, 0
  %v597 = vsel %vm129, %v477, 0
  %v600 = vsel %vm129, %v478, 0
  %v603 = vsel %vm129, %v479, 0
  %v606 = vsel %vm129, %v480, 0
  %v609 = vsel %vm129, %v481, 0
  %v612 = vsel %vm129, %v482, 0
  %v615 = vsel %vm129, %v483, 0
  %v618 = vsel %vm129, %v484, 0
  %v621 = vsel %vm129, %v510, 0
  %623 = vmatprep.subr.mxu0 %v513
  %624 = vmatpush1.msra.mxu0 %v512
  %625 = vmatprep.subr.mxu0 %v515
  %626 = vmatpush1.msra.mxu0 %v514
  %627 = vmatprep.subr.mxu0 %v517
  %628 = vmatpush1.msra.mxu0 %v516
  %629 = vmatprep.subr.mxu0 %v519
  %630 = vmatpush1.msra.mxu0 %v518
  %631 = vmatprep.subr.mxu0 %v521
  %632 = vmatpush1.msra.mxu0 %v520
  %633 = vmatprep.subr.mxu0 %v523
  %634 = vmatpush1.msra.mxu0 %v522
  %635 = vmatprep.subr.mxu0 %v525
  %636 = vmatpush1.msra.mxu0 %v524
  %637 = vmatprep.subr.mxu0 %v527
  %638 = vmatpush1.msra.mxu0 %v526
  %639 = vmatprep.subr.mxu0 %v529
  %640 = vmatpush1.msra.mxu0 %v528
  %641 = vmatprep.subr.mxu0 %v531
  %642 = vmatpush1.msra.mxu0 %v530
  %643 = vmatprep.subr.mxu0 %v533
  %644 = vmatpush1.msra.mxu0 %v532
  %645 = vmatprep.subr.mxu0 %v535
  %646 = vmatpush1.msra.mxu0 %v534
  %647 = vmatprep.subr.mxu0 0.0
  %648 = vmatpush1.msra.mxu0 0.0
  %649 = vmatprep.subr.mxu0 0.0
  %650 = vmatpush1.msra.mxu0 0.0
  %651 = vmatprep.subr.mxu0 0.0
  %652 = vmatpush1.msra.mxu0 0.0
  %653 = vmatprep.subr.mxu0 0.0
  %654 = vmatpush1.msra.mxu0 0.0
  %655 = vmatprep.subr.mxu0 0.0
  %656 = vmatpush1.msra.mxu0 0.0
  %657 = vmatprep.subr.mxu0 0.0
  %658 = vmatpush1.msra.mxu0 0.0
  %659 = vmatprep.subr.mxu0 0.0
  %660 = vmatpush1.msra.mxu0 0.0
  %661 = vmatprep.subr.mxu0 0.0
  %662 = vmatpush1.msra.mxu0 0.0
  %663 = vmatprep.subr.mxu0 0.0
  %664 = vmatpush1.msra.mxu0 0.0
  %665 = vmatprep.subr.mxu0 0.0
  %666 = vmatpush1.msra.mxu0 0.0
  %667 = vmatprep.subr.mxu0 0.0
  %668 = vmatpush1.msra.mxu0 0.0
  %669 = vmatprep.subr.mxu0 0.0
  %670 = vmatpush1.msra.mxu0 0.0
  %671 = vmatprep.subr.mxu0 0.0
  %672 = vmatpush1.msra.mxu0 0.0
  %673 = vmatprep.subr.mxu0 0.0
  %674 = vmatpush1.msra.mxu0 0.0
  %675 = vmatprep.subr.mxu0 0.0
  %676 = vmatpush1.msra.mxu0 0.0
  %677 = vmatprep.subr.mxu0 0.0
  %678 = vmatpush1.msra.mxu0 0.0
  %679 = vmatprep.subr.mxu0 0.0
  %680 = vmatpush1.msra.mxu0 0.0
  %681 = vmatprep.subr.mxu0 0.0
  %682 = vmatpush1.msra.mxu0 0.0
  %683 = vmatprep.subr.mxu0 0.0
  %684 = vmatpush1.msra.mxu0 0.0
  %685 = vmatprep.subr.mxu0 0.0
  %686 = vmatpush1.msra.mxu0 0.0
  %687 = vmatprep.mubr.f32.mxu0 0.0
  %688 = vmatmul.mubr.f32.gmra.mrb[0].mxu0 %v537
  %v689 = vpop.f32.mrb[0].mxu0
  %v690 = vadd.f32 0.0, %v689
  %v691 = vpop.f32.mrb[0].mxu0
  %v692 = vadd.f32 0.0, %v691
  %693 = vmatprep.mubr.f32.mxu0 0.0
  %694 = vmatmul.mubr.f32.gmra.mrb[0].mxu0 %v540
  %v695 = vpop.f32.mrb[0].mxu0
  %v696 = vadd.f32 0.0, %v695
  %v697 = vpop.f32.mrb[0].mxu0
  %v698 = vadd.f32 0.0, %v697
  %699 = vmatprep.mubr.f32.mxu0 0.0
  %700 = vmatmul.mubr.f32.gmra.mrb[0].mxu0 %v543
  %v701 = vpop.f32.mrb[0].mxu0
  %v702 = vadd.f32 0.0, %v701
  %v703 = vpop.f32.mrb[0].mxu0
  %v704 = vadd.f32 0.0, %v703
  %705 = vmatprep.mubr.f32.mxu0 0.0
  %706 = vmatmul.mubr.f32.gmra.mrb[0].mxu0 %v546
  %v707 = vpop.f32.mrb[0].mxu0
  %v708 = vadd.f32 0.0, %v707
  %v709 = vpop.f32.mrb[0].mxu0
  %v710 = vadd.f32 0.0, %v709
  %711 = vmatprep.mubr.f32.mxu0 0.0
  %712 = vmatmul.mubr.f32.gmra.mrb[0].mxu0 %v549
  %v713 = vpop.f32.mrb[0].mxu0
  %v714 = vadd.f32 0.0, %v713
  %v715 = vpop.f32.mrb[0].mxu0
  %v716 = vadd.f32 0.0, %v715
  %717 = vmatprep.mubr.f32.mxu0 0.0
  %718 = vmatmul.mubr.f32.gmra.mrb[0].mxu0 %v552
  %v719 = vpop.f32.mrb[0].mxu0
  %v720 = vadd.f32 0.0, %v719
  %v721 = vpop.f32.mrb[0].mxu0
  %v722 = vadd.f32 0.0, %v721
  %723 = vmatprep.mubr.f32.mxu0 0.0
  %724 = vmatmul.mubr.f32.gmra.mrb[0].mxu0 %v555
  %v725 = vpop.f32.mrb[0].mxu0
  %v726 = vadd.f32 0.0, %v725
  %v727 = vpop.f32.mrb[0].mxu0
  %v728 = vadd.f32 0.0, %v727
  %729 = vmatprep.mubr.f32.mxu0 0.0
  %730 = vmatmul.mubr.f32.gmra.mrb[0].mxu0 %v558
  %v731 = vpop.f32.mrb[0].mxu0
  %v732 = vadd.f32 0.0, %v731
  %v733 = vpop.f32.mrb[0].mxu0
  %v734 = vadd.f32 0.0, %v733
  %735 = vmatprep.mubr.f32.mxu0 0.0
  %736 = vmatmul.mubr.f32.gmra.mrb[0].mxu0 %v561
  %v737 = vpop.f32.mrb[0].mxu0
  %v738 = vadd.f32 0.0, %v737
  %v739 = vpop.f32.mrb[0].mxu0
  %v740 = vadd.f32 0.0, %v739
  %741 = vmatprep.mubr.f32.mxu0 0.0
  %742 = vmatmul.mubr.f32.gmra.mrb[0].mxu0 %v564
  %v743 = vpop.f32.mrb[0].mxu0
  %v744 = vadd.f32 0.0, %v743
  %v745 = vpop.f32.mrb[0].mxu0
  %v746 = vadd.f32 0.0, %v745
  %747 = vmatprep.mubr.f32.mxu0 0.0
  %748 = vmatmul.mubr.f32.gmra.mrb[0].mxu0 %v567
  %v749 = vpop.f32.mrb[0].mxu0
  %v750 = vadd.f32 0.0, %v749
  %v751 = vpop.f32.mrb[0].mxu0
  %v752 = vadd.f32 0.0, %v751
  %753 = vmatprep.mubr.f32.mxu0 0.0
  %754 = vmatmul.mubr.f32.gmra.mrb[0].mxu0 %v570
  %v755 = vpop.f32.mrb[0].mxu0
  %v756 = vadd.f32 0.0, %v755
  %v757 = vpop.f32.mrb[0].mxu0
  %v758 = vadd.f32 0.0, %v757
  %759 = vmatprep.mubr.f32.mxu0 0.0
  %760 = vmatmul.mubr.f32.gmra.mrb[0].mxu0 %v573
  %v761 = vpop.f32.mrb[0].mxu0
  %v762 = vadd.f32 0.0, %v761
  %v763 = vpop.f32.mrb[0].mxu0
  %v764 = vadd.f32 0.0, %v763
  %765 = vmatprep.mubr.f32.mxu0 0.0
  %766 = vmatmul.mubr.f32.gmra.mrb[0].mxu0 %v576
  %v767 = vpop.f32.mrb[0].mxu0
  %v768 = vadd.f32 0.0, %v767
  %v769 = vpop.f32.mrb[0].mxu0
  %v770 = vadd.f32 0.0, %v769
  %771 = vmatprep.mubr.f32.mxu0 0.0
  %772 = vmatmul.mubr.f32.gmra.mrb[0].mxu0 %v579
  %v773 = vpop.f32.mrb[0].mxu0
  %v774 = vadd.f32 0.0, %v773
  %v775 = vpop.f32.mrb[0].mxu0
  %v776 = vadd.f32 0.0, %v775
  %777 = vmatprep.mubr.f32.mxu0 0.0
  %778 = vmatmul.mubr.f32.gmra.mrb[0].mxu0 %v582
  %v779 = vpop.f32.mrb[0].mxu0
  %v780 = vadd.f32 0.0, %v779
  %v781 = vpop.f32.mrb[0].mxu0
  %v782 = vadd.f32 0.0, %v781
  %783 = vmatprep.mubr.f32.mxu0 0.0
  %784 = vmatmul.mubr.f32.gmra.mrb[0].mxu0 %v585
  %v785 = vpop.f32.mrb[0].mxu0
  %v786 = vadd.f32 0.0, %v785
  %v787 = vpop.f32.mrb[0].mxu0
  %v788 = vadd.f32 0.0, %v787
  %789 = vmatprep.mubr.f32.mxu0 0.0
  %790 = vmatmul.mubr.f32.gmra.mrb[0].mxu0 %v588
  %v791 = vpop.f32.mrb[0].mxu0
  %v792 = vadd.f32 0.0, %v791
  %v793 = vpop.f32.mrb[0].mxu0
  %v794 = vadd.f32 0.0, %v793
  %795 = vmatprep.mubr.f32.mxu0 0.0
  %796 = vmatmul.mubr.f32.gmra.mrb[0].mxu0 %v591
  %v797 = vpop.f32.mrb[0].mxu0
  %v798 = vadd.f32 0.0, %v797
  %v799 = vpop.f32.mrb[0].mxu0
  %v800 = vadd.f32 0.0, %v799
  %801 = vmatprep.mubr.f32.mxu0 0.0
  %802 = vmatmul.mubr.f32.gmra.mrb[0].mxu0 %v594
  %v803 = vpop.f32.mrb[0].mxu0
  %v804 = vadd.f32 0.0, %v803
  %v805 = vpop.f32.mrb[0].mxu0
  %v806 = vadd.f32 0.0, %v805
  %807 = vmatprep.mubr.f32.mxu0 0.0
  %808 = vmatmul.mubr.f32.gmra.mrb[0].mxu0 %v597
  %v809 = vpop.f32.mrb[0].mxu0
  %v810 = vadd.f32 0.0, %v809
  %v811 = vpop.f32.mrb[0].mxu0
  %v812 = vadd.f32 0.0, %v811
  %813 = vmatprep.mubr.f32.mxu0 0.0
  %814 = vmatmul.mubr.f32.gmra.mrb[0].mxu0 %v600
  %v815 = vpop.f32.mrb[0].mxu0
  %v816 = vadd.f32 0.0, %v815
  %v817 = vpop.f32.mrb[0].mxu0
  %v818 = vadd.f32 0.0, %v817
  %819 = vmatprep.mubr.f32.mxu0 0.0
  %820 = vmatmul.mubr.f32.gmra.mrb[0].mxu0 %v603
  %v821 = vpop.f32.mrb[0].mxu0
  %v822 = vadd.f32 0.0, %v821
  %v823 = vpop.f32.mrb[0].mxu0
  %v824 = vadd.f32 0.0, %v823
  %825 = vmatprep.mubr.f32.mxu0 0.0
  %826 = vmatmul.mubr.f32.gmra.mrb[0].mxu0 %v606
  %v827 = vpop.f32.mrb[0].mxu0
  %v828 = vadd.f32 0.0, %v827
  %v829 = vpop.f32.mrb[0].mxu0
  %v830 = vadd.f32 0.0, %v829
  %831 = vmatprep.mubr.f32.mxu0 0.0
  %832 = vmatmul.mubr.f32.gmra.mrb[0].mxu0 %v609
  %v833 = vpop.f32.mrb[0].mxu0
  %v834 = vadd.f32 0.0, %v833
  %v835 = vpop.f32.mrb[0].mxu0
  %v836 = vadd.f32 0.0, %v835
  %837 = vmatprep.mubr.f32.mxu0 0.0
  %838 = vmatmul.mubr.f32.gmra.mrb[0].mxu0 %v612
  %v839 = vpop.f32.mrb[0].mxu0
  %v840 = vadd.f32 0.0, %v839
  %v841 = vpop.f32.mrb[0].mxu0
  %v842 = vadd.f32 0.0, %v841
  %843 = vmatprep.mubr.f32.mxu0 0.0
  %844 = vmatmul.mubr.f32.gmra.mrb[0].mxu0 %v615
  %v845 = vpop.f32.mrb[0].mxu0
  %v846 = vadd.f32 0.0, %v845
  %v847 = vpop.f32.mrb[0].mxu0
  %v848 = vadd.f32 0.0, %v847
  %849 = vmatprep.mubr.f32.mxu0 0.0
  %850 = vmatmul.mubr.f32.gmra.mrb[0].mxu0 %v618
  %v851 = vpop.f32.mrb[0].mxu0
  %v852 = vadd.f32 0.0, %v851
  %v853 = vpop.f32.mrb[0].mxu0
  %v854 = vadd.f32 0.0, %v853
  %855 = vmatprep.mubr.f32.mxu0 0.0
  %856 = vmatmul.mubr.f32.gmra.mrb[0].mxu0 %v621
  %v857 = vpop.f32.mrb[0].mxu0
  %v858 = vadd.f32 0.0, %v857
  %v859 = vpop.f32.mrb[0].mxu0
  %v860 = vadd.f32 0.0, %v859
  %861 = vdwg.mxu0
  %v862 = vld [vmem:[%s0 + $0x20] sm:$0xff]
  %v863 = vld [vmem:[%s0 + $0x28] sm:$0xff]
  %v864 = vld [vmem:[%s0 + $0x30] sm:$0xff]
  %v865 = vld [vmem:[%s0 + $0x38] sm:$0xff]
  %v866 = vld [vmem:[%s0 + $0x40] sm:$0xff]
  %v867 = vld [vmem:[%s0 + $0x48] sm:$0xff]
  %v868 = vld [vmem:[%s0 + $0x50] sm:$0xff]
  %v869 = vld [vmem:[%s0 + $0x58] sm:$0xff]
  %v870 = vld [vmem:[%s0 + $0x60] sm:$0xff]
  %v871 = vld [vmem:[%s0 + $0x68] sm:$0xff]
  %v872 = vld [vmem:[%s0 + $0x70] sm:$0xff]
  %v873 = vld [vmem:[%s0 + $0x78] sm:$0xff]
  %v874 = vld [vmem:[%s0 + $0x80] sm:$0xff]
  %v875 = vld [vmem:[%s0 + $0x88] sm:$0xff]
  %v876 = vld [vmem:[%s0 + $0x90] sm:$0xff]
  %v877 = vld [vmem:[%s0 + $0x98] sm:$0xff]
  %v878 = vld [vmem:[%s0 + $0xa0] sm:$0xff]
  %v879 = vld [vmem:[%s0 + $0xa8] sm:$0xff]
  %v880 = vld [vmem:[%s0 + $0xb0] sm:$0xff]
  %v881 = vld [vmem:[%s0 + $0xb8] sm:$0xff]
  %v882 = vld [vmem:[%s0 + $0xc0] sm:$0xff]
  %v883 = vld [vmem:[%s0 + $0xc8] sm:$0xff]
  %v884 = vld [vmem:[%s0 + $0xd0] sm:$0xff]
  %v885 = vld [vmem:[%s0 + $0xd8] sm:$0xff]
  %v886 = vld [vmem:[%s0 + $0xe0] sm:$0xff]
  %v887 = vld [vmem:[%s0 + $0xe8] sm:$0xff]
  %v888 = vld [vmem:[%s0 + $0xf0] sm:$0xff]
  %v889 = vld [vmem:[%s0 + $0xf8] sm:$0xff]
  %v890 = vld [vmem:[%s0 + $0x100] sm:$0xff]
  %s891 = scalar_lea.vmem %s1, 768
  %v892 = vld [vmem:[%s891] sm:$0xff]
  %v893 = vld [vmem:[%s891 + $0x8] sm:$0xff]
  %v894 = vld [vmem:[%s891 + $0x10] sm:$0xff]
  %v895 = vld [vmem:[%s891 + $0x18] sm:$0xff]
  %v896 = vld [vmem:[%s891 + $0x20] sm:$0xff]
  %v897 = vld [vmem:[%s891 + $0x28] sm:$0xff]
  %v898 = vld [vmem:[%s891 + $0x30] sm:$0xff]
  %v899 = vld [vmem:[%s891 + $0x38] sm:$0xff]
  %v900 = vld [vmem:[%s891 + $0x40] sm:$0xff]
  %v901 = vld [vmem:[%s891 + $0x48] sm:$0xff]
  %v902 = vld [vmem:[%s891 + $0x50] sm:$0xff]
  %v903 = vld [vmem:[%s891 + $0x58] sm:$0xff]
  %v904 = vld [vmem:[%s891 + $0x60] sm:$0xff]
  %v905 = vld [vmem:[%s891 + $0x68] sm:$0xff]
  %v906 = vld [vmem:[%s891 + $0x70] sm:$0xff]
  %v907 = vld [vmem:[%s891 + $0x78] sm:$0xff]
  %v908 = vld [vmem:[%s891 + $0x80] sm:$0xff]
  %v909 = vld [vmem:[%s891 + $0x88] sm:$0xff]
  %v910 = vld [vmem:[%s891 + $0x90] sm:$0xff]
  %v911 = vld [vmem:[%s891 + $0x98] sm:$0xff]
  %v912 = vld [vmem:[%s891 + $0xa0] sm:$0xff]
  %v913 = vld [vmem:[%s891 + $0xa8] sm:$0xff]
  %v914 = vld [vmem:[%s891 + $0xb0] sm:$0xff]
  %v915 = vld [vmem:[%s891 + $0xb8] sm:$0xff]
  %v917 = vsel %vm129, %v50, 0
  %919 = vmatprep.subr.mxu0 %v80
  %920 = vmatpush1.msra.mxu0 %v79
  %921 = vmatprep.subr.mxu0 %v82
  %922 = vmatpush1.msra.mxu0 %v81
  %923 = vmatprep.subr.mxu0 %v84
  %924 = vmatpush1.msra.mxu0 %v83
  %925 = vmatprep.subr.mxu0 %v86
  %926 = vmatpush1.msra.mxu0 %v85
  %927 = vmatprep.subr.mxu0 %v88
  %928 = vmatpush1.msra.mxu0 %v87
  %929 = vmatprep.subr.mxu0 %v90
  %930 = vmatpush1.msra.mxu0 %v89
  %931 = vmatprep.subr.mxu0 %v92
  %932 = vmatpush1.msra.mxu0 %v91
  %933 = vmatprep.subr.mxu0 %v94
  %934 = vmatpush1.msra.mxu0 %v93
  %935 = vmatprep.subr.mxu0 %v96
  %936 = vmatpush1.msra.mxu0 %v95
  %937 = vmatprep.subr.mxu0 %v98
  %938 = vmatpush1.msra.mxu0 %v97
  %939 = vmatprep.subr.mxu0 %v100
  %940 = vmatpush1.msra.mxu0 %v99
  %941 = vmatprep.subr.mxu0 %v102
  %942 = vmatpush1.msra.mxu0 %v101
  %943 = vmatprep.subr.mxu0 0.0
  %944 = vmatpush1.msra.mxu0 0.0
  %945 = vmatprep.subr.mxu0 0.0
  %946 = vmatpush1.msra.mxu0 0.0
  %947 = vmatprep.subr.mxu0 0.0
  %948 = vmatpush1.msra.mxu0 0.0
  %949 = vmatprep.subr.mxu0 0.0
  %950 = vmatpush1.msra.mxu0 0.0
  %951 = vmatprep.subr.mxu0 0.0
  %952 = vmatpush1.msra.mxu0 0.0
  %953 = vmatprep.subr.mxu0 0.0
  %954 = vmatpush1.msra.mxu0 0.0
  %955 = vmatprep.subr.mxu0 0.0
  %956 = vmatpush1.msra.mxu0 0.0
  %957 = vmatprep.subr.mxu0 0.0
  %958 = vmatpush1.msra.mxu0 0.0
  %959 = vmatprep.subr.mxu0 0.0
  %960 = vmatpush1.msra.mxu0 0.0
  %961 = vmatprep.subr.mxu0 0.0
  %962 = vmatpush1.msra.mxu0 0.0
  %963 = vmatprep.subr.mxu0 0.0
  %964 = vmatpush1.msra.mxu0 0.0
  %965 = vmatprep.subr.mxu0 0.0
  %966 = vmatpush1.msra.mxu0 0.0
  %967 = vmatprep.subr.mxu0 0.0
  %968 = vmatpush1.msra.mxu0 0.0
  %969 = vmatprep.subr.mxu0 0.0
  %970 = vmatpush1.msra.mxu0 0.0
  %971 = vmatprep.subr.mxu0 0.0
  %972 = vmatpush1.msra.mxu0 0.0
  %973 = vmatprep.subr.mxu0 0.0
  %974 = vmatpush1.msra.mxu0 0.0
  %975 = vmatprep.subr.mxu0 0.0
  %976 = vmatpush1.msra.mxu0 0.0
  %977 = vmatprep.subr.mxu0 0.0
  %978 = vmatpush1.msra.mxu0 0.0
  %979 = vmatprep.subr.mxu0 0.0
  %980 = vmatpush1.msra.mxu0 0.0
  %981 = vmatprep.subr.mxu0 0.0
  %982 = vmatpush1.msra.mxu0 0.0
  %983 = vmatprep.mubr.f32.mxu0 0.0
  %984 = vmatmul.mubr.f32.gmra.mrb[0].mxu0 %v917
  %v985 = vpop.f32.mrb[0].mxu0
  %v986 = vadd.f32 %v284, %v985
  %v987 = vpop.f32.mrb[0].mxu0
  %v988 = vadd.f32 %v286, %v987
  %989 = vmatprep.mubr.f32.mxu0 0.0
  %990 = vmatmul.mubr.f32.gmra.mrb[0].mxu0 %v131
  %v991 = vpop.f32.mrb[0].mxu0
  %v992 = vadd.f32 %v290, %v991
  %v993 = vpop.f32.mrb[0].mxu0
  %v994 = vadd.f32 %v292, %v993
  %995 = vmatprep.mubr.f32.mxu0 0.0
  %996 = vmatmul.mubr.f32.gmra.mrb[0].mxu0 %v134
  %v997 = vpop.f32.mrb[0].mxu0
  %v998 = vadd.f32 %v296, %v997
  %v999 = vpop.f32.mrb[0].mxu0
  %v1000 = vadd.f32 %v298, %v999
  %1001 = vmatprep.mubr.f32.mxu0 0.0
  %1002 = vmatmul.mubr.f32.gmra.mrb[0].mxu0 %v137
  %v1003 = vpop.f32.mrb[0].mxu0
  %v1004 = vadd.f32 %v302, %v1003
  %v1005 = vpop.f32.mrb[0].mxu0
  %v1006 = vadd.f32 %v304, %v1005
  %1007 = vmatprep.mubr.f32.mxu0 0.0
  %1008 = vmatmul.mubr.f32.gmra.mrb[0].mxu0 %v140
  %v1009 = vpop.f32.mrb[0].mxu0
  %v1010 = vadd.f32 %v308, %v1009
  %v1011 = vpop.f32.mrb[0].mxu0
  %v1012 = vadd.f32 %v310, %v1011
  %1013 = vmatprep.mubr.f32.mxu0 0.0
  %1014 = vmatmul.mubr.f32.gmra.mrb[0].mxu0 %v143
  %v1015 = vpop.f32.mrb[0].mxu0
  %v1016 = vadd.f32 %v314, %v1015
  %v1017 = vpop.f32.mrb[0].mxu0
  %v1018 = vadd.f32 %v316, %v1017
  %1019 = vmatprep.mubr.f32.mxu0 0.0
  %1020 = vmatmul.mubr.f32.gmra.mrb[0].mxu0 %v146
  %v1021 = vpop.f32.mrb[0].mxu0
  %v1022 = vadd.f32 %v320, %v1021
  %v1023 = vpop.f32.mrb[0].mxu0
  %v1024 = vadd.f32 %v322, %v1023
  %1025 = vmatprep.mubr.f32.mxu0 0.0
  %1026 = vmatmul.mubr.f32.gmra.mrb[0].mxu0 %v149
  %v1027 = vpop.f32.mrb[0].mxu0
  %v1028 = vadd.f32 %v326, %v1027
  %v1029 = vpop.f32.mrb[0].mxu0
  %v1030 = vadd.f32 %v328, %v1029
  %1031 = vmatprep.mubr.f32.mxu0 0.0
  %1032 = vmatmul.mubr.f32.gmra.mrb[0].mxu0 %v152
  %v1033 = vpop.f32.mrb[0].mxu0
  %v1034 = vadd.f32 %v332, %v1033
  %v1035 = vpop.f32.mrb[0].mxu0
  %v1036 = vadd.f32 %v334, %v1035
  %1037 = vmatprep.mubr.f32.mxu0 0.0
  %1038 = vmatmul.mubr.f32.gmra.mrb[0].mxu0 %v155
  %v1039 = vpop.f32.mrb[0].mxu0
  %v1040 = vadd.f32 %v338, %v1039
  %v1041 = vpop.f32.mrb[0].mxu0
  %v1042 = vadd.f32 %v340, %v1041
  %1043 = vmatprep.mubr.f32.mxu0 0.0
  %1044 = vmatmul.mubr.f32.gmra.mrb[0].mxu0 %v158
  %v1045 = vpop.f32.mrb[0].mxu0
  %v1046 = vadd.f32 %v344, %v1045
  %v1047 = vpop.f32.mrb[0].mxu0
  %v1048 = vadd.f32 %v346, %v1047
  %1049 = vmatprep.mubr.f32.mxu0 0.0
  %1050 = vmatmul.mubr.f32.gmra.mrb[0].mxu0 %v161
  %v1051 = vpop.f32.mrb[0].mxu0
  %v1052 = vadd.f32 %v350, %v1051
  %v1053 = vpop.f32.mrb[0].mxu0
  %v1054 = vadd.f32 %v352, %v1053
  %1055 = vmatprep.mubr.f32.mxu0 0.0
  %1056 = vmatmul.mubr.f32.gmra.mrb[0].mxu0 %v164
  %v1057 = vpop.f32.mrb[0].mxu0
  %v1058 = vadd.f32 %v356, %v1057
  %v1059 = vpop.f32.mrb[0].mxu0
  %v1060 = vadd.f32 %v358, %v1059
  %1061 = vmatprep.mubr.f32.mxu0 0.0
  %1062 = vmatmul.mubr.f32.gmra.mrb[0].mxu0 %v167
  %v1063 = vpop.f32.mrb[0].mxu0
  %v1064 = vadd.f32 %v362, %v1063
  %v1065 = vpop.f32.mrb[0].mxu0
  %v1066 = vadd.f32 %v364, %v1065
  %1067 = vmatprep.mubr.f32.mxu0 0.0
  %1068 = vmatmul.mubr.f32.gmra.mrb[0].mxu0 %v170
  %v1069 = vpop.f32.mrb[0].mxu0
  %v1070 = vadd.f32 %v368, %v1069
  %v1071 = vpop.f32.mrb[0].mxu0
  %v1072 = vadd.f32 %v370, %v1071
  %1073 = vmatprep.mubr.f32.mxu0 0.0
  %1074 = vmatmul.mubr.f32.gmra.mrb[0].mxu0 %v173
  %v1075 = vpop.f32.mrb[0].mxu0
  %v1076 = vadd.f32 %v374, %v1075
  %v1077 = vpop.f32.mrb[0].mxu0
  %v1078 = vadd.f32 %v376, %v1077
  %1079 = vmatprep.mubr.f32.mxu0 0.0
  %1080 = vmatmul.mubr.f32.gmra.mrb[0].mxu0 %v176
  %v1081 = vpop.f32.mrb[0].mxu0
  %v1082 = vadd.f32 %v380, %v1081
  %v1083 = vpop.f32.mrb[0].mxu0
  %v1084 = vadd.f32 %v382, %v1083
  %1085 = vmatprep.mubr.f32.mxu0 0.0
  %1086 = vmatmul.mubr.f32.gmra.mrb[0].mxu0 %v179
  %v1087 = vpop.f32.mrb[0].mxu0
  %v1088 = vadd.f32 %v386, %v1087
  %v1089 = vpop.f32.mrb[0].mxu0
  %v1090 = vadd.f32 %v388, %v1089
  %1091 = vmatprep.mubr.f32.mxu0 0.0
  %1092 = vmatmul.mubr.f32.gmra.mrb[0].mxu0 %v182
  %v1093 = vpop.f32.mrb[0].mxu0
  %v1094 = vadd.f32 %v392, %v1093
  %v1095 = vpop.f32.mrb[0].mxu0
  %v1096 = vadd.f32 %v394, %v1095
  %1097 = vmatprep.mubr.f32.mxu0 0.0
  %1098 = vmatmul.mubr.f32.gmra.mrb[0].mxu0 %v185
  %v1099 = vpop.f32.mrb[0].mxu0
  %v1100 = vadd.f32 %v398, %v1099
  %v1101 = vpop.f32.mrb[0].mxu0
  %v1102 = vadd.f32 %v400, %v1101
  %1103 = vmatprep.mubr.f32.mxu0 0.0
  %1104 = vmatmul.mubr.f32.gmra.mrb[0].mxu0 %v188
  %v1105 = vpop.f32.mrb[0].mxu0
  %v1106 = vadd.f32 %v404, %v1105
  %v1107 = vpop.f32.mrb[0].mxu0
  %v1108 = vadd.f32 %v406, %v1107
  %1109 = vmatprep.mubr.f32.mxu0 0.0
  %1110 = vmatmul.mubr.f32.gmra.mrb[0].mxu0 %v191
  %v1111 = vpop.f32.mrb[0].mxu0
  %v1112 = vadd.f32 %v410, %v1111
  %v1113 = vpop.f32.mrb[0].mxu0
  %v1114 = vadd.f32 %v412, %v1113
  %1115 = vmatprep.mubr.f32.mxu0 0.0
  %1116 = vmatmul.mubr.f32.gmra.mrb[0].mxu0 %v194
  %v1117 = vpop.f32.mrb[0].mxu0
  %v1118 = vadd.f32 %v416, %v1117
  %v1119 = vpop.f32.mrb[0].mxu0
  %v1120 = vadd.f32 %v418, %v1119
  %1121 = vmatprep.mubr.f32.mxu0 0.0
  %1122 = vmatmul.mubr.f32.gmra.mrb[0].mxu0 %v197
  %v1123 = vpop.f32.mrb[0].mxu0
  %v1124 = vadd.f32 %v422, %v1123
  %v1125 = vpop.f32.mrb[0].mxu0
  %v1126 = vadd.f32 %v424, %v1125
  %1127 = vmatprep.mubr.f32.mxu0 0.0
  %1128 = vmatmul.mubr.f32.gmra.mrb[0].mxu0 %v200
  %v1129 = vpop.f32.mrb[0].mxu0
  %v1130 = vadd.f32 %v428, %v1129
  %v1131 = vpop.f32.mrb[0].mxu0
  %v1132 = vadd.f32 %v430, %v1131
  %1133 = vmatprep.mubr.f32.mxu0 0.0
  %1134 = vmatmul.mubr.f32.gmra.mrb[0].mxu0 %v203
  %v1135 = vpop.f32.mrb[0].mxu0
  %v1136 = vadd.f32 %v434, %v1135
  %v1137 = vpop.f32.mrb[0].mxu0
  %v1138 = vadd.f32 %v436, %v1137
  %1139 = vmatprep.mubr.f32.mxu0 0.0
  %1140 = vmatmul.mubr.f32.gmra.mrb[0].mxu0 %v206
  %v1141 = vpop.f32.mrb[0].mxu0
  %v1142 = vadd.f32 %v440, %v1141
  %v1143 = vpop.f32.mrb[0].mxu0
  %v1144 = vadd.f32 %v442, %v1143
  %1145 = vmatprep.mubr.f32.mxu0 0.0
  %1146 = vmatmul.mubr.f32.gmra.mrb[0].mxu0 %v209
  %v1147 = vpop.f32.mrb[0].mxu0
  %v1148 = vadd.f32 %v446, %v1147
  %v1149 = vpop.f32.mrb[0].mxu0
  %v1150 = vadd.f32 %v448, %v1149
  %1151 = vmatprep.mubr.f32.mxu0 0.0
  %1152 = vmatmul.mubr.f32.gmra.mrb[0].mxu0 %v212
  %v1153 = vpop.f32.mrb[0].mxu0
  %v1154 = vadd.f32 %v452, %v1153
  %v1155 = vpop.f32.mrb[0].mxu0
  %v1156 = vadd.f32 %v454, %v1155
  %1157 = vdwg.mxu0
  %v1159 = vsel %vm129, %v456, 0
  %1161 = vmatprep.subr.mxu0 %v487
  %1162 = vmatpush1.msra.mxu0 %v486
  %1163 = vmatprep.subr.mxu0 %v489
  %1164 = vmatpush1.msra.mxu0 %v488
  %1165 = vmatprep.subr.mxu0 %v491
  %1166 = vmatpush1.msra.mxu0 %v490
  %1167 = vmatprep.subr.mxu0 %v493
  %1168 = vmatpush1.msra.mxu0 %v492
  %1169 = vmatprep.subr.mxu0 %v495
  %1170 = vmatpush1.msra.mxu0 %v494
  %1171 = vmatprep.subr.mxu0 %v497
  %1172 = vmatpush1.msra.mxu0 %v496
  %1173 = vmatprep.subr.mxu0 %v499
  %1174 = vmatpush1.msra.mxu0 %v498
  %1175 = vmatprep.subr.mxu0 %v501
  %1176 = vmatpush1.msra.mxu0 %v500
  %1177 = vmatprep.subr.mxu0 %v503
  %1178 = vmatpush1.msra.mxu0 %v502
  %1179 = vmatprep.subr.mxu0 %v505
  %1180 = vmatpush1.msra.mxu0 %v504
  %1181 = vmatprep.subr.mxu0 %v507
  %1182 = vmatpush1.msra.mxu0 %v506
  %1183 = vmatprep.subr.mxu0 %v509
  %1184 = vmatpush1.msra.mxu0 %v508
  %1185 = vmatprep.subr.mxu0 0.0
  %1186 = vmatpush1.msra.mxu0 0.0
  %1187 = vmatprep.subr.mxu0 0.0
  %1188 = vmatpush1.msra.mxu0 0.0
  %1189 = vmatprep.subr.mxu0 0.0
  %1190 = vmatpush1.msra.mxu0 0.0
  %1191 = vmatprep.subr.mxu0 0.0
  %1192 = vmatpush1.msra.mxu0 0.0
  %1193 = vmatprep.subr.mxu0 0.0
  %1194 = vmatpush1.msra.mxu0 0.0
  %1195 = vmatprep.subr.mxu0 0.0
  %1196 = vmatpush1.msra.mxu0 0.0
  %1197 = vmatprep.subr.mxu0 0.0
  %1198 = vmatpush1.msra.mxu0 0.0
  %1199 = vmatprep.subr.mxu0 0.0
  %1200 = vmatpush1.msra.mxu0 0.0
  %1201 = vmatprep.subr.mxu0 0.0
  %1202 = vmatpush1.msra.mxu0 0.0
  %1203 = vmatprep.subr.mxu0 0.0
  %1204 = vmatpush1.msra.mxu0 0.0
  %1205 = vmatprep.subr.mxu0 0.0
  %1206 = vmatpush1.msra.mxu0 0.0
  %1207 = vmatprep.subr.mxu0 0.0
  %1208 = vmatpush1.msra.mxu0 0.0
  %1209 = vmatprep.subr.mxu0 0.0
  %1210 = vmatpush1.msra.mxu0 0.0
  %1211 = vmatprep.subr.mxu0 0.0
  %1212 = vmatpush1.msra.mxu0 0.0
  %1213 = vmatprep.subr.mxu0 0.0
  %1214 = vmatpush1.msra.mxu0 0.0
  %1215 = vmatprep.subr.mxu0 0.0
  %1216 = vmatpush1.msra.mxu0 0.0
  %1217 = vmatprep.subr.mxu0 0.0
  %1218 = vmatpush1.msra.mxu0 0.0
  %1219 = vmatprep.subr.mxu0 0.0
  %1220 = vmatpush1.msra.mxu0 0.0
  %1221 = vmatprep.subr.mxu0 0.0
  %1222 = vmatpush1.msra.mxu0 0.0
  %1223 = vmatprep.subr.mxu0 0.0
  %1224 = vmatpush1.msra.mxu0 0.0
  %1225 = vmatprep.mubr.f32.mxu0 0.0
  %1226 = vmatmul.mubr.f32.gmra.mrb[0].mxu0 %v1159
  %v1227 = vpop.f32.mrb[0].mxu0
  %v1228 = vadd.f32 %v690, %v1227
  %v1229 = vpop.f32.mrb[0].mxu0
  %v1230 = vadd.f32 %v692, %v1229
  %1231 = vmatprep.mubr.f32.mxu0 0.0
  %1232 = vmatmul.mubr.f32.gmra.mrb[0].mxu0 %v537
  %v1233 = vpop.f32.mrb[0].mxu0
  %v1234 = vadd.f32 %v696, %v1233
  %v1235 = vpop.f32.mrb[0].mxu0
  %v1236 = vadd.f32 %v698, %v1235
  %1237 = vmatprep.mubr.f32.mxu0 0.0
  %1238 = vmatmul.mubr.f32.gmra.mrb[0].mxu0 %v540
  %v1239 = vpop.f32.mrb[0].mxu0
  %v1240 = vadd.f32 %v702, %v1239
  %v1241 = vpop.f32.mrb[0].mxu0
  %v1242 = vadd.f32 %v704, %v1241
  %1243 = vmatprep.mubr.f32.mxu0 0.0
  %1244 = vmatmul.mubr.f32.gmra.mrb[0].mxu0 %v543
  %v1245 = vpop.f32.mrb[0].mxu0
  %v1246 = vadd.f32 %v708, %v1245
  %v1247 = vpop.f32.mrb[0].mxu0
  %v1248 = vadd.f32 %v710, %v1247
  %1249 = vmatprep.mubr.f32.mxu0 0.0
  %1250 = vmatmul.mubr.f32.gmra.mrb[0].mxu0 %v546
  %v1251 = vpop.f32.mrb[0].mxu0
  %v1252 = vadd.f32 %v714, %v1251
  %v1253 = vpop.f32.mrb[0].mxu0
  %v1254 = vadd.f32 %v716, %v1253
  %1255 = vmatprep.mubr.f32.mxu0 0.0
  %1256 = vmatmul.mubr.f32.gmra.mrb[0].mxu0 %v549
  %v1257 = vpop.f32.mrb[0].mxu0
  %v1258 = vadd.f32 %v720, %v1257
  %v1259 = vpop.f32.mrb[0].mxu0
  %v1260 = vadd.f32 %v722, %v1259
  %1261 = vmatprep.mubr.f32.mxu0 0.0
  %1262 = vmatmul.mubr.f32.gmra.mrb[0].mxu0 %v552
  %v1263 = vpop.f32.mrb[0].mxu0
  %v1264 = vadd.f32 %v726, %v1263
  %v1265 = vpop.f32.mrb[0].mxu0
  %v1266 = vadd.f32 %v728, %v1265
  %1267 = vmatprep.mubr.f32.mxu0 0.0
  %1268 = vmatmul.mubr.f32.gmra.mrb[0].mxu0 %v555
  %v1269 = vpop.f32.mrb[0].mxu0
  %v1270 = vadd.f32 %v732, %v1269
  %v1271 = vpop.f32.mrb[0].mxu0
  %v1272 = vadd.f32 %v734, %v1271
  %1273 = vmatprep.mubr.f32.mxu0 0.0
  %1274 = vmatmul.mubr.f32.gmra.mrb[0].mxu0 %v558
  %v1275 = vpop.f32.mrb[0].mxu0
  %v1276 = vadd.f32 %v738, %v1275
  %v1277 = vpop.f32.mrb[0].mxu0
  %v1278 = vadd.f32 %v740, %v1277
  %1279 = vmatprep.mubr.f32.mxu0 0.0
  %1280 = vmatmul.mubr.f32.gmra.mrb[0].mxu0 %v561
  %v1281 = vpop.f32.mrb[0].mxu0
  %v1282 = vadd.f32 %v744, %v1281
  %v1283 = vpop.f32.mrb[0].mxu0
  %v1284 = vadd.f32 %v746, %v1283
  %1285 = vmatprep.mubr.f32.mxu0 0.0
  %1286 = vmatmul.mubr.f32.gmra.mrb[0].mxu0 %v564
  %v1287 = vpop.f32.mrb[0].mxu0
  %v1288 = vadd.f32 %v750, %v1287
  %v1289 = vpop.f32.mrb[0].mxu0
  %v1290 = vadd.f32 %v752, %v1289
  %1291 = vmatprep.mubr.f32.mxu0 0.0
  %1292 = vmatmul.mubr.f32.gmra.mrb[0].mxu0 %v567
  %v1293 = vpop.f32.mrb[0].mxu0
  %v1294 = vadd.f32 %v756, %v1293
  %v1295 = vpop.f32.mrb[0].mxu0
  %v1296 = vadd.f32 %v758, %v1295
  %1297 = vmatprep.mubr.f32.mxu0 0.0
  %1298 = vmatmul.mubr.f32.gmra.mrb[0].mxu0 %v570
  %v1299 = vpop.f32.mrb[0].mxu0
  %v1300 = vadd.f32 %v762, %v1299
  %v1301 = vpop.f32.mrb[0].mxu0
  %v1302 = vadd.f32 %v764, %v1301
  %1303 = vmatprep.mubr.f32.mxu0 0.0
  %1304 = vmatmul.mubr.f32.gmra.mrb[0].mxu0 %v573
  %v1305 = vpop.f32.mrb[0].mxu0
  %v1306 = vadd.f32 %v768, %v1305
  %v1307 = vpop.f32.mrb[0].mxu0
  %v1308 = vadd.f32 %v770, %v1307
  %1309 = vmatprep.mubr.f32.mxu0 0.0
  %1310 = vmatmul.mubr.f32.gmra.mrb[0].mxu0 %v576
  %v1311 = vpop.f32.mrb[0].mxu0
  %v1312 = vadd.f32 %v774, %v1311
  %v1313 = vpop.f32.mrb[0].mxu0
  %v1314 = vadd.f32 %v776, %v1313
  %1315 = vmatprep.mubr.f32.mxu0 0.0
  %1316 = vmatmul.mubr.f32.gmra.mrb[0].mxu0 %v579
  %v1317 = vpop.f32.mrb[0].mxu0
  %v1318 = vadd.f32 %v780, %v1317
  %v1319 = vpop.f32.mrb[0].mxu0
  %v1320 = vadd.f32 %v782, %v1319
  %1321 = vmatprep.mubr.f32.mxu0 0.0
  %1322 = vmatmul.mubr.f32.gmra.mrb[0].mxu0 %v582
  %v1323 = vpop.f32.mrb[0].mxu0
  %v1324 = vadd.f32 %v786, %v1323
  %v1325 = vpop.f32.mrb[0].mxu0
  %v1326 = vadd.f32 %v788, %v1325
  %1327 = vmatprep.mubr.f32.mxu0 0.0
  %1328 = vmatmul.mubr.f32.gmra.mrb[0].mxu0 %v585
  %v1329 = vpop.f32.mrb[0].mxu0
  %v1330 = vadd.f32 %v792, %v1329
  %v1331 = vpop.f32.mrb[0].mxu0
  %v1332 = vadd.f32 %v794, %v1331
  %1333 = vmatprep.mubr.f32.mxu0 0.0
  %1334 = vmatmul.mubr.f32.gmra.mrb[0].mxu0 %v588
  %v1335 = vpop.f32.mrb[0].mxu0
  %v1336 = vadd.f32 %v798, %v1335
  %v1337 = vpop.f32.mrb[0].mxu0
  %v1338 = vadd.f32 %v800, %v1337
  %1339 = vmatprep.mubr.f32.mxu0 0.0
  %1340 = vmatmul.mubr.f32.gmra.mrb[0].mxu0 %v591
  %v1341 = vpop.f32.mrb[0].mxu0
  %v1342 = vadd.f32 %v804, %v1341
  %v1343 = vpop.f32.mrb[0].mxu0
  %v1344 = vadd.f32 %v806, %v1343
  %1345 = vmatprep.mubr.f32.mxu0 0.0
  %1346 = vmatmul.mubr.f32.gmra.mrb[0].mxu0 %v594
  %v1347 = vpop.f32.mrb[0].mxu0
  %v1348 = vadd.f32 %v810, %v1347
  %v1349 = vpop.f32.mrb[0].mxu0
  %v1350 = vadd.f32 %v812, %v1349
  %1351 = vmatprep.mubr.f32.mxu0 0.0
  %1352 = vmatmul.mubr.f32.gmra.mrb[0].mxu0 %v597
  %v1353 = vpop.f32.mrb[0].mxu0
  %v1354 = vadd.f32 %v816, %v1353
  %v1355 = vpop.f32.mrb[0].mxu0
  %v1356 = vadd.f32 %v818, %v1355
  %1357 = vmatprep.mubr.f32.mxu0 0.0
  %1358 = vmatmul.mubr.f32.gmra.mrb[0].mxu0 %v600
  %v1359 = vpop.f32.mrb[0].mxu0
  %v1360 = vadd.f32 %v822, %v1359
  %v1361 = vpop.f32.mrb[0].mxu0
  %v1362 = vadd.f32 %v824, %v1361
  %1363 = vmatprep.mubr.f32.mxu0 0.0
  %1364 = vmatmul.mubr.f32.gmra.mrb[0].mxu0 %v603
  %v1365 = vpop.f32.mrb[0].mxu0
  %v1366 = vadd.f32 %v828, %v1365
  %v1367 = vpop.f32.mrb[0].mxu0
  %v1368 = vadd.f32 %v830, %v1367
  %1369 = vmatprep.mubr.f32.mxu0 0.0
  %1370 = vmatmul.mubr.f32.gmra.mrb[0].mxu0 %v606
  %v1371 = vpop.f32.mrb[0].mxu0
  %v1372 = vadd.f32 %v834, %v1371
  %v1373 = vpop.f32.mrb[0].mxu0
  %v1374 = vadd.f32 %v836, %v1373
  %1375 = vmatprep.mubr.f32.mxu0 0.0
  %1376 = vmatmul.mubr.f32.gmra.mrb[0].mxu0 %v609
  %v1377 = vpop.f32.mrb[0].mxu0
  %v1378 = vadd.f32 %v840, %v1377
  %v1379 = vpop.f32.mrb[0].mxu0
  %v1380 = vadd.f32 %v842, %v1379
  %1381 = vmatprep.mubr.f32.mxu0 0.0
  %1382 = vmatmul.mubr.f32.gmra.mrb[0].mxu0 %v612
  %v1383 = vpop.f32.mrb[0].mxu0
  %v1384 = vadd.f32 %v846, %v1383
  %v1385 = vpop.f32.mrb[0].mxu0
  %v1386 = vadd.f32 %v848, %v1385
  %1387 = vmatprep.mubr.f32.mxu0 0.0
  %1388 = vmatmul.mubr.f32.gmra.mrb[0].mxu0 %v615
  %v1389 = vpop.f32.mrb[0].mxu0
  %v1390 = vadd.f32 %v852, %v1389
  %v1391 = vpop.f32.mrb[0].mxu0
  %v1392 = vadd.f32 %v854, %v1391
  %1393 = vmatprep.mubr.f32.mxu0 0.0
  %1394 = vmatmul.mubr.f32.gmra.mrb[0].mxu0 %v618
  %v1395 = vpop.f32.mrb[0].mxu0
  %v1396 = vadd.f32 %v858, %v1395
  %v1397 = vpop.f32.mrb[0].mxu0
  %v1398 = vadd.f32 %v860, %v1397
  %1399 = vdwg.mxu0
  %v1400 = vadd.f32 %v986, %v1228
  %v1401 = vadd.f32 %v988, %v1230
  %v1402 = vadd.f32 %v992, %v1234
  %v1403 = vadd.f32 %v994, %v1236
  %v1404 = vadd.f32 %v998, %v1240
  %v1405 = vadd.f32 %v1000, %v1242
  %v1406 = vadd.f32 %v1004, %v1246
  %v1407 = vadd.f32 %v1006, %v1248
  %v1408 = vadd.f32 %v1010, %v1252
  %v1409 = vadd.f32 %v1012, %v1254
  %v1410 = vadd.f32 %v1016, %v1258
  %v1411 = vadd.f32 %v1018, %v1260
  %v1412 = vadd.f32 %v1022, %v1264
  %v1413 = vadd.f32 %v1024, %v1266
  %v1414 = vadd.f32 %v1028, %v1270
  %v1415 = vadd.f32 %v1030, %v1272
  %v1416 = vadd.f32 %v1034, %v1276
  %v1417 = vadd.f32 %v1036, %v1278
  %v1418 = vadd.f32 %v1040, %v1282
  %v1419 = vadd.f32 %v1042, %v1284
  %v1420 = vadd.f32 %v1046, %v1288
  %v1421 = vadd.f32 %v1048, %v1290
  %v1422 = vadd.f32 %v1052, %v1294
  %v1423 = vadd.f32 %v1054, %v1296
  %v1424 = vadd.f32 %v1058, %v1300
  %v1425 = vadd.f32 %v1060, %v1302
  %v1426 = vadd.f32 %v1064, %v1306
  %v1427 = vadd.f32 %v1066, %v1308
  %v1428 = vadd.f32 %v1070, %v1312
  %v1429 = vadd.f32 %v1072, %v1314
  %v1430 = vadd.f32 %v1076, %v1318
  %v1431 = vadd.f32 %v1078, %v1320
  %v1432 = vadd.f32 %v1082, %v1324
  %v1433 = vadd.f32 %v1084, %v1326
  %v1434 = vadd.f32 %v1088, %v1330
  %v1435 = vadd.f32 %v1090, %v1332
  %v1436 = vadd.f32 %v1094, %v1336
  %v1437 = vadd.f32 %v1096, %v1338
  %v1438 = vadd.f32 %v1100, %v1342
  %v1439 = vadd.f32 %v1102, %v1344
  %v1440 = vadd.f32 %v1106, %v1348
  %v1441 = vadd.f32 %v1108, %v1350
  %v1442 = vadd.f32 %v1112, %v1354
  %v1443 = vadd.f32 %v1114, %v1356
  %v1444 = vadd.f32 %v1118, %v1360
  %v1445 = vadd.f32 %v1120, %v1362
  %v1446 = vadd.f32 %v1124, %v1366
  %v1447 = vadd.f32 %v1126, %v1368
  %v1448 = vadd.f32 %v1130, %v1372
  %v1449 = vadd.f32 %v1132, %v1374
  %v1450 = vadd.f32 %v1136, %v1378
  %v1451 = vadd.f32 %v1138, %v1380
  %v1452 = vadd.f32 %v1142, %v1384
  %v1453 = vadd.f32 %v1144, %v1386
  %v1454 = vadd.f32 %v1148, %v1390
  %v1455 = vadd.f32 %v1150, %v1392
  %v1456 = vadd.f32 %v1154, %v1396
  %v1457 = vadd.f32 %v1156, %v1398
  %v1458 = vld [vmem:[%s2] sm:$0x3]
  %v1460 = vlaneseq
  %v1461 = vshrl.u32 %v1460, 7
  %v1462 = vsub.s32 0, %v1461
  %v1463 = vrot.slane %v1458, %v1462
  %v1464 = vlaneseq
  %v1465 = vshrl.u32 %v1464, 7
  %v1466 = vsub.s32 1, %v1465
  %v1467 = vrot.slane %v1458, %v1466
  %v1471 = vsel %vm129, %v862, 0
  %v1474 = vsel %vm129, %v863, 0
  %v1477 = vsel %vm129, %v864, 0
  %v1480 = vsel %vm129, %v865, 0
  %v1483 = vsel %vm129, %v866, 0
  %v1486 = vsel %vm129, %v867, 0
  %v1489 = vsel %vm129, %v868, 0
  %v1492 = vsel %vm129, %v869, 0
  %v1495 = vsel %vm129, %v870, 0
  %v1498 = vsel %vm129, %v871, 0
  %v1501 = vsel %vm129, %v872, 0
  %v1504 = vsel %vm129, %v873, 0
  %v1507 = vsel %vm129, %v874, 0
  %v1510 = vsel %vm129, %v875, 0
  %v1513 = vsel %vm129, %v876, 0
  %v1516 = vsel %vm129, %v877, 0
  %v1519 = vsel %vm129, %v878, 0
  %v1522 = vsel %vm129, %v879, 0
  %v1525 = vsel %vm129, %v880, 0
  %v1528 = vsel %vm129, %v881, 0
  %v1531 = vsel %vm129, %v882, 0
  %v1534 = vsel %vm129, %v883, 0
  %v1537 = vsel %vm129, %v884, 0
  %v1540 = vsel %vm129, %v885, 0
  %v1543 = vsel %vm129, %v886, 0
  %v1546 = vsel %vm129, %v887, 0
  %v1549 = vsel %vm129, %v888, 0
  %v1552 = vsel %vm129, %v889, 0
  %v1555 = vsel %vm129, %v890, 0
  %1557 = vmatprep.subr.mxu0 %v893
  %1558 = vmatpush1.msra.mxu0 %v892
  %1559 = vmatprep.subr.mxu0 %v895
  %1560 = vmatpush1.msra.mxu0 %v894
  %1561 = vmatprep.subr.mxu0 %v897
  %1562 = vmatpush1.msra.mxu0 %v896
  %1563 = vmatprep.subr.mxu0 %v899
  %1564 = vmatpush1.msra.mxu0 %v898
  %1565 = vmatprep.subr.mxu0 %v901
  %1566 = vmatpush1.msra.mxu0 %v900
  %1567 = vmatprep.subr.mxu0 %v903
  %1568 = vmatpush1.msra.mxu0 %v902
  %1569 = vmatprep.subr.mxu0 %v905
  %1570 = vmatpush1.msra.mxu0 %v904
  %1571 = vmatprep.subr.mxu0 %v907
  %1572 = vmatpush1.msra.mxu0 %v906
  %1573 = vmatprep.subr.mxu0 %v909
  %1574 = vmatpush1.msra.mxu0 %v908
  %1575 = vmatprep.subr.mxu0 %v911
  %1576 = vmatpush1.msra.mxu0 %v910
  %1577 = vmatprep.subr.mxu0 %v913
  %1578 = vmatpush1.msra.mxu0 %v912
  %1579 = vmatprep.subr.mxu0 %v915
  %1580 = vmatpush1.msra.mxu0 %v914
  %1581 = vmatprep.subr.mxu0 0.0
  %1582 = vmatpush1.msra.mxu0 0.0
  %1583 = vmatprep.subr.mxu0 0.0
  %1584 = vmatpush1.msra.mxu0 0.0
  %1585 = vmatprep.subr.mxu0 0.0
  %1586 = vmatpush1.msra.mxu0 0.0
  %1587 = vmatprep.subr.mxu0 0.0
  %1588 = vmatpush1.msra.mxu0 0.0
  %1589 = vmatprep.subr.mxu0 0.0
  %1590 = vmatpush1.msra.mxu0 0.0
  %1591 = vmatprep.subr.mxu0 0.0
  %1592 = vmatpush1.msra.mxu0 0.0
  %1593 = vmatprep.subr.mxu0 0.0
  %1594 = vmatpush1.msra.mxu0 0.0
  %1595 = vmatprep.subr.mxu0 0.0
  %1596 = vmatpush1.msra.mxu0 0.0
  %1597 = vmatprep.subr.mxu0 0.0
  %1598 = vmatpush1.msra.mxu0 0.0
  %1599 = vmatprep.subr.mxu0 0.0
  %1600 = vmatpush1.msra.mxu0 0.0
  %1601 = vmatprep.subr.mxu0 0.0
  %1602 = vmatpush1.msra.mxu0 0.0
  %1603 = vmatprep.subr.mxu0 0.0
  %1604 = vmatpush1.msra.mxu0 0.0
  %1605 = vmatprep.subr.mxu0 0.0
  %1606 = vmatpush1.msra.mxu0 0.0
  %1607 = vmatprep.subr.mxu0 0.0
  %1608 = vmatpush1.msra.mxu0 0.0
  %1609 = vmatprep.subr.mxu0 0.0
  %1610 = vmatpush1.msra.mxu0 0.0
  %1611 = vmatprep.subr.mxu0 0.0
  %1612 = vmatpush1.msra.mxu0 0.0
  %1613 = vmatprep.subr.mxu0 0.0
  %1614 = vmatpush1.msra.mxu0 0.0
  %1615 = vmatprep.subr.mxu0 0.0
  %1616 = vmatpush1.msra.mxu0 0.0
  %1617 = vmatprep.subr.mxu0 0.0
  %1618 = vmatpush1.msra.mxu0 0.0
  %1619 = vmatprep.subr.mxu0 0.0
  %1620 = vmatpush1.msra.mxu0 0.0
  %1621 = vmatprep.mubr.f32.mxu0 0.0
  %1622 = vmatmul.mubr.f32.gmra.mrb[0].mxu0 %v1471
  %v1623 = vpop.f32.mrb[0].mxu0
  %v1624 = vadd.f32 %v1463, %v1623
  %v1625 = vpop.f32.mrb[0].mxu0
  %v1626 = vadd.f32 %v1467, %v1625
  %1627 = vmatprep.mubr.f32.mxu0 0.0
  %1628 = vmatmul.mubr.f32.gmra.mrb[0].mxu0 %v1474
  %v1629 = vpop.f32.mrb[0].mxu0
  %v1630 = vadd.f32 %v1463, %v1629
  %v1631 = vpop.f32.mrb[0].mxu0
  %v1632 = vadd.f32 %v1467, %v1631
  %1633 = vmatprep.mubr.f32.mxu0 0.0
  %1634 = vmatmul.mubr.f32.gmra.mrb[0].mxu0 %v1477
  %v1635 = vpop.f32.mrb[0].mxu0
  %v1636 = vadd.f32 %v1463, %v1635
  %v1637 = vpop.f32.mrb[0].mxu0
  %v1638 = vadd.f32 %v1467, %v1637
  %1639 = vmatprep.mubr.f32.mxu0 0.0
  %1640 = vmatmul.mubr.f32.gmra.mrb[0].mxu0 %v1480
  %v1641 = vpop.f32.mrb[0].mxu0
  %v1642 = vadd.f32 %v1463, %v1641
  %v1643 = vpop.f32.mrb[0].mxu0
  %v1644 = vadd.f32 %v1467, %v1643
  %1645 = vmatprep.mubr.f32.mxu0 0.0
  %1646 = vmatmul.mubr.f32.gmra.mrb[0].mxu0 %v1483
  %v1647 = vpop.f32.mrb[0].mxu0
  %v1648 = vadd.f32 %v1463, %v1647
  %v1649 = vpop.f32.mrb[0].mxu0
  %v1650 = vadd.f32 %v1467, %v1649
  %1651 = vmatprep.mubr.f32.mxu0 0.0
  %1652 = vmatmul.mubr.f32.gmra.mrb[0].mxu0 %v1486
  %v1653 = vpop.f32.mrb[0].mxu0
  %v1654 = vadd.f32 %v1463, %v1653
  %v1655 = vpop.f32.mrb[0].mxu0
  %v1656 = vadd.f32 %v1467, %v1655
  %1657 = vmatprep.mubr.f32.mxu0 0.0
  %1658 = vmatmul.mubr.f32.gmra.mrb[0].mxu0 %v1489
  %v1659 = vpop.f32.mrb[0].mxu0
  %v1660 = vadd.f32 %v1463, %v1659
  %v1661 = vpop.f32.mrb[0].mxu0
  %v1662 = vadd.f32 %v1467, %v1661
  %1663 = vmatprep.mubr.f32.mxu0 0.0
  %1664 = vmatmul.mubr.f32.gmra.mrb[0].mxu0 %v1492
  %v1665 = vpop.f32.mrb[0].mxu0
  %v1666 = vadd.f32 %v1463, %v1665
  %v1667 = vpop.f32.mrb[0].mxu0
  %v1668 = vadd.f32 %v1467, %v1667
  %1669 = vmatprep.mubr.f32.mxu0 0.0
  %1670 = vmatmul.mubr.f32.gmra.mrb[0].mxu0 %v1495
  %v1671 = vpop.f32.mrb[0].mxu0
  %v1672 = vadd.f32 %v1463, %v1671
  %v1673 = vpop.f32.mrb[0].mxu0
  %v1674 = vadd.f32 %v1467, %v1673
  %1675 = vmatprep.mubr.f32.mxu0 0.0
  %1676 = vmatmul.mubr.f32.gmra.mrb[0].mxu0 %v1498
  %v1677 = vpop.f32.mrb[0].mxu0
  %v1678 = vadd.f32 %v1463, %v1677
  %v1679 = vpop.f32.mrb[0].mxu0
  %v1680 = vadd.f32 %v1467, %v1679
  %1681 = vmatprep.mubr.f32.mxu0 0.0
  %1682 = vmatmul.mubr.f32.gmra.mrb[0].mxu0 %v1501
  %v1683 = vpop.f32.mrb[0].mxu0
  %v1684 = vadd.f32 %v1463, %v1683
  %v1685 = vpop.f32.mrb[0].mxu0
  %v1686 = vadd.f32 %v1467, %v1685
  %1687 = vmatprep.mubr.f32.mxu0 0.0
  %1688 = vmatmul.mubr.f32.gmra.mrb[0].mxu0 %v1504
  %v1689 = vpop.f32.mrb[0].mxu0
  %v1690 = vadd.f32 %v1463, %v1689
  %v1691 = vpop.f32.mrb[0].mxu0
  %v1692 = vadd.f32 %v1467, %v1691
  %1693 = vmatprep.mubr.f32.mxu0 0.0
  %1694 = vmatmul.mubr.f32.gmra.mrb[0].mxu0 %v1507
  %v1695 = vpop.f32.mrb[0].mxu0
  %v1696 = vadd.f32 %v1463, %v1695
  %v1697 = vpop.f32.mrb[0].mxu0
  %v1698 = vadd.f32 %v1467, %v1697
  %1699 = vmatprep.mubr.f32.mxu0 0.0
  %1700 = vmatmul.mubr.f32.gmra.mrb[0].mxu0 %v1510
  %v1701 = vpop.f32.mrb[0].mxu0
  %v1702 = vadd.f32 %v1463, %v1701
  %v1703 = vpop.f32.mrb[0].mxu0
  %v1704 = vadd.f32 %v1467, %v1703
  %1705 = vmatprep.mubr.f32.mxu0 0.0
  %1706 = vmatmul.mubr.f32.gmra.mrb[0].mxu0 %v1513
  %v1707 = vpop.f32.mrb[0].mxu0
  %v1708 = vadd.f32 %v1463, %v1707
  %v1709 = vpop.f32.mrb[0].mxu0
  %v1710 = vadd.f32 %v1467, %v1709
  %1711 = vmatprep.mubr.f32.mxu0 0.0
  %1712 = vmatmul.mubr.f32.gmra.mrb[0].mxu0 %v1516
  %v1713 = vpop.f32.mrb[0].mxu0
  %v1714 = vadd.f32 %v1463, %v1713
  %v1715 = vpop.f32.mrb[0].mxu0
  %v1716 = vadd.f32 %v1467, %v1715
  %1717 = vmatprep.mubr.f32.mxu0 0.0
  %1718 = vmatmul.mubr.f32.gmra.mrb[0].mxu0 %v1519
  %v1719 = vpop.f32.mrb[0].mxu0
  %v1720 = vadd.f32 %v1463, %v1719
  %v1721 = vpop.f32.mrb[0].mxu0
  %v1722 = vadd.f32 %v1467, %v1721
  %1723 = vmatprep.mubr.f32.mxu0 0.0
  %1724 = vmatmul.mubr.f32.gmra.mrb[0].mxu0 %v1522
  %v1725 = vpop.f32.mrb[0].mxu0
  %v1726 = vadd.f32 %v1463, %v1725
  %v1727 = vpop.f32.mrb[0].mxu0
  %v1728 = vadd.f32 %v1467, %v1727
  %1729 = vmatprep.mubr.f32.mxu0 0.0
  %1730 = vmatmul.mubr.f32.gmra.mrb[0].mxu0 %v1525
  %v1731 = vpop.f32.mrb[0].mxu0
  %v1732 = vadd.f32 %v1463, %v1731
  %v1733 = vpop.f32.mrb[0].mxu0
  %v1734 = vadd.f32 %v1467, %v1733
  %1735 = vmatprep.mubr.f32.mxu0 0.0
  %1736 = vmatmul.mubr.f32.gmra.mrb[0].mxu0 %v1528
  %v1737 = vpop.f32.mrb[0].mxu0
  %v1738 = vadd.f32 %v1463, %v1737
  %v1739 = vpop.f32.mrb[0].mxu0
  %v1740 = vadd.f32 %v1467, %v1739
  %1741 = vmatprep.mubr.f32.mxu0 0.0
  %1742 = vmatmul.mubr.f32.gmra.mrb[0].mxu0 %v1531
  %v1743 = vpop.f32.mrb[0].mxu0
  %v1744 = vadd.f32 %v1463, %v1743
  %v1745 = vpop.f32.mrb[0].mxu0
  %v1746 = vadd.f32 %v1467, %v1745
  %1747 = vmatprep.mubr.f32.mxu0 0.0
  %1748 = vmatmul.mubr.f32.gmra.mrb[0].mxu0 %v1534
  %v1749 = vpop.f32.mrb[0].mxu0
  %v1750 = vadd.f32 %v1463, %v1749
  %v1751 = vpop.f32.mrb[0].mxu0
  %v1752 = vadd.f32 %v1467, %v1751
  %1753 = vmatprep.mubr.f32.mxu0 0.0
  %1754 = vmatmul.mubr.f32.gmra.mrb[0].mxu0 %v1537
  %v1755 = vpop.f32.mrb[0].mxu0
  %v1756 = vadd.f32 %v1463, %v1755
  %v1757 = vpop.f32.mrb[0].mxu0
  %v1758 = vadd.f32 %v1467, %v1757
  %1759 = vmatprep.mubr.f32.mxu0 0.0
  %1760 = vmatmul.mubr.f32.gmra.mrb[0].mxu0 %v1540
  %v1761 = vpop.f32.mrb[0].mxu0
  %v1762 = vadd.f32 %v1463, %v1761
  %v1763 = vpop.f32.mrb[0].mxu0
  %v1764 = vadd.f32 %v1467, %v1763
  %1765 = vmatprep.mubr.f32.mxu0 0.0
  %1766 = vmatmul.mubr.f32.gmra.mrb[0].mxu0 %v1543
  %v1767 = vpop.f32.mrb[0].mxu0
  %v1768 = vadd.f32 %v1463, %v1767
  %v1769 = vpop.f32.mrb[0].mxu0
  %v1770 = vadd.f32 %v1467, %v1769
  %1771 = vmatprep.mubr.f32.mxu0 0.0
  %1772 = vmatmul.mubr.f32.gmra.mrb[0].mxu0 %v1546
  %v1773 = vpop.f32.mrb[0].mxu0
  %v1774 = vadd.f32 %v1463, %v1773
  %v1775 = vpop.f32.mrb[0].mxu0
  %v1776 = vadd.f32 %v1467, %v1775
  %1777 = vmatprep.mubr.f32.mxu0 0.0
  %1778 = vmatmul.mubr.f32.gmra.mrb[0].mxu0 %v1549
  %v1779 = vpop.f32.mrb[0].mxu0
  %v1780 = vadd.f32 %v1463, %v1779
  %v1781 = vpop.f32.mrb[0].mxu0
  %v1782 = vadd.f32 %v1467, %v1781
  %1783 = vmatprep.mubr.f32.mxu0 0.0
  %1784 = vmatmul.mubr.f32.gmra.mrb[0].mxu0 %v1552
  %v1785 = vpop.f32.mrb[0].mxu0
  %v1786 = vadd.f32 %v1463, %v1785
  %v1787 = vpop.f32.mrb[0].mxu0
  %v1788 = vadd.f32 %v1467, %v1787
  %1789 = vmatprep.mubr.f32.mxu0 0.0
  %1790 = vmatmul.mubr.f32.gmra.mrb[0].mxu0 %v1555
  %v1791 = vpop.f32.mrb[0].mxu0
  %v1792 = vadd.f32 %v1463, %v1791
  %v1793 = vpop.f32.mrb[0].mxu0
  %v1794 = vadd.f32 %v1467, %v1793
  %1795 = vdwg.mxu0
  %v1796 = vadd.f32 %v1400, %v1624
  %v1797 = vadd.f32 %v1401, %v1626
  %v1798 = vadd.f32 %v1402, %v1630
  %v1799 = vadd.f32 %v1403, %v1632
  %v1800 = vadd.f32 %v1404, %v1636
  %v1801 = vadd.f32 %v1405, %v1638
  %v1802 = vadd.f32 %v1406, %v1642
  %v1803 = vadd.f32 %v1407, %v1644
  %v1804 = vadd.f32 %v1408, %v1648
  %v1805 = vadd.f32 %v1409, %v1650
  %v1806 = vadd.f32 %v1410, %v1654
  %v1807 = vadd.f32 %v1411, %v1656
  %v1808 = vadd.f32 %v1412, %v1660
  %v1809 = vadd.f32 %v1413, %v1662
  %v1810 = vadd.f32 %v1414, %v1666
  %v1811 = vadd.f32 %v1415, %v1668
  %v1812 = vadd.f32 %v1416, %v1672
  %v1813 = vadd.f32 %v1417, %v1674
  %v1814 = vadd.f32 %v1418, %v1678
  %v1815 = vadd.f32 %v1419, %v1680
  %v1816 = vadd.f32 %v1420, %v1684
  %v1817 = vadd.f32 %v1421, %v1686
  %v1818 = vadd.f32 %v1422, %v1690
  %v1819 = vadd.f32 %v1423, %v1692
  %v1820 = vadd.f32 %v1424, %v1696
  %v1821 = vadd.f32 %v1425, %v1698
  %v1822 = vadd.f32 %v1426, %v1702
  %v1823 = vadd.f32 %v1427, %v1704
  %v1824 = vadd.f32 %v1428, %v1708
  %v1825 = vadd.f32 %v1429, %v1710
  %v1826 = vadd.f32 %v1430, %v1714
  %v1827 = vadd.f32 %v1431, %v1716
  %v1828 = vadd.f32 %v1432, %v1720
  %v1829 = vadd.f32 %v1433, %v1722
  %v1830 = vadd.f32 %v1434, %v1726
  %v1831 = vadd.f32 %v1435, %v1728
  %v1832 = vadd.f32 %v1436, %v1732
  %v1833 = vadd.f32 %v1437, %v1734
  %v1834 = vadd.f32 %v1438, %v1738
  %v1835 = vadd.f32 %v1439, %v1740
  %v1836 = vadd.f32 %v1440, %v1744
  %v1837 = vadd.f32 %v1441, %v1746
  %v1838 = vadd.f32 %v1442, %v1750
  %v1839 = vadd.f32 %v1443, %v1752
  %v1840 = vadd.f32 %v1444, %v1756
  %v1841 = vadd.f32 %v1445, %v1758
  %v1842 = vadd.f32 %v1446, %v1762
  %v1843 = vadd.f32 %v1447, %v1764
  %v1844 = vadd.f32 %v1448, %v1768
  %v1845 = vadd.f32 %v1449, %v1770
  %v1846 = vadd.f32 %v1450, %v1774
  %v1847 = vadd.f32 %v1451, %v1776
  %v1848 = vadd.f32 %v1452, %v1780
  %v1849 = vadd.f32 %v1453, %v1782
  %v1850 = vadd.f32 %v1454, %v1786
  %v1851 = vadd.f32 %v1455, %v1788
  %v1852 = vadd.f32 %v1456, %v1792
  %v1853 = vadd.f32 %v1457, %v1794
  %v1854 = vmax.f32 %v1796, 0.0
  %v1855 = vmax.f32 %v1797, 0.0
  %v1856 = vmax.f32 %v1798, 0.0
  %v1857 = vmax.f32 %v1799, 0.0
  %v1858 = vmax.f32 %v1800, 0.0
  %v1859 = vmax.f32 %v1801, 0.0
  %v1860 = vmax.f32 %v1802, 0.0
  %v1861 = vmax.f32 %v1803, 0.0
  %v1862 = vmax.f32 %v1804, 0.0
  %v1863 = vmax.f32 %v1805, 0.0
  %v1864 = vmax.f32 %v1806, 0.0
  %v1865 = vmax.f32 %v1807, 0.0
  %v1866 = vmax.f32 %v1808, 0.0
  %v1867 = vmax.f32 %v1809, 0.0
  %v1868 = vmax.f32 %v1810, 0.0
  %v1869 = vmax.f32 %v1811, 0.0
  %v1870 = vmax.f32 %v1812, 0.0
  %v1871 = vmax.f32 %v1813, 0.0
  %v1872 = vmax.f32 %v1814, 0.0
  %v1873 = vmax.f32 %v1815, 0.0
  %v1874 = vmax.f32 %v1816, 0.0
  %v1875 = vmax.f32 %v1817, 0.0
  %v1876 = vmax.f32 %v1818, 0.0
  %v1877 = vmax.f32 %v1819, 0.0
  %v1878 = vmax.f32 %v1820, 0.0
  %v1879 = vmax.f32 %v1821, 0.0
  %v1880 = vmax.f32 %v1822, 0.0
  %v1881 = vmax.f32 %v1823, 0.0
  %v1882 = vmax.f32 %v1824, 0.0
  %v1883 = vmax.f32 %v1825, 0.0
  %v1884 = vmax.f32 %v1826, 0.0
  %v1885 = vmax.f32 %v1827, 0.0
  %v1886 = vmax.f32 %v1828, 0.0
  %v1887 = vmax.f32 %v1829, 0.0
  %v1888 = vmax.f32 %v1830, 0.0
  %v1889 = vmax.f32 %v1831, 0.0
  %v1890 = vmax.f32 %v1832, 0.0
  %v1891 = vmax.f32 %v1833, 0.0
  %v1892 = vmax.f32 %v1834, 0.0
  %v1893 = vmax.f32 %v1835, 0.0
  %v1894 = vmax.f32 %v1836, 0.0
  %v1895 = vmax.f32 %v1837, 0.0
  %v1896 = vmax.f32 %v1838, 0.0
  %v1897 = vmax.f32 %v1839, 0.0
  %v1898 = vmax.f32 %v1840, 0.0
  %v1899 = vmax.f32 %v1841, 0.0
  %v1900 = vmax.f32 %v1842, 0.0
  %v1901 = vmax.f32 %v1843, 0.0
  %v1902 = vmax.f32 %v1844, 0.0
  %v1903 = vmax.f32 %v1845, 0.0
  %v1904 = vmax.f32 %v1846, 0.0
  %v1905 = vmax.f32 %v1847, 0.0
  %v1906 = vmax.f32 %v1848, 0.0
  %v1907 = vmax.f32 %v1849, 0.0
  %v1908 = vmax.f32 %v1850, 0.0
  %v1909 = vmax.f32 %v1851, 0.0
  %v1910 = vmax.f32 %v1852, 0.0
  %v1911 = vmax.f32 %v1853, 0.0
  %v1912 = vmax.f32 %v1854, %v1856
  %v1913 = vmax.f32 %v1855, %v1857
  %v1914 = vmax.f32 %v1856, %v1858
  %v1915 = vmax.f32 %v1857, %v1859
  %v1916 = vmax.f32 %v1858, %v1860
  %v1917 = vmax.f32 %v1859, %v1861
  %v1918 = vmax.f32 %v1860, %v1862
  %v1919 = vmax.f32 %v1861, %v1863
  %v1920 = vmax.f32 %v1862, %v1864
  %v1921 = vmax.f32 %v1863, %v1865
  %v1922 = vmax.f32 %v1864, %v1866
  %v1923 = vmax.f32 %v1865, %v1867
  %v1924 = vmax.f32 %v1866, %v1868
  %v1925 = vmax.f32 %v1867, %v1869
  %v1926 = vmax.f32 %v1868, %v1870
  %v1927 = vmax.f32 %v1869, %v1871
  %v1928 = vmax.f32 %v1870, %v1872
  %v1929 = vmax.f32 %v1871, %v1873
  %v1930 = vmax.f32 %v1872, %v1874
  %v1931 = vmax.f32 %v1873, %v1875
  %v1932 = vmax.f32 %v1874, %v1876
  %v1933 = vmax.f32 %v1875, %v1877
  %v1934 = vmax.f32 %v1876, %v1878
  %v1935 = vmax.f32 %v1877, %v1879
  %v1936 = vmax.f32 %v1878, %v1880
  %v1937 = vmax.f32 %v1879, %v1881
  %v1938 = vmax.f32 %v1880, %v1882
  %v1939 = vmax.f32 %v1881, %v1883
  %v1940 = vmax.f32 %v1882, %v1884
  %v1941 = vmax.f32 %v1883, %v1885
  %v1942 = vmax.f32 %v1884, %v1886
  %v1943 = vmax.f32 %v1885, %v1887
  %v1944 = vmax.f32 %v1886, %v1888
  %v1945 = vmax.f32 %v1887, %v1889
  %v1946 = vmax.f32 %v1888, %v1890
  %v1947 = vmax.f32 %v1889, %v1891
  %v1948 = vmax.f32 %v1890, %v1892
  %v1949 = vmax.f32 %v1891, %v1893
  %v1950 = vmax.f32 %v1892, %v1894
  %v1951 = vmax.f32 %v1893, %v1895
  %v1952 = vmax.f32 %v1894, %v1896
  %v1953 = vmax.f32 %v1895, %v1897
  %v1954 = vmax.f32 %v1896, %v1898
  %v1955 = vmax.f32 %v1897, %v1899
  %v1956 = vmax.f32 %v1898, %v1900
  %v1957 = vmax.f32 %v1899, %v1901
  %v1958 = vmax.f32 %v1900, %v1902
  %v1959 = vmax.f32 %v1901, %v1903
  %v1960 = vmax.f32 %v1902, %v1904
  %v1961 = vmax.f32 %v1903, %v1905
  %v1962 = vmax.f32 %v1904, %v1906
  %v1963 = vmax.f32 %v1905, %v1907
  %v1964 = vmax.f32 %v1906, %v1908
  %v1965 = vmax.f32 %v1907, %v1909
  %v1966 = vmax.f32 %v1908, %v1910
  %v1967 = vmax.f32 %v1909, %v1911
  %v1968 = vld [vmem:[%s3] sm:$0xff]
  %v1969 = vld [vmem:[%s3 + $0x8] sm:$0xff]
  %v1970 = vld [vmem:[%s3 + $0x10] sm:$0xff]
  %v1971 = vld [vmem:[%s3 + $0x18] sm:$0xff]
  %v1972 = vld [vmem:[%s3 + $0x20] sm:$0xff]
  %v1973 = vld [vmem:[%s3 + $0x28] sm:$0xff]
  %v1974 = vld [vmem:[%s3 + $0x30] sm:$0xff]
  %v1975 = vld [vmem:[%s3 + $0x38] sm:$0xff]
  %v1976 = vld [vmem:[%s3 + $0x40] sm:$0xff]
  %v1977 = vld [vmem:[%s3 + $0x48] sm:$0xff]
  %v1978 = vld [vmem:[%s3 + $0x50] sm:$0xff]
  %v1979 = vld [vmem:[%s3 + $0x58] sm:$0xff]
  %v1980 = vld [vmem:[%s3 + $0x60] sm:$0xff]
  %v1981 = vld [vmem:[%s3 + $0x68] sm:$0xff]
  %v1982 = vld [vmem:[%s3 + $0x70] sm:$0xff]
  %v1983 = vld [vmem:[%s3 + $0x78] sm:$0xff]
  %v1984 = vld [vmem:[%s3 + $0x80] sm:$0xff]
  %v1985 = vld [vmem:[%s3 + $0x88] sm:$0xff]
  %v1986 = vld [vmem:[%s3 + $0x90] sm:$0xff]
  %v1987 = vld [vmem:[%s3 + $0x98] sm:$0xff]
  %v1988 = vld [vmem:[%s3 + $0xa0] sm:$0xff]
  %vm1989 = vcmask 326656
  %v1991 = vsel %vm1989, %v1913, 0
  %v1994 = vsel %vm1989, %v1915, 0
  %v1997 = vsel %vm1989, %v1917, 0
  %v2000 = vsel %vm1989, %v1919, 0
  %v2003 = vsel %vm1989, %v1921, 0
  %v2006 = vsel %vm1989, %v1923, 0
  %v2009 = vsel %vm1989, %v1925, 0
  %v2012 = vsel %vm1989, %v1927, 0
  %v2015 = vsel %vm1989, %v1929, 0
  %v2018 = vsel %vm1989, %v1931, 0
  %v2021 = vsel %vm1989, %v1933, 0
  %v2024 = vsel %vm1989, %v1935, 0
  %v2027 = vsel %vm1989, %v1937, 0
  %v2030 = vsel %vm1989, %v1939, 0
  %v2033 = vsel %vm1989, %v1941, 0
  %v2036 = vsel %vm1989, %v1943, 0
  %v2039 = vsel %vm1989, %v1945, 0
  %v2042 = vsel %vm1989, %v1947, 0
  %v2045 = vsel %vm1989, %v1949, 0
  %v2048 = vsel %vm1989, %v1951, 0
  %v2051 = vsel %vm1989, %v1953, 0
  %v2054 = vsel %vm1989, %v1955, 0
  %v2057 = vsel %vm1989, %v1957, 0
  %v2060 = vsel %vm1989, %v1959, 0
  %v2063 = vsel %vm1989, %v1961, 0
  %v2066 = vsel %vm1989, %v1963, 0
  %v2069 = vsel %vm1989, %v1965, 0
  %v2072 = vsel %vm1989, %v1967, 0
  %2074 = vmatprep.subr.mxu0 0.0
  %2075 = vmatpush1.msra.mxu0 %v1968
  %2076 = vmatprep.subr.mxu0 0.0
  %2077 = vmatpush1.msra.mxu0 %v1969
  %2078 = vmatprep.subr.mxu0 0.0
  %2079 = vmatpush1.msra.mxu0 %v1970
  %2080 = vmatprep.subr.mxu0 0.0
  %2081 = vmatpush1.msra.mxu0 %v1971
  %2082 = vmatprep.subr.mxu0 0.0
  %2083 = vmatpush1.msra.mxu0 %v1972
  %2084 = vmatprep.subr.mxu0 0.0
  %2085 = vmatpush1.msra.mxu0 %v1973
  %2086 = vmatprep.subr.mxu0 0.0
  %2087 = vmatpush1.msra.mxu0 %v1974
  %2088 = vmatprep.subr.mxu0 0.0
  %2089 = vmatpush1.msra.mxu0 %v1975
  %2090 = vmatprep.subr.mxu0 0.0
  %2091 = vmatpush1.msra.mxu0 %v1976
  %2092 = vmatprep.subr.mxu0 0.0
  %2093 = vmatpush1.msra.mxu0 %v1977
  %2094 = vmatprep.subr.mxu0 0.0
  %2095 = vmatpush1.msra.mxu0 %v1978
  %2096 = vmatprep.subr.mxu0 0.0
  %2097 = vmatpush1.msra.mxu0 %v1979
  %2098 = vmatprep.subr.mxu0 0.0
  %2099 = vmatpush1.msra.mxu0 %v1980
  %2100 = vmatprep.subr.mxu0 0.0
  %2101 = vmatpush1.msra.mxu0 %v1981
  %2102 = vmatprep.subr.mxu0 0.0
  %2103 = vmatpush1.msra.mxu0 %v1982
  %2104 = vmatprep.subr.mxu0 0.0
  %2105 = vmatpush1.msra.mxu0 %v1983
  %2106 = vmatprep.subr.mxu0 0.0
  %2107 = vmatpush1.msra.mxu0 %v1984
  %2108 = vmatprep.subr.mxu0 0.0
  %2109 = vmatpush1.msra.mxu0 %v1985
  %2110 = vmatprep.subr.mxu0 0.0
  %2111 = vmatpush1.msra.mxu0 %v1986
  %2112 = vmatprep.subr.mxu0 0.0
  %2113 = vmatpush1.msra.mxu0 %v1987
  %2114 = vmatprep.subr.mxu0 0.0
  %2115 = vmatpush1.msra.mxu0 %v1988
  %2116 = vmatprep.subr.mxu0 0.0
  %2117 = vmatpush1.msra.mxu0 0.0
  %2118 = vmatprep.subr.mxu0 0.0
  %2119 = vmatpush1.msra.mxu0 0.0
  %2120 = vmatprep.subr.mxu0 0.0
  %2121 = vmatpush1.msra.mxu0 0.0
  %2122 = vmatprep.subr.mxu0 0.0
  %2123 = vmatpush1.msra.mxu0 0.0
  %2124 = vmatprep.subr.mxu0 0.0
  %2125 = vmatpush1.msra.mxu0 0.0
  %2126 = vmatprep.subr.mxu0 0.0
  %2127 = vmatpush1.msra.mxu0 0.0
  %2128 = vmatprep.subr.mxu0 0.0
  %2129 = vmatpush1.msra.mxu0 0.0
  %2130 = vmatprep.subr.mxu0 0.0
  %2131 = vmatpush1.msra.mxu0 0.0
  %2132 = vmatprep.subr.mxu0 0.0
  %2133 = vmatpush1.msra.mxu0 0.0
  %2134 = vmatprep.subr.mxu0 0.0
  %2135 = vmatpush1.msra.mxu0 0.0
  %2136 = vmatprep.subr.mxu0 0.0
  %2137 = vmatpush1.msra.mxu0 0.0
  %2138 = vmatprep.mubr.f32.mxu0 %v1991
  %2139 = vmatmul.mubr.f32.gmra.mrb[0].mxu0 %v1912
  %v2140 = vpop.f32.mrb[0].mxu0
  %v2141 = vadd.f32 0.0, %v2140
  %v2142 = vpop.f32.mrb[0].mxu0
  %2143 = vmatprep.mubr.f32.mxu0 %v1994
  %2144 = vmatmul.mubr.f32.gmra.mrb[0].mxu0 %v1914
  %v2145 = vpop.f32.mrb[0].mxu0
  %v2146 = vadd.f32 0.0, %v2145
  %v2147 = vpop.f32.mrb[0].mxu0
  %2148 = vmatprep.mubr.f32.mxu0 %v1997
  %2149 = vmatmul.mubr.f32.gmra.mrb[0].mxu0 %v1916
  %v2150 = vpop.f32.mrb[0].mxu0
  %v2151 = vadd.f32 0.0, %v2150
  %v2152 = vpop.f32.mrb[0].mxu0
  %2153 = vmatprep.mubr.f32.mxu0 %v2000
  %2154 = vmatmul.mubr.f32.gmra.mrb[0].mxu0 %v1918
  %v2155 = vpop.f32.mrb[0].mxu0
  %v2156 = vadd.f32 0.0, %v2155
  %v2157 = vpop.f32.mrb[0].mxu0
  %2158 = vmatprep.mubr.f32.mxu0 %v2003
  %2159 = vmatmul.mubr.f32.gmra.mrb[0].mxu0 %v1920
  %v2160 = vpop.f32.mrb[0].mxu0
  %v2161 = vadd.f32 0.0, %v2160
  %v2162 = vpop.f32.mrb[0].mxu0
  %2163 = vmatprep.mubr.f32.mxu0 %v2006
  %2164 = vmatmul.mubr.f32.gmra.mrb[0].mxu0 %v1922
  %v2165 = vpop.f32.mrb[0].mxu0
  %v2166 = vadd.f32 0.0, %v2165
  %v2167 = vpop.f32.mrb[0].mxu0
  %2168 = vmatprep.mubr.f32.mxu0 %v2009
  %2169 = vmatmul.mubr.f32.gmra.mrb[0].mxu0 %v1924
  %v2170 = vpop.f32.mrb[0].mxu0
  %v2171 = vadd.f32 0.0, %v2170
  %v2172 = vpop.f32.mrb[0].mxu0
  %2173 = vmatprep.mubr.f32.mxu0 %v2012
  %2174 = vmatmul.mubr.f32.gmra.mrb[0].mxu0 %v1926
  %v2175 = vpop.f32.mrb[0].mxu0
  %v2176 = vadd.f32 0.0, %v2175
  %v2177 = vpop.f32.mrb[0].mxu0
  %2178 = vmatprep.mubr.f32.mxu0 %v2015
  %2179 = vmatmul.mubr.f32.gmra.mrb[0].mxu0 %v1928
  %v2180 = vpop.f32.mrb[0].mxu0
  %v2181 = vadd.f32 0.0, %v2180
  %v2182 = vpop.f32.mrb[0].mxu0
  %2183 = vmatprep.mubr.f32.mxu0 %v2018
  %2184 = vmatmul.mubr.f32.gmra.mrb[0].mxu0 %v1930
  %v2185 = vpop.f32.mrb[0].mxu0
  %v2186 = vadd.f32 0.0, %v2185
  %v2187 = vpop.f32.mrb[0].mxu0
  %2188 = vmatprep.mubr.f32.mxu0 %v2021
  %2189 = vmatmul.mubr.f32.gmra.mrb[0].mxu0 %v1932
  %v2190 = vpop.f32.mrb[0].mxu0
  %v2191 = vadd.f32 0.0, %v2190
  %v2192 = vpop.f32.mrb[0].mxu0
  %2193 = vmatprep.mubr.f32.mxu0 %v2024
  %2194 = vmatmul.mubr.f32.gmra.mrb[0].mxu0 %v1934
  %v2195 = vpop.f32.mrb[0].mxu0
  %v2196 = vadd.f32 0.0, %v2195
  %v2197 = vpop.f32.mrb[0].mxu0
  %2198 = vmatprep.mubr.f32.mxu0 %v2027
  %2199 = vmatmul.mubr.f32.gmra.mrb[0].mxu0 %v1936
  %v2200 = vpop.f32.mrb[0].mxu0
  %v2201 = vadd.f32 0.0, %v2200
  %v2202 = vpop.f32.mrb[0].mxu0
  %2203 = vmatprep.mubr.f32.mxu0 %v2030
  %2204 = vmatmul.mubr.f32.gmra.mrb[0].mxu0 %v1938
  %v2205 = vpop.f32.mrb[0].mxu0
  %v2206 = vadd.f32 0.0, %v2205
  %v2207 = vpop.f32.mrb[0].mxu0
  %2208 = vmatprep.mubr.f32.mxu0 %v2033
  %2209 = vmatmul.mubr.f32.gmra.mrb[0].mxu0 %v1940
  %v2210 = vpop.f32.mrb[0].mxu0
  %v2211 = vadd.f32 0.0, %v2210
  %v2212 = vpop.f32.mrb[0].mxu0
  %2213 = vmatprep.mubr.f32.mxu0 %v2036
  %2214 = vmatmul.mubr.f32.gmra.mrb[0].mxu0 %v1942
  %v2215 = vpop.f32.mrb[0].mxu0
  %v2216 = vadd.f32 0.0, %v2215
  %v2217 = vpop.f32.mrb[0].mxu0
  %2218 = vmatprep.mubr.f32.mxu0 %v2039
  %2219 = vmatmul.mubr.f32.gmra.mrb[0].mxu0 %v1944
  %v2220 = vpop.f32.mrb[0].mxu0
  %v2221 = vadd.f32 0.0, %v2220
  %v2222 = vpop.f32.mrb[0].mxu0
  %2223 = vmatprep.mubr.f32.mxu0 %v2042
  %2224 = vmatmul.mubr.f32.gmra.mrb[0].mxu0 %v1946
  %v2225 = vpop.f32.mrb[0].mxu0
  %v2226 = vadd.f32 0.0, %v2225
  %v2227 = vpop.f32.mrb[0].mxu0
  %2228 = vmatprep.mubr.f32.mxu0 %v2045
  %2229 = vmatmul.mubr.f32.gmra.mrb[0].mxu0 %v1948
  %v2230 = vpop.f32.mrb[0].mxu0
  %v2231 = vadd.f32 0.0, %v2230
  %v2232 = vpop.f32.mrb[0].mxu0
  %2233 = vmatprep.mubr.f32.mxu0 %v2048
  %2234 = vmatmul.mubr.f32.gmra.mrb[0].mxu0 %v1950
  %v2235 = vpop.f32.mrb[0].mxu0
  %v2236 = vadd.f32 0.0, %v2235
  %v2237 = vpop.f32.mrb[0].mxu0
  %2238 = vmatprep.mubr.f32.mxu0 %v2051
  %2239 = vmatmul.mubr.f32.gmra.mrb[0].mxu0 %v1952
  %v2240 = vpop.f32.mrb[0].mxu0
  %v2241 = vadd.f32 0.0, %v2240
  %v2242 = vpop.f32.mrb[0].mxu0
  %2243 = vmatprep.mubr.f32.mxu0 %v2054
  %2244 = vmatmul.mubr.f32.gmra.mrb[0].mxu0 %v1954
  %v2245 = vpop.f32.mrb[0].mxu0
  %v2246 = vadd.f32 0.0, %v2245
  %v2247 = vpop.f32.mrb[0].mxu0
  %2248 = vmatprep.mubr.f32.mxu0 %v2057
  %2249 = vmatmul.mubr.f32.gmra.mrb[0].mxu0 %v1956
  %v2250 = vpop.f32.mrb[0].mxu0
  %v2251 = vadd.f32 0.0, %v2250
  %v2252 = vpop.f32.mrb[0].mxu0
  %2253 = vmatprep.mubr.f32.mxu0 %v2060
  %2254 = vmatmul.mubr.f32.gmra.mrb[0].mxu0 %v1958
  %v2255 = vpop.f32.mrb[0].mxu0
  %v2256 = vadd.f32 0.0, %v2255
  %v2257 = vpop.f32.mrb[0].mxu0
  %2258 = vmatprep.mubr.f32.mxu0 %v2063
  %2259 = vmatmul.mubr.f32.gmra.mrb[0].mxu0 %v1960
  %v2260 = vpop.f32.mrb[0].mxu0
  %v2261 = vadd.f32 0.0, %v2260
  %v2262 = vpop.f32.mrb[0].mxu0
  %2263 = vmatprep.mubr.f32.mxu0 %v2066
  %2264 = vmatmul.mubr.f32.gmra.mrb[0].mxu0 %v1962
  %v2265 = vpop.f32.mrb[0].mxu0
  %v2266 = vadd.f32 0.0, %v2265
  %v2267 = vpop.f32.mrb[0].mxu0
  %2268 = vmatprep.mubr.f32.mxu0 %v2069
  %2269 = vmatmul.mubr.f32.gmra.mrb[0].mxu0 %v1964
  %v2270 = vpop.f32.mrb[0].mxu0
  %v2271 = vadd.f32 0.0, %v2270
  %v2272 = vpop.f32.mrb[0].mxu0
  %2273 = vmatprep.mubr.f32.mxu0 %v2072
  %2274 = vmatmul.mubr.f32.gmra.mrb[0].mxu0 %v1966
  %v2275 = vpop.f32.mrb[0].mxu0
  %v2276 = vadd.f32 0.0, %v2275
  %v2277 = vpop.f32.mrb[0].mxu0
  %2278 = vdwg.mxu0
  %v2279 = vld [vmem:[%s4] sm:$0xff]
  %v2280 = vld [vmem:[%s4 + $0x8] sm:$0xff]
  %v2281 = vld [vmem:[%s4 + $0x10] sm:$0xff]
  %v2282 = vld [vmem:[%s4 + $0x18] sm:$0xff]
  %v2283 = vld [vmem:[%s4 + $0x20] sm:$0xff]
  %v2284 = vld [vmem:[%s4 + $0x28] sm:$0xff]
  %v2285 = vld [vmem:[%s4 + $0x30] sm:$0xff]
  %v2286 = vld [vmem:[%s4 + $0x38] sm:$0xff]
  %v2287 = vld [vmem:[%s4 + $0x40] sm:$0xff]
  %v2288 = vld [vmem:[%s4 + $0x48] sm:$0xff]
  %v2289 = vld [vmem:[%s4 + $0x50] sm:$0xff]
  %v2290 = vld [vmem:[%s4 + $0x58] sm:$0xff]
  %v2291 = vld [vmem:[%s4 + $0x60] sm:$0xff]
  %v2292 = vld [vmem:[%s4 + $0x68] sm:$0xff]
  %v2293 = vld [vmem:[%s4 + $0x70] sm:$0xff]
  %v2294 = vld [vmem:[%s4 + $0x78] sm:$0xff]
  %v2295 = vld [vmem:[%s4 + $0x80] sm:$0xff]
  %v2296 = vld [vmem:[%s4 + $0x88] sm:$0xff]
  %v2297 = vld [vmem:[%s4 + $0x90] sm:$0xff]
  %v2298 = vld [vmem:[%s4 + $0x98] sm:$0xff]
  %v2299 = vld [vmem:[%s4 + $0xa0] sm:$0xff]
  %2300 = vmatprep.subr.mxu0 0.0
  %2301 = vmatpush1.msra.mxu0 %v2279
  %2302 = vmatprep.subr.mxu0 0.0
  %2303 = vmatpush1.msra.mxu0 %v2280
  %2304 = vmatprep.subr.mxu0 0.0
  %2305 = vmatpush1.msra.mxu0 %v2281
  %2306 = vmatprep.subr.mxu0 0.0
  %2307 = vmatpush1.msra.mxu0 %v2282
  %2308 = vmatprep.subr.mxu0 0.0
  %2309 = vmatpush1.msra.mxu0 %v2283
  %2310 = vmatprep.subr.mxu0 0.0
  %2311 = vmatpush1.msra.mxu0 %v2284
  %2312 = vmatprep.subr.mxu0 0.0
  %2313 = vmatpush1.msra.mxu0 %v2285
  %2314 = vmatprep.subr.mxu0 0.0
  %2315 = vmatpush1.msra.mxu0 %v2286
  %2316 = vmatprep.subr.mxu0 0.0
  %2317 = vmatpush1.msra.mxu0 %v2287
  %2318 = vmatprep.subr.mxu0 0.0
  %2319 = vmatpush1.msra.mxu0 %v2288
  %2320 = vmatprep.subr.mxu0 0.0
  %2321 = vmatpush1.msra.mxu0 %v2289
  %2322 = vmatprep.subr.mxu0 0.0
  %2323 = vmatpush1.msra.mxu0 %v2290
  %2324 = vmatprep.subr.mxu0 0.0
  %2325 = vmatpush1.msra.mxu0 %v2291
  %2326 = vmatprep.subr.mxu0 0.0
  %2327 = vmatpush1.msra.mxu0 %v2292
  %2328 = vmatprep.subr.mxu0 0.0
  %2329 = vmatpush1.msra.mxu0 %v2293
  %2330 = vmatprep.subr.mxu0 0.0
  %2331 = vmatpush1.msra.mxu0 %v2294
  %2332 = vmatprep.subr.mxu0 0.0
  %2333 = vmatpush1.msra.mxu0 %v2295
  %2334 = vmatprep.subr.mxu0 0.0
  %2335 = vmatpush1.msra.mxu0 %v2296
  %2336 = vmatprep.subr.mxu0 0.0
  %2337 = vmatpush1.msra.mxu0 %v2297
  %2338 = vmatprep.subr.mxu0 0.0
  %2339 = vmatpush1.msra.mxu0 %v2298
  %2340 = vmatprep.subr.mxu0 0.0
  %2341 = vmatpush1.msra.mxu0 %v2299
  %2342 = vmatprep.subr.mxu0 0.0
  %2343 = vmatpush1.msra.mxu0 0.0
  %2344 = vmatprep.subr.mxu0 0.0
  %2345 = vmatpush1.msra.mxu0 0.0
  %2346 = vmatprep.subr.mxu0 0.0
  %2347 = vmatpush1.msra.mxu0 0.0
  %2348 = vmatprep.subr.mxu0 0.0
  %2349 = vmatpush1.msra.mxu0 0.0
  %2350 = vmatprep.subr.mxu0 0.0
  %2351 = vmatpush1.msra.mxu0 0.0
  %2352 = vmatprep.subr.mxu0 0.0
  %2353 = vmatpush1.msra.mxu0 0.0
  %2354 = vmatprep.subr.mxu0 0.0
  %2355 = vmatpush1.msra.mxu0 0.0
  %2356 = vmatprep.subr.mxu0 0.0
  %2357 = vmatpush1.msra.mxu0 0.0
  %2358 = vmatprep.subr.mxu0 0.0
  %2359 = vmatpush1.msra.mxu0 0.0
  %2360 = vmatprep.subr.mxu0 0.0
  %2361 = vmatpush1.msra.mxu0 0.0
  %2362 = vmatprep.subr.mxu0 0.0
  %2363 = vmatpush1.msra.mxu0 0.0
  %2364 = vmatprep.mubr.f32.mxu0 %v1991
  %2365 = vmatmul.mubr.f32.gmra.mrb[0].mxu0 %v1912
  %v2366 = vpop.f32.mrb[0].mxu0
  %v2367 = vadd.f32 0.0, %v2366
  %v2368 = vpop.f32.mrb[0].mxu0
  %2369 = vmatprep.mubr.f32.mxu0 %v1994
  %2370 = vmatmul.mubr.f32.gmra.mrb[0].mxu0 %v1914
  %v2371 = vpop.f32.mrb[0].mxu0
  %v2372 = vadd.f32 0.0, %v2371
  %v2373 = vpop.f32.mrb[0].mxu0
  %2374 = vmatprep.mubr.f32.mxu0 %v1997
  %2375 = vmatmul.mubr.f32.gmra.mrb[0].mxu0 %v1916
  %v2376 = vpop.f32.mrb[0].mxu0
  %v2377 = vadd.f32 0.0, %v2376
  %v2378 = vpop.f32.mrb[0].mxu0
  %2379 = vmatprep.mubr.f32.mxu0 %v2000
  %2380 = vmatmul.mubr.f32.gmra.mrb[0].mxu0 %v1918
  %v2381 = vpop.f32.mrb[0].mxu0
  %v2382 = vadd.f32 0.0, %v2381
  %v2383 = vpop.f32.mrb[0].mxu0
  %2384 = vmatprep.mubr.f32.mxu0 %v2003
  %2385 = vmatmul.mubr.f32.gmra.mrb[0].mxu0 %v1920
  %v2386 = vpop.f32.mrb[0].mxu0
  %v2387 = vadd.f32 0.0, %v2386
  %v2388 = vpop.f32.mrb[0].mxu0
  %2389 = vmatprep.mubr.f32.mxu0 %v2006
  %2390 = vmatmul.mubr.f32.gmra.mrb[0].mxu0 %v1922
  %v2391 = vpop.f32.mrb[0].mxu0
  %v2392 = vadd.f32 0.0, %v2391
  %v2393 = vpop.f32.mrb[0].mxu0
  %2394 = vmatprep.mubr.f32.mxu0 %v2009
  %2395 = vmatmul.mubr.f32.gmra.mrb[0].mxu0 %v1924
  %v2396 = vpop.f32.mrb[0].mxu0
  %v2397 = vadd.f32 0.0, %v2396
  %v2398 = vpop.f32.mrb[0].mxu0
  %2399 = vmatprep.mubr.f32.mxu0 %v2012
  %2400 = vmatmul.mubr.f32.gmra.mrb[0].mxu0 %v1926
  %v2401 = vpop.f32.mrb[0].mxu0
  %v2402 = vadd.f32 0.0, %v2401
  %v2403 = vpop.f32.mrb[0].mxu0
  %2404 = vmatprep.mubr.f32.mxu0 %v2015
  %2405 = vmatmul.mubr.f32.gmra.mrb[0].mxu0 %v1928
  %v2406 = vpop.f32.mrb[0].mxu0
  %v2407 = vadd.f32 0.0, %v2406
  %v2408 = vpop.f32.mrb[0].mxu0
  %2409 = vmatprep.mubr.f32.mxu0 %v2018
  %2410 = vmatmul.mubr.f32.gmra.mrb[0].mxu0 %v1930
  %v2411 = vpop.f32.mrb[0].mxu0
  %v2412 = vadd.f32 0.0, %v2411
  %v2413 = vpop.f32.mrb[0].mxu0
  %2414 = vmatprep.mubr.f32.mxu0 %v2021
  %2415 = vmatmul.mubr.f32.gmra.mrb[0].mxu0 %v1932
  %v2416 = vpop.f32.mrb[0].mxu0
  %v2417 = vadd.f32 0.0, %v2416
  %v2418 = vpop.f32.mrb[0].mxu0
  %2419 = vmatprep.mubr.f32.mxu0 %v2024
  %2420 = vmatmul.mubr.f32.gmra.mrb[0].mxu0 %v1934
  %v2421 = vpop.f32.mrb[0].mxu0
  %v2422 = vadd.f32 0.0, %v2421
  %v2423 = vpop.f32.mrb[0].mxu0
  %2424 = vmatprep.mubr.f32.mxu0 %v2027
  %2425 = vmatmul.mubr.f32.gmra.mrb[0].mxu0 %v1936
  %v2426 = vpop.f32.mrb[0].mxu0
  %v2427 = vadd.f32 0.0, %v2426
  %v2428 = vpop.f32.mrb[0].mxu0
  %2429 = vmatprep.mubr.f32.mxu0 %v2030
  %2430 = vmatmul.mubr.f32.gmra.mrb[0].mxu0 %v1938
  %v2431 = vpop.f32.mrb[0].mxu0
  %v2432 = vadd.f32 0.0, %v2431
  %v2433 = vpop.f32.mrb[0].mxu0
  %2434 = vmatprep.mubr.f32.mxu0 %v2033
  %2435 = vmatmul.mubr.f32.gmra.mrb[0].mxu0 %v1940
  %v2436 = vpop.f32.mrb[0].mxu0
  %v2437 = vadd.f32 0.0, %v2436
  %v2438 = vpop.f32.mrb[0].mxu0
  %2439 = vmatprep.mubr.f32.mxu0 %v2036
  %2440 = vmatmul.mubr.f32.gmra.mrb[0].mxu0 %v1942
  %v2441 = vpop.f32.mrb[0].mxu0
  %v2442 = vadd.f32 0.0, %v2441
  %v2443 = vpop.f32.mrb[0].mxu0
  %2444 = vmatprep.mubr.f32.mxu0 %v2039
  %2445 = vmatmul.mubr.f32.gmra.mrb[0].mxu0 %v1944
  %v2446 = vpop.f32.mrb[0].mxu0
  %v2447 = vadd.f32 0.0, %v2446
  %v2448 = vpop.f32.mrb[0].mxu0
  %2449 = vmatprep.mubr.f32.mxu0 %v2042
  %2450 = vmatmul.mubr.f32.gmra.mrb[0].mxu0 %v1946
  %v2451 = vpop.f32.mrb[0].mxu0
  %v2452 = vadd.f32 0.0, %v2451
  %v2453 = vpop.f32.mrb[0].mxu0
  %2454 = vmatprep.mubr.f32.mxu0 %v2045
  %2455 = vmatmul.mubr.f32.gmra.mrb[0].mxu0 %v1948
  %v2456 = vpop.f32.mrb[0].mxu0
  %v2457 = vadd.f32 0.0, %v2456
  %v2458 = vpop.f32.mrb[0].mxu0
  %2459 = vmatprep.mubr.f32.mxu0 %v2048
  %2460 = vmatmul.mubr.f32.gmra.mrb[0].mxu0 %v1950
  %v2461 = vpop.f32.mrb[0].mxu0
  %v2462 = vadd.f32 0.0, %v2461
  %v2463 = vpop.f32.mrb[0].mxu0
  %2464 = vmatprep.mubr.f32.mxu0 %v2051
  %2465 = vmatmul.mubr.f32.gmra.mrb[0].mxu0 %v1952
  %v2466 = vpop.f32.mrb[0].mxu0
  %v2467 = vadd.f32 0.0, %v2466
  %v2468 = vpop.f32.mrb[0].mxu0
  %2469 = vmatprep.mubr.f32.mxu0 %v2054
  %2470 = vmatmul.mubr.f32.gmra.mrb[0].mxu0 %v1954
  %v2471 = vpop.f32.mrb[0].mxu0
  %v2472 = vadd.f32 0.0, %v2471
  %v2473 = vpop.f32.mrb[0].mxu0
  %2474 = vmatprep.mubr.f32.mxu0 %v2057
  %2475 = vmatmul.mubr.f32.gmra.mrb[0].mxu0 %v1956
  %v2476 = vpop.f32.mrb[0].mxu0
  %v2477 = vadd.f32 0.0, %v2476
  %v2478 = vpop.f32.mrb[0].mxu0
  %2479 = vmatprep.mubr.f32.mxu0 %v2060
  %2480 = vmatmul.mubr.f32.gmra.mrb[0].mxu0 %v1958
  %v2481 = vpop.f32.mrb[0].mxu0
  %v2482 = vadd.f32 0.0, %v2481
  %v2483 = vpop.f32.mrb[0].mxu0
  %2484 = vmatprep.mubr.f32.mxu0 %v2063
  %2485 = vmatmul.mubr.f32.gmra.mrb[0].mxu0 %v1960
  %v2486 = vpop.f32.mrb[0].mxu0
  %v2487 = vadd.f32 0.0, %v2486
  %v2488 = vpop.f32.mrb[0].mxu0
  %2489 = vmatprep.mubr.f32.mxu0 %v2066
  %2490 = vmatmul.mubr.f32.gmra.mrb[0].mxu0 %v1962
  %v2491 = vpop.f32.mrb[0].mxu0
  %v2492 = vadd.f32 0.0, %v2491
  %v2493 = vpop.f32.mrb[0].mxu0
  %2494 = vmatprep.mubr.f32.mxu0 %v2069
  %2495 = vmatmul.mubr.f32.gmra.mrb[0].mxu0 %v1964
  %v2496 = vpop.f32.mrb[0].mxu0
  %v2497 = vadd.f32 0.0, %v2496
  %v2498 = vpop.f32.mrb[0].mxu0
  %2499 = vmatprep.mubr.f32.mxu0 %v2072
  %2500 = vmatmul.mubr.f32.gmra.mrb[0].mxu0 %v1966
  %v2501 = vpop.f32.mrb[0].mxu0
  %v2502 = vadd.f32 0.0, %v2501
  %v2503 = vpop.f32.mrb[0].mxu0
  %2504 = vdwg.mxu0
  %v2505 = vmax.f32 %v2141, %v2367
  %v2506 = vmax.f32 %v2146, %v2372
  %v2507 = vmax.f32 %v2151, %v2377
  %v2508 = vmax.f32 %v2156, %v2382
  %v2509 = vmax.f32 %v2161, %v2387
  %v2510 = vmax.f32 %v2166, %v2392
  %v2511 = vmax.f32 %v2171, %v2397
  %v2512 = vmax.f32 %v2176, %v2402
  %v2513 = vmax.f32 %v2181, %v2407
  %v2514 = vmax.f32 %v2186, %v2412
  %v2515 = vmax.f32 %v2191, %v2417
  %v2516 = vmax.f32 %v2196, %v2422
  %v2517 = vmax.f32 %v2201, %v2427
  %v2518 = vmax.f32 %v2206, %v2432
  %v2519 = vmax.f32 %v2211, %v2437
  %v2520 = vmax.f32 %v2216, %v2442
  %v2521 = vmax.f32 %v2221, %v2447
  %v2522 = vmax.f32 %v2226, %v2452
  %v2523 = vmax.f32 %v2231, %v2457
  %v2524 = vmax.f32 %v2236, %v2462
  %v2525 = vmax.f32 %v2241, %v2467
  %v2526 = vmax.f32 %v2246, %v2472
  %v2527 = vmax.f32 %v2251, %v2477
  %v2528 = vmax.f32 %v2256, %v2482
  %v2529 = vmax.f32 %v2261, %v2487
  %v2530 = vmax.f32 %v2266, %v2492
  %v2531 = vmax.f32 %v2271, %v2497
  %v2532 = vmax.f32 %v2276, %v2502
  %v2533 = vld [vmem:[%s5] sm:$0xff]
  %v2534 = vld [vmem:[%s5 + $0x8] sm:$0xff]
  %v2535 = vld [vmem:[%s5 + $0x10] sm:$0xff]
  %v2536 = vld [vmem:[%s5 + $0x18] sm:$0xff]
  %v2537 = vld [vmem:[%s5 + $0x20] sm:$0xff]
  %v2538 = vld [vmem:[%s5 + $0x28] sm:$0xff]
  %v2539 = vld [vmem:[%s5 + $0x30] sm:$0xff]
  %v2540 = vld [vmem:[%s5 + $0x38] sm:$0xff]
  %v2541 = vld [vmem:[%s5 + $0x40] sm:$0xff]
  %v2542 = vld [vmem:[%s5 + $0x48] sm:$0xff]
  %v2543 = vld [vmem:[%s5 + $0x50] sm:$0xff]
  %v2544 = vld [vmem:[%s5 + $0x58] sm:$0xff]
  %v2545 = vld [vmem:[%s5 + $0x60] sm:$0xff]
  %v2546 = vld [vmem:[%s5 + $0x68] sm:$0xff]
  %v2547 = vld [vmem:[%s5 + $0x70] sm:$0xff]
  %v2548 = vld [vmem:[%s5 + $0x78] sm:$0xff]
  %v2549 = vld [vmem:[%s5 + $0x80] sm:$0xff]
  %v2550 = vld [vmem:[%s5 + $0x88] sm:$0xff]
  %v2551 = vld [vmem:[%s5 + $0x90] sm:$0xff]
  %v2552 = vld [vmem:[%s5 + $0x98] sm:$0xff]
  %v2553 = vld [vmem:[%s5 + $0xa0] sm:$0xf]
  %v2554 = vld [vmem:[%s5 + $0xa8] sm:$0xf]
  %s2555 = scalar_lea.vmem %s5, 176
  %v2556 = vld [vmem:[%s2555] sm:$0xff]
  %v2557 = vld [vmem:[%s2555 + $0x8] sm:$0xff]
  %v2558 = vld [vmem:[%s2555 + $0x10] sm:$0xff]
  %v2559 = vld [vmem:[%s2555 + $0x18] sm:$0xff]
  %v2560 = vld [vmem:[%s2555 + $0x20] sm:$0xff]
  %v2561 = vld [vmem:[%s2555 + $0x28] sm:$0xff]
  %v2562 = vld [vmem:[%s2555 + $0x30] sm:$0xff]
  %v2563 = vld [vmem:[%s2555 + $0x38] sm:$0xff]
  %v2564 = vld [vmem:[%s2555 + $0x40] sm:$0xff]
  %v2565 = vld [vmem:[%s2555 + $0x48] sm:$0xff]
  %v2566 = vld [vmem:[%s2555 + $0x50] sm:$0xff]
  %v2567 = vld [vmem:[%s2555 + $0x58] sm:$0xff]
  %v2568 = vld [vmem:[%s2555 + $0x60] sm:$0xff]
  %v2569 = vld [vmem:[%s2555 + $0x68] sm:$0xff]
  %v2570 = vld [vmem:[%s2555 + $0x70] sm:$0xff]
  %v2571 = vld [vmem:[%s2555 + $0x78] sm:$0xff]
  %v2572 = vld [vmem:[%s2555 + $0x80] sm:$0xff]
  %v2573 = vld [vmem:[%s2555 + $0x88] sm:$0xff]
  %v2574 = vld [vmem:[%s2555 + $0x90] sm:$0xff]
  %v2575 = vld [vmem:[%s2555 + $0x98] sm:$0xff]
  %v2576 = vld [vmem:[%s2555 + $0xa0] sm:$0xf]
  %v2577 = vld [vmem:[%s2555 + $0xa8] sm:$0xf]
  %vm2578 = vcmask 687104
  %v2580 = vsel %vm2578, %v2507, 0
  %v2583 = vsel %vm2578, %v2508, 0
  %v2586 = vsel %vm2578, %v2509, 0
  %v2589 = vsel %vm2578, %v2510, 0
  %v2592 = vsel %vm2578, %v2511, 0
  %v2595 = vsel %vm2578, %v2512, 0
  %v2598 = vsel %vm2578, %v2513, 0
  %v2601 = vsel %vm2578, %v2514, 0
  %v2604 = vsel %vm2578, %v2515, 0
  %v2607 = vsel %vm2578, %v2516, 0
  %v2610 = vsel %vm2578, %v2517, 0
  %v2613 = vsel %vm2578, %v2518, 0
  %v2616 = vsel %vm2578, %v2519, 0
  %v2619 = vsel %vm2578, %v2520, 0
  %v2622 = vsel %vm2578, %v2521, 0
  %v2625 = vsel %vm2578, %v2522, 0
  %v2628 = vsel %vm2578, %v2523, 0
  %v2631 = vsel %vm2578, %v2524, 0
  %v2634 = vsel %vm2578, %v2525, 0
  %v2637 = vsel %vm2578, %v2526, 0
  %vm2639 = vcmask 1043456
  %v2641 = vsel %vm2639, %v2576, 0
  %v2644 = vsel %vm2639, %v2577, 0
  %2646 = vmatprep.subr.mxu0 %v2557
  %2647 = vmatpush1.msra.mxu0 %v2556
  %2648 = vmatprep.subr.mxu0 %v2559
  %2649 = vmatpush1.msra.mxu0 %v2558
  %2650 = vmatprep.subr.mxu0 %v2561
  %2651 = vmatpush1.msra.mxu0 %v2560
  %2652 = vmatprep.subr.mxu0 %v2563
  %2653 = vmatpush1.msra.mxu0 %v2562
  %2654 = vmatprep.subr.mxu0 %v2565
  %2655 = vmatpush1.msra.mxu0 %v2564
  %2656 = vmatprep.subr.mxu0 %v2567
  %2657 = vmatpush1.msra.mxu0 %v2566
  %2658 = vmatprep.subr.mxu0 %v2569
  %2659 = vmatpush1.msra.mxu0 %v2568
  %2660 = vmatprep.subr.mxu0 %v2571
  %2661 = vmatpush1.msra.mxu0 %v2570
  %2662 = vmatprep.subr.mxu0 %v2573
  %2663 = vmatpush1.msra.mxu0 %v2572
  %2664 = vmatprep.subr.mxu0 %v2575
  %2665 = vmatpush1.msra.mxu0 %v2574
  %2666 = vmatprep.subr.mxu0 %v2644
  %2667 = vmatpush1.msra.mxu0 %v2641
  %2668 = vmatprep.subr.mxu0 0.0
  %2669 = vmatpush1.msra.mxu0 0.0
  %2670 = vmatprep.subr.mxu0 0.0
  %2671 = vmatpush1.msra.mxu0 0.0
  %2672 = vmatprep.subr.mxu0 0.0
  %2673 = vmatpush1.msra.mxu0 0.0
  %2674 = vmatprep.subr.mxu0 0.0
  %2675 = vmatpush1.msra.mxu0 0.0
  %2676 = vmatprep.subr.mxu0 0.0
  %2677 = vmatpush1.msra.mxu0 0.0
  %2678 = vmatprep.subr.mxu0 0.0
  %2679 = vmatpush1.msra.mxu0 0.0
  %2680 = vmatprep.subr.mxu0 0.0
  %2681 = vmatpush1.msra.mxu0 0.0
  %2682 = vmatprep.subr.mxu0 0.0
  %2683 = vmatpush1.msra.mxu0 0.0
  %2684 = vmatprep.subr.mxu0 0.0
  %2685 = vmatpush1.msra.mxu0 0.0
  %2686 = vmatprep.subr.mxu0 0.0
  %2687 = vmatpush1.msra.mxu0 0.0
  %2688 = vmatprep.subr.mxu0 0.0
  %2689 = vmatpush1.msra.mxu0 0.0
  %2690 = vmatprep.subr.mxu0 0.0
  %2691 = vmatpush1.msra.mxu0 0.0
  %2692 = vmatprep.subr.mxu0 0.0
  %2693 = vmatpush1.msra.mxu0 0.0
  %2694 = vmatprep.subr.mxu0 0.0
  %2695 = vmatpush1.msra.mxu0 0.0
  %2696 = vmatprep.subr.mxu0 0.0
  %2697 = vmatpush1.msra.mxu0 0.0
  %2698 = vmatprep.subr.mxu0 0.0
  %2699 = vmatpush1.msra.mxu0 0.0
  %2700 = vmatprep.subr.mxu0 0.0
  %2701 = vmatpush1.msra.mxu0 0.0
  %2702 = vmatprep.subr.mxu0 0.0
  %2703 = vmatpush1.msra.mxu0 0.0
  %2704 = vmatprep.subr.mxu0 0.0
  %2705 = vmatpush1.msra.mxu0 0.0
  %2706 = vmatprep.subr.mxu0 0.0
  %2707 = vmatpush1.msra.mxu0 0.0
  %2708 = vmatprep.subr.mxu0 0.0
  %2709 = vmatpush1.msra.mxu0 0.0
  %2710 = vmatprep.mubr.f32.mxu0 0.0
  %2711 = vmatmul.mubr.f32.gmra.mrb[0].mxu0 %v2580
  %v2712 = vpop.f32.mrb[0].mxu0
  %v2713 = vadd.f32 0.0, %v2712
  %v2714 = vpop.f32.mrb[0].mxu0
  %v2715 = vadd.f32 0.0, %v2714
  %2716 = vmatprep.mubr.f32.mxu0 0.0
  %2717 = vmatmul.mubr.f32.gmra.mrb[0].mxu0 %v2583
  %v2718 = vpop.f32.mrb[0].mxu0
  %v2719 = vadd.f32 0.0, %v2718
  %v2720 = vpop.f32.mrb[0].mxu0
  %v2721 = vadd.f32 0.0, %v2720
  %2722 = vmatprep.mubr.f32.mxu0 0.0
  %2723 = vmatmul.mubr.f32.gmra.mrb[0].mxu0 %v2586
  %v2724 = vpop.f32.mrb[0].mxu0
  %v2725 = vadd.f32 0.0, %v2724
  %v2726 = vpop.f32.mrb[0].mxu0
  %v2727 = vadd.f32 0.0, %v2726
  %2728 = vmatprep.mubr.f32.mxu0 0.0
  %2729 = vmatmul.mubr.f32.gmra.mrb[0].mxu0 %v2589
  %v2730 = vpop.f32.mrb[0].mxu0
  %v2731 = vadd.f32 0.0, %v2730
  %v2732 = vpop.f32.mrb[0].mxu0
  %v2733 = vadd.f32 0.0, %v2732
  %2734 = vmatprep.mubr.f32.mxu0 0.0
  %2735 = vmatmul.mubr.f32.gmra.mrb[0].mxu0 %v2592
  %v2736 = vpop.f32.mrb[0].mxu0
  %v2737 = vadd.f32 0.0, %v2736
  %v2738 = vpop.f32.mrb[0].mxu0
  %v2739 = vadd.f32 0.0, %v2738
  %2740 = vmatprep.mubr.f32.mxu0 0.0
  %2741 = vmatmul.mubr.f32.gmra.mrb[0].mxu0 %v2595
  %v2742 = vpop.f32.mrb[0].mxu0
  %v2743 = vadd.f32 0.0, %v2742
  %v2744 = vpop.f32.mrb[0].mxu0
  %v2745 = vadd.f32 0.0, %v2744
  %2746 = vmatprep.mubr.f32.mxu0 0.0
  %2747 = vmatmul.mubr.f32.gmra.mrb[0].mxu0 %v2598
  %v2748 = vpop.f32.mrb[0].mxu0
  %v2749 = vadd.f32 0.0, %v2748
  %v2750 = vpop.f32.mrb[0].mxu0
  %v2751 = vadd.f32 0.0, %v2750
  %2752 = vmatprep.mubr.f32.mxu0 0.0
  %2753 = vmatmul.mubr.f32.gmra.mrb[0].mxu0 %v2601
  %v2754 = vpop.f32.mrb[0].mxu0
  %v2755 = vadd.f32 0.0, %v2754
  %v2756 = vpop.f32.mrb[0].mxu0
  %v2757 = vadd.f32 0.0, %v2756
  %2758 = vmatprep.mubr.f32.mxu0 0.0
  %2759 = vmatmul.mubr.f32.gmra.mrb[0].mxu0 %v2604
  %v2760 = vpop.f32.mrb[0].mxu0
  %v2761 = vadd.f32 0.0, %v2760
  %v2762 = vpop.f32.mrb[0].mxu0
  %v2763 = vadd.f32 0.0, %v2762
  %2764 = vmatprep.mubr.f32.mxu0 0.0
  %2765 = vmatmul.mubr.f32.gmra.mrb[0].mxu0 %v2607
  %v2766 = vpop.f32.mrb[0].mxu0
  %v2767 = vadd.f32 0.0, %v2766
  %v2768 = vpop.f32.mrb[0].mxu0
  %v2769 = vadd.f32 0.0, %v2768
  %2770 = vmatprep.mubr.f32.mxu0 0.0
  %2771 = vmatmul.mubr.f32.gmra.mrb[0].mxu0 %v2610
  %v2772 = vpop.f32.mrb[0].mxu0
  %v2773 = vadd.f32 0.0, %v2772
  %v2774 = vpop.f32.mrb[0].mxu0
  %v2775 = vadd.f32 0.0, %v2774
  %2776 = vmatprep.mubr.f32.mxu0 0.0
  %2777 = vmatmul.mubr.f32.gmra.mrb[0].mxu0 %v2613
  %v2778 = vpop.f32.mrb[0].mxu0
  %v2779 = vadd.f32 0.0, %v2778
  %v2780 = vpop.f32.mrb[0].mxu0
  %v2781 = vadd.f32 0.0, %v2780
  %2782 = vmatprep.mubr.f32.mxu0 0.0
  %2783 = vmatmul.mubr.f32.gmra.mrb[0].mxu0 %v2616
  %v2784 = vpop.f32.mrb[0].mxu0
  %v2785 = vadd.f32 0.0, %v2784
  %v2786 = vpop.f32.mrb[0].mxu0
  %v2787 = vadd.f32 0.0, %v2786
  %2788 = vmatprep.mubr.f32.mxu0 0.0
  %2789 = vmatmul.mubr.f32.gmra.mrb[0].mxu0 %v2619
  %v2790 = vpop.f32.mrb[0].mxu0
  %v2791 = vadd.f32 0.0, %v2790
  %v2792 = vpop.f32.mrb[0].mxu0
  %v2793 = vadd.f32 0.0, %v2792
  %2794 = vmatprep.mubr.f32.mxu0 0.0
  %2795 = vmatmul.mubr.f32.gmra.mrb[0].mxu0 %v2622
  %v2796 = vpop.f32.mrb[0].mxu0
  %v2797 = vadd.f32 0.0, %v2796
  %v2798 = vpop.f32.mrb[0].mxu0
  %v2799 = vadd.f32 0.0, %v2798
  %2800 = vmatprep.mubr.f32.mxu0 0.0
  %2801 = vmatmul.mubr.f32.gmra.mrb[0].mxu0 %v2625
  %v2802 = vpop.f32.mrb[0].mxu0
  %v2803 = vadd.f32 0.0, %v2802
  %v2804 = vpop.f32.mrb[0].mxu0
  %v2805 = vadd.f32 0.0, %v2804
  %2806 = vmatprep.mubr.f32.mxu0 0.0
  %2807 = vmatmul.mubr.f32.gmra.mrb[0].mxu0 %v2628
  %v2808 = vpop.f32.mrb[0].mxu0
  %v2809 = vadd.f32 0.0, %v2808
  %v2810 = vpop.f32.mrb[0].mxu0
  %v2811 = vadd.f32 0.0, %v2810
  %2812 = vmatprep.mubr.f32.mxu0 0.0
  %2813 = vmatmul.mubr.f32.gmra.mrb[0].mxu0 %v2631
  %v2814 = vpop.f32.mrb[0].mxu0
  %v2815 = vadd.f32 0.0, %v2814
  %v2816 = vpop.f32.mrb[0].mxu0
  %v2817 = vadd.f32 0.0, %v2816
  %2818 = vmatprep.mubr.f32.mxu0 0.0
  %2819 = vmatmul.mubr.f32.gmra.mrb[0].mxu0 %v2634
  %v2820 = vpop.f32.mrb[0].mxu0
  %v2821 = vadd.f32 0.0, %v2820
  %v2822 = vpop.f32.mrb[0].mxu0
  %v2823 = vadd.f32 0.0, %v2822
  %2824 = vmatprep.mubr.f32.mxu0 0.0
  %2825 = vmatmul.mubr.f32.gmra.mrb[0].mxu0 %v2637
  %v2826 = vpop.f32.mrb[0].mxu0
  %v2827 = vadd.f32 0.0, %v2826
  %v2828 = vpop.f32.mrb[0].mxu0
  %v2829 = vadd.f32 0.0, %v2828
  %2830 = vdwg.mxu0
  %s2831 = scalar_lea.vmem %s5, 352
  %v2832 = vld [vmem:[%s2831] sm:$0xff]
  %v2833 = vld [vmem:[%s2831 + $0x8] sm:$0xff]
  %v2834 = vld [vmem:[%s2831 + $0x10] sm:$0xff]
  %v2835 = vld [vmem:[%s2831 + $0x18] sm:$0xff]
  %v2836 = vld [vmem:[%s2831 + $0x20] sm:$0xff]
  %v2837 = vld [vmem:[%s2831 + $0x28] sm:$0xff]
  %v2838 = vld [vmem:[%s2831 + $0x30] sm:$0xff]
  %v2839 = vld [vmem:[%s2831 + $0x38] sm:$0xff]
  %v2840 = vld [vmem:[%s2831 + $0x40] sm:$0xff]
  %v2841 = vld [vmem:[%s2831 + $0x48] sm:$0xff]
  %v2842 = vld [vmem:[%s2831 + $0x50] sm:$0xff]
  %v2843 = vld [vmem:[%s2831 + $0x58] sm:$0xff]
  %v2844 = vld [vmem:[%s2831 + $0x60] sm:$0xff]
  %v2845 = vld [vmem:[%s2831 + $0x68] sm:$0xff]
  %v2846 = vld [vmem:[%s2831 + $0x70] sm:$0xff]
  %v2847 = vld [vmem:[%s2831 + $0x78] sm:$0xff]
  %v2848 = vld [vmem:[%s2831 + $0x80] sm:$0xff]
  %v2849 = vld [vmem:[%s2831 + $0x88] sm:$0xff]
  %v2850 = vld [vmem:[%s2831 + $0x90] sm:$0xff]
  %v2851 = vld [vmem:[%s2831 + $0x98] sm:$0xff]
  %v2852 = vld [vmem:[%s2831 + $0xa0] sm:$0xf]
  %v2853 = vld [vmem:[%s2831 + $0xa8] sm:$0xf]
  %s2854 = scalar_lea.vmem %s5, 528
  %v2855 = vld [vmem:[%s2854] sm:$0xff]
  %v2856 = vld [vmem:[%s2854 + $0x8] sm:$0xff]
  %v2857 = vld [vmem:[%s2854 + $0x10] sm:$0xff]
  %v2858 = vld [vmem:[%s2854 + $0x18] sm:$0xff]
  %v2859 = vld [vmem:[%s2854 + $0x20] sm:$0xff]
  %v2860 = vld [vmem:[%s2854 + $0x28] sm:$0xff]
  %v2861 = vld [vmem:[%s2854 + $0x30] sm:$0xff]
  %v2862 = vld [vmem:[%s2854 + $0x38] sm:$0xff]
  %v2863 = vld [vmem:[%s2854 + $0x40] sm:$0xff]
  %v2864 = vld [vmem:[%s2854 + $0x48] sm:$0xff]
  %v2865 = vld [vmem:[%s2854 + $0x50] sm:$0xff]
  %v2866 = vld [vmem:[%s2854 + $0x58] sm:$0xff]
  %v2867 = vld [vmem:[%s2854 + $0x60] sm:$0xff]
  %v2868 = vld [vmem:[%s2854 + $0x68] sm:$0xff]
  %v2869 = vld [vmem:[%s2854 + $0x70] sm:$0xff]
  %v2870 = vld [vmem:[%s2854 + $0x78] sm:$0xff]
  %v2871 = vld [vmem:[%s2854 + $0x80] sm:$0xff]
  %v2872 = vld [vmem:[%s2854 + $0x88] sm:$0xff]
  %v2873 = vld [vmem:[%s2854 + $0x90] sm:$0xff]
  %v2874 = vld [vmem:[%s2854 + $0x98] sm:$0xff]
  %v2875 = vld [vmem:[%s2854 + $0xa0] sm:$0xf]
  %v2876 = vld [vmem:[%s2854 + $0xa8] sm:$0xf]
  %v2878 = vsel %vm2578, %v2527, 0
  %v2881 = vsel %vm2578, %v2528, 0
  %v2884 = vsel %vm2578, %v2529, 0
  %v2887 = vsel %vm2578, %v2530, 0
  %v2890 = vsel %vm2639, %v2875, 0
  %v2893 = vsel %vm2639, %v2876, 0
  %2895 = vmatprep.subr.mxu0 %v2856
  %2896 = vmatpush1.msra.mxu0 %v2855
  %2897 = vmatprep.subr.mxu0 %v2858
  %2898 = vmatpush1.msra.mxu0 %v2857
  %2899 = vmatprep.subr.mxu0 %v2860
  %2900 = vmatpush1.msra.mxu0 %v2859
  %2901 = vmatprep.subr.mxu0 %v2862
  %2902 = vmatpush1.msra.mxu0 %v2861
  %2903 = vmatprep.subr.mxu0 %v2864
  %2904 = vmatpush1.msra.mxu0 %v2863
  %2905 = vmatprep.subr.mxu0 %v2866
  %2906 = vmatpush1.msra.mxu0 %v2865
  %2907 = vmatprep.subr.mxu0 %v2868
  %2908 = vmatpush1.msra.mxu0 %v2867
  %2909 = vmatprep.subr.mxu0 %v2870
  %2910 = vmatpush1.msra.mxu0 %v2869
  %2911 = vmatprep.subr.mxu0 %v2872
  %2912 = vmatpush1.msra.mxu0 %v2871
  %2913 = vmatprep.subr.mxu0 %v2874
  %2914 = vmatpush1.msra.mxu0 %v2873
  %2915 = vmatprep.subr.mxu0 %v2893
  %2916 = vmatpush1.msra.mxu0 %v2890
  %2917 = vmatprep.subr.mxu0 0.0
  %2918 = vmatpush1.msra.mxu0 0.0
  %2919 = vmatprep.subr.mxu0 0.0
  %2920 = vmatpush1.msra.mxu0 0.0
  %2921 = vmatprep.subr.mxu0 0.0
  %2922 = vmatpush1.msra.mxu0 0.0
  %2923 = vmatprep.subr.mxu0 0.0
  %2924 = vmatpush1.msra.mxu0 0.0
  %2925 = vmatprep.subr.mxu0 0.0
  %2926 = vmatpush1.msra.mxu0 0.0
  %2927 = vmatprep.subr.mxu0 0.0
  %2928 = vmatpush1.msra.mxu0 0.0
  %2929 = vmatprep.subr.mxu0 0.0
  %2930 = vmatpush1.msra.mxu0 0.0
  %2931 = vmatprep.subr.mxu0 0.0
  %2932 = vmatpush1.msra.mxu0 0.0
  %2933 = vmatprep.subr.mxu0 0.0
  %2934 = vmatpush1.msra.mxu0 0.0
  %2935 = vmatprep.subr.mxu0 0.0
  %2936 = vmatpush1.msra.mxu0 0.0
  %2937 = vmatprep.subr.mxu0 0.0
  %2938 = vmatpush1.msra.mxu0 0.0
  %2939 = vmatprep.subr.mxu0 0.0
  %2940 = vmatpush1.msra.mxu0 0.0
  %2941 = vmatprep.subr.mxu0 0.0
  %2942 = vmatpush1.msra.mxu0 0.0
  %2943 = vmatprep.subr.mxu0 0.0
  %2944 = vmatpush1.msra.mxu0 0.0
  %2945 = vmatprep.subr.mxu0 0.0
  %2946 = vmatpush1.msra.mxu0 0.0
  %2947 = vmatprep.subr.mxu0 0.0
  %2948 = vmatpush1.msra.mxu0 0.0
  %2949 = vmatprep.subr.mxu0 0.0
  %2950 = vmatpush1.msra.mxu0 0.0
  %2951 = vmatprep.subr.mxu0 0.0
  %2952 = vmatpush1.msra.mxu0 0.0
  %2953 = vmatprep.subr.mxu0 0.0
  %2954 = vmatpush1.msra.mxu0 0.0
  %2955 = vmatprep.subr.mxu0 0.0
  %2956 = vmatpush1.msra.mxu0 0.0
  %2957 = vmatprep.subr.mxu0 0.0
  %2958 = vmatpush1.msra.mxu0 0.0
  %2959 = vmatprep.mubr.f32.mxu0 0.0
  %2960 = vmatmul.mubr.f32.gmra.mrb[0].mxu0 %v2592
  %v2961 = vpop.f32.mrb[0].mxu0
  %v2962 = vadd.f32 0.0, %v2961
  %v2963 = vpop.f32.mrb[0].mxu0
  %v2964 = vadd.f32 0.0, %v2963
  %2965 = vmatprep.mubr.f32.mxu0 0.0
  %2966 = vmatmul.mubr.f32.gmra.mrb[0].mxu0 %v2595
  %v2967 = vpop.f32.mrb[0].mxu0
  %v2968 = vadd.f32 0.0, %v2967
  %v2969 = vpop.f32.mrb[0].mxu0
  %v2970 = vadd.f32 0.0, %v2969
  %2971 = vmatprep.mubr.f32.mxu0 0.0
  %2972 = vmatmul.mubr.f32.gmra.mrb[0].mxu0 %v2598
  %v2973 = vpop.f32.mrb[0].mxu0
  %v2974 = vadd.f32 0.0, %v2973
  %v2975 = vpop.f32.mrb[0].mxu0
  %v2976 = vadd.f32 0.0, %v2975
  %2977 = vmatprep.mubr.f32.mxu0 0.0
  %2978 = vmatmul.mubr.f32.gmra.mrb[0].mxu0 %v2601
  %v2979 = vpop.f32.mrb[0].mxu0
  %v2980 = vadd.f32 0.0, %v2979
  %v2981 = vpop.f32.mrb[0].mxu0
  %v2982 = vadd.f32 0.0, %v2981
  %2983 = vmatprep.mubr.f32.mxu0 0.0
  %2984 = vmatmul.mubr.f32.gmra.mrb[0].mxu0 %v2604
  %v2985 = vpop.f32.mrb[0].mxu0
  %v2986 = vadd.f32 0.0, %v2985
  %v2987 = vpop.f32.mrb[0].mxu0
  %v2988 = vadd.f32 0.0, %v2987
  %2989 = vmatprep.mubr.f32.mxu0 0.0
  %2990 = vmatmul.mubr.f32.gmra.mrb[0].mxu0 %v2607
  %v2991 = vpop.f32.mrb[0].mxu0
  %v2992 = vadd.f32 0.0, %v2991
  %v2993 = vpop.f32.mrb[0].mxu0
  %v2994 = vadd.f32 0.0, %v2993
  %2995 = vmatprep.mubr.f32.mxu0 0.0
  %2996 = vmatmul.mubr.f32.gmra.mrb[0].mxu0 %v2610
  %v2997 = vpop.f32.mrb[0].mxu0
  %v2998 = vadd.f32 0.0, %v2997
  %v2999 = vpop.f32.mrb[0].mxu0
  %v3000 = vadd.f32 0.0, %v2999
  %3001 = vmatprep.mubr.f32.mxu0 0.0
  %3002 = vmatmul.mubr.f32.gmra.mrb[0].mxu0 %v2613
  %v3003 = vpop.f32.mrb[0].mxu0
  %v3004 = vadd.f32 0.0, %v3003
  %v3005 = vpop.f32.mrb[0].mxu0
  %v3006 = vadd.f32 0.0, %v3005
  %3007 = vmatprep.mubr.f32.mxu0 0.0
  %3008 = vmatmul.mubr.f32.gmra.mrb[0].mxu0 %v2616
  %v3009 = vpop.f32.mrb[0].mxu0
  %v3010 = vadd.f32 0.0, %v3009
  %v3011 = vpop.f32.mrb[0].mxu0
  %v3012 = vadd.f32 0.0, %v3011
  %3013 = vmatprep.mubr.f32.mxu0 0.0
  %3014 = vmatmul.mubr.f32.gmra.mrb[0].mxu0 %v2619
  %v3015 = vpop.f32.mrb[0].mxu0
  %v3016 = vadd.f32 0.0, %v3015
  %v3017 = vpop.f32.mrb[0].mxu0
  %v3018 = vadd.f32 0.0, %v3017
  %3019 = vmatprep.mubr.f32.mxu0 0.0
  %3020 = vmatmul.mubr.f32.gmra.mrb[0].mxu0 %v2622
  %v3021 = vpop.f32.mrb[0].mxu0
  %v3022 = vadd.f32 0.0, %v3021
  %v3023 = vpop.f32.mrb[0].mxu0
  %v3024 = vadd.f32 0.0, %v3023
  %3025 = vmatprep.mubr.f32.mxu0 0.0
  %3026 = vmatmul.mubr.f32.gmra.mrb[0].mxu0 %v2625
  %v3027 = vpop.f32.mrb[0].mxu0
  %v3028 = vadd.f32 0.0, %v3027
  %v3029 = vpop.f32.mrb[0].mxu0
  %v3030 = vadd.f32 0.0, %v3029
  %3031 = vmatprep.mubr.f32.mxu0 0.0
  %3032 = vmatmul.mubr.f32.gmra.mrb[0].mxu0 %v2628
  %v3033 = vpop.f32.mrb[0].mxu0
  %v3034 = vadd.f32 0.0, %v3033
  %v3035 = vpop.f32.mrb[0].mxu0
  %v3036 = vadd.f32 0.0, %v3035
  %3037 = vmatprep.mubr.f32.mxu0 0.0
  %3038 = vmatmul.mubr.f32.gmra.mrb[0].mxu0 %v2631
  %v3039 = vpop.f32.mrb[0].mxu0
  %v3040 = vadd.f32 0.0, %v3039
  %v3041 = vpop.f32.mrb[0].mxu0
  %v3042 = vadd.f32 0.0, %v3041
  %3043 = vmatprep.mubr.f32.mxu0 0.0
  %3044 = vmatmul.mubr.f32.gmra.mrb[0].mxu0 %v2634
  %v3045 = vpop.f32.mrb[0].mxu0
  %v3046 = vadd.f32 0.0, %v3045
  %v3047 = vpop.f32.mrb[0].mxu0
  %v3048 = vadd.f32 0.0, %v3047
  %3049 = vmatprep.mubr.f32.mxu0 0.0
  %3050 = vmatmul.mubr.f32.gmra.mrb[0].mxu0 %v2637
  %v3051 = vpop.f32.mrb[0].mxu0
  %v3052 = vadd.f32 0.0, %v3051
  %v3053 = vpop.f32.mrb[0].mxu0
  %v3054 = vadd.f32 0.0, %v3053
  %3055 = vmatprep.mubr.f32.mxu0 0.0
  %3056 = vmatmul.mubr.f32.gmra.mrb[0].mxu0 %v2878
  %v3057 = vpop.f32.mrb[0].mxu0
  %v3058 = vadd.f32 0.0, %v3057
  %v3059 = vpop.f32.mrb[0].mxu0
  %v3060 = vadd.f32 0.0, %v3059
  %3061 = vmatprep.mubr.f32.mxu0 0.0
  %3062 = vmatmul.mubr.f32.gmra.mrb[0].mxu0 %v2881
  %v3063 = vpop.f32.mrb[0].mxu0
  %v3064 = vadd.f32 0.0, %v3063
  %v3065 = vpop.f32.mrb[0].mxu0
  %v3066 = vadd.f32 0.0, %v3065
  %3067 = vmatprep.mubr.f32.mxu0 0.0
  %3068 = vmatmul.mubr.f32.gmra.mrb[0].mxu0 %v2884
  %v3069 = vpop.f32.mrb[0].mxu0
  %v3070 = vadd.f32 0.0, %v3069
  %v3071 = vpop.f32.mrb[0].mxu0
  %v3072 = vadd.f32 0.0, %v3071
  %3073 = vmatprep.mubr.f32.mxu0 0.0
  %3074 = vmatmul.mubr.f32.gmra.mrb[0].mxu0 %v2887
  %v3075 = vpop.f32.mrb[0].mxu0
  %v3076 = vadd.f32 0.0, %v3075
  %v3077 = vpop.f32.mrb[0].mxu0
  %v3078 = vadd.f32 0.0, %v3077
  %3079 = vdwg.mxu0
  %s3080 = scalar_lea.vmem %s5, 704
  %v3081 = vld [vmem:[%s3080] sm:$0xff]
  %v3082 = vld [vmem:[%s3080 + $0x8] sm:$0xff]
  %v3083 = vld [vmem:[%s3080 + $0x10] sm:$0xff]
  %v3084 = vld [vmem:[%s3080 + $0x18] sm:$0xff]
  %v3085 = vld [vmem:[%s3080 + $0x20] sm:$0xff]
  %v3086 = vld [vmem:[%s3080 + $0x28] sm:$0xff]
  %v3087 = vld [vmem:[%s3080 + $0x30] sm:$0xff]
  %v3088 = vld [vmem:[%s3080 + $0x38] sm:$0xff]
  %v3089 = vld [vmem:[%s3080 + $0x40] sm:$0xff]
  %v3090 = vld [vmem:[%s3080 + $0x48] sm:$0xff]
  %v3091 = vld [vmem:[%s3080 + $0x50] sm:$0xff]
  %v3092 = vld [vmem:[%s3080 + $0x58] sm:$0xff]
  %v3093 = vld [vmem:[%s3080 + $0x60] sm:$0xff]
  %v3094 = vld [vmem:[%s3080 + $0x68] sm:$0xff]
  %v3095 = vld [vmem:[%s3080 + $0x70] sm:$0xff]
  %v3096 = vld [vmem:[%s3080 + $0x78] sm:$0xff]
  %v3097 = vld [vmem:[%s3080 + $0x80] sm:$0xff]
  %v3098 = vld [vmem:[%s3080 + $0x88] sm:$0xff]
  %v3099 = vld [vmem:[%s3080 + $0x90] sm:$0xff]
  %v3100 = vld [vmem:[%s3080 + $0x98] sm:$0xff]
  %v3101 = vld [vmem:[%s3080 + $0xa0] sm:$0xf]
  %v3102 = vld [vmem:[%s3080 + $0xa8] sm:$0xf]
  %v3104 = vsel %vm2578, %v2505, 0
  %v3107 = vsel %vm2578, %v2506, 0
  %v3110 = vsel %vm2639, %v2553, 0
  %v3113 = vsel %vm2639, %v2554, 0
  %3115 = vmatprep.subr.mxu0 %v2534
  %3116 = vmatpush1.msra.mxu0 %v2533
  %3117 = vmatprep.subr.mxu0 %v2536
  %3118 = vmatpush1.msra.mxu0 %v2535
  %3119 = vmatprep.subr.mxu0 %v2538
  %3120 = vmatpush1.msra.mxu0 %v2537
  %3121 = vmatprep.subr.mxu0 %v2540
  %3122 = vmatpush1.msra.mxu0 %v2539
  %3123 = vmatprep.subr.mxu0 %v2542
  %3124 = vmatpush1.msra.mxu0 %v2541
  %3125 = vmatprep.subr.mxu0 %v2544
  %3126 = vmatpush1.msra.mxu0 %v2543
  %3127 = vmatprep.subr.mxu0 %v2546
  %3128 = vmatpush1.msra.mxu0 %v2545
  %3129 = vmatprep.subr.mxu0 %v2548
  %3130 = vmatpush1.msra.mxu0 %v2547
  %3131 = vmatprep.subr.mxu0 %v2550
  %3132 = vmatpush1.msra.mxu0 %v2549
  %3133 = vmatprep.subr.mxu0 %v2552
  %3134 = vmatpush1.msra.mxu0 %v2551
  %3135 = vmatprep.subr.mxu0 %v3113
  %3136 = vmatpush1.msra.mxu0 %v3110
  %3137 = vmatprep.subr.mxu0 0.0
  %3138 = vmatpush1.msra.mxu0 0.0
  %3139 = vmatprep.subr.mxu0 0.0
  %3140 = vmatpush1.msra.mxu0 0.0
  %3141 = vmatprep.subr.mxu0 0.0
  %3142 = vmatpush1.msra.mxu0 0.0
  %3143 = vmatprep.subr.mxu0 0.0
  %3144 = vmatpush1.msra.mxu0 0.0
  %3145 = vmatprep.subr.mxu0 0.0
  %3146 = vmatpush1.msra.mxu0 0.0
  %3147 = vmatprep.subr.mxu0 0.0
  %3148 = vmatpush1.msra.mxu0 0.0
  %3149 = vmatprep.subr.mxu0 0.0
  %3150 = vmatpush1.msra.mxu0 0.0
  %3151 = vmatprep.subr.mxu0 0.0
  %3152 = vmatpush1.msra.mxu0 0.0
  %3153 = vmatprep.subr.mxu0 0.0
  %3154 = vmatpush1.msra.mxu0 0.0
  %3155 = vmatprep.subr.mxu0 0.0
  %3156 = vmatpush1.msra.mxu0 0.0
  %3157 = vmatprep.subr.mxu0 0.0
  %3158 = vmatpush1.msra.mxu0 0.0
  %3159 = vmatprep.subr.mxu0 0.0
  %3160 = vmatpush1.msra.mxu0 0.0
  %3161 = vmatprep.subr.mxu0 0.0
  %3162 = vmatpush1.msra.mxu0 0.0
  %3163 = vmatprep.subr.mxu0 0.0
  %3164 = vmatpush1.msra.mxu0 0.0
  %3165 = vmatprep.subr.mxu0 0.0
  %3166 = vmatpush1.msra.mxu0 0.0
  %3167 = vmatprep.subr.mxu0 0.0
  %3168 = vmatpush1.msra.mxu0 0.0
  %3169 = vmatprep.subr.mxu0 0.0
  %3170 = vmatpush1.msra.mxu0 0.0
  %3171 = vmatprep.subr.mxu0 0.0
  %3172 = vmatpush1.msra.mxu0 0.0
  %3173 = vmatprep.subr.mxu0 0.0
  %3174 = vmatpush1.msra.mxu0 0.0
  %3175 = vmatprep.subr.mxu0 0.0
  %3176 = vmatpush1.msra.mxu0 0.0
  %3177 = vmatprep.subr.mxu0 0.0
  %3178 = vmatpush1.msra.mxu0 0.0
  %3179 = vmatprep.mubr.f32.mxu0 0.0
  %3180 = vmatmul.mubr.f32.gmra.mrb[0].mxu0 %v3104
  %v3181 = vpop.f32.mrb[0].mxu0
  %v3182 = vadd.f32 %v2713, %v3181
  %v3183 = vpop.f32.mrb[0].mxu0
  %v3184 = vadd.f32 %v2715, %v3183
  %3185 = vmatprep.mubr.f32.mxu0 0.0
  %3186 = vmatmul.mubr.f32.gmra.mrb[0].mxu0 %v3107
  %v3187 = vpop.f32.mrb[0].mxu0
  %v3188 = vadd.f32 %v2719, %v3187
  %v3189 = vpop.f32.mrb[0].mxu0
  %v3190 = vadd.f32 %v2721, %v3189
  %3191 = vmatprep.mubr.f32.mxu0 0.0
  %3192 = vmatmul.mubr.f32.gmra.mrb[0].mxu0 %v2580
  %v3193 = vpop.f32.mrb[0].mxu0
  %v3194 = vadd.f32 %v2725, %v3193
  %v3195 = vpop.f32.mrb[0].mxu0
  %v3196 = vadd.f32 %v2727, %v3195
  %3197 = vmatprep.mubr.f32.mxu0 0.0
  %3198 = vmatmul.mubr.f32.gmra.mrb[0].mxu0 %v2583
  %v3199 = vpop.f32.mrb[0].mxu0
  %v3200 = vadd.f32 %v2731, %v3199
  %v3201 = vpop.f32.mrb[0].mxu0
  %v3202 = vadd.f32 %v2733, %v3201
  %3203 = vmatprep.mubr.f32.mxu0 0.0
  %3204 = vmatmul.mubr.f32.gmra.mrb[0].mxu0 %v2586
  %v3205 = vpop.f32.mrb[0].mxu0
  %v3206 = vadd.f32 %v2737, %v3205
  %v3207 = vpop.f32.mrb[0].mxu0
  %v3208 = vadd.f32 %v2739, %v3207
  %3209 = vmatprep.mubr.f32.mxu0 0.0
  %3210 = vmatmul.mubr.f32.gmra.mrb[0].mxu0 %v2589
  %v3211 = vpop.f32.mrb[0].mxu0
  %v3212 = vadd.f32 %v2743, %v3211
  %v3213 = vpop.f32.mrb[0].mxu0
  %v3214 = vadd.f32 %v2745, %v3213
  %3215 = vmatprep.mubr.f32.mxu0 0.0
  %3216 = vmatmul.mubr.f32.gmra.mrb[0].mxu0 %v2592
  %v3217 = vpop.f32.mrb[0].mxu0
  %v3218 = vadd.f32 %v2749, %v3217
  %v3219 = vpop.f32.mrb[0].mxu0
  %v3220 = vadd.f32 %v2751, %v3219
  %3221 = vmatprep.mubr.f32.mxu0 0.0
  %3222 = vmatmul.mubr.f32.gmra.mrb[0].mxu0 %v2595
  %v3223 = vpop.f32.mrb[0].mxu0
  %v3224 = vadd.f32 %v2755, %v3223
  %v3225 = vpop.f32.mrb[0].mxu0
  %v3226 = vadd.f32 %v2757, %v3225
  %3227 = vmatprep.mubr.f32.mxu0 0.0
  %3228 = vmatmul.mubr.f32.gmra.mrb[0].mxu0 %v2598
  %v3229 = vpop.f32.mrb[0].mxu0
  %v3230 = vadd.f32 %v2761, %v3229
  %v3231 = vpop.f32.mrb[0].mxu0
  %v3232 = vadd.f32 %v2763, %v3231
  %3233 = vmatprep.mubr.f32.mxu0 0.0
  %3234 = vmatmul.mubr.f32.gmra.mrb[0].mxu0 %v2601
  %v3235 = vpop.f32.mrb[0].mxu0
  %v3236 = vadd.f32 %v2767, %v3235
  %v3237 = vpop.f32.mrb[0].mxu0
  %v3238 = vadd.f32 %v2769, %v3237
  %3239 = vmatprep.mubr.f32.mxu0 0.0
  %3240 = vmatmul.mubr.f32.gmra.mrb[0].mxu0 %v2604
  %v3241 = vpop.f32.mrb[0].mxu0
  %v3242 = vadd.f32 %v2773, %v3241
  %v3243 = vpop.f32.mrb[0].mxu0
  %v3244 = vadd.f32 %v2775, %v3243
  %3245 = vmatprep.mubr.f32.mxu0 0.0
  %3246 = vmatmul.mubr.f32.gmra.mrb[0].mxu0 %v2607
  %v3247 = vpop.f32.mrb[0].mxu0
  %v3248 = vadd.f32 %v2779, %v3247
  %v3249 = vpop.f32.mrb[0].mxu0
  %v3250 = vadd.f32 %v2781, %v3249
  %3251 = vmatprep.mubr.f32.mxu0 0.0
  %3252 = vmatmul.mubr.f32.gmra.mrb[0].mxu0 %v2610
  %v3253 = vpop.f32.mrb[0].mxu0
  %v3254 = vadd.f32 %v2785, %v3253
  %v3255 = vpop.f32.mrb[0].mxu0
  %v3256 = vadd.f32 %v2787, %v3255
  %3257 = vmatprep.mubr.f32.mxu0 0.0
  %3258 = vmatmul.mubr.f32.gmra.mrb[0].mxu0 %v2613
  %v3259 = vpop.f32.mrb[0].mxu0
  %v3260 = vadd.f32 %v2791, %v3259
  %v3261 = vpop.f32.mrb[0].mxu0
  %v3262 = vadd.f32 %v2793, %v3261
  %3263 = vmatprep.mubr.f32.mxu0 0.0
  %3264 = vmatmul.mubr.f32.gmra.mrb[0].mxu0 %v2616
  %v3265 = vpop.f32.mrb[0].mxu0
  %v3266 = vadd.f32 %v2797, %v3265
  %v3267 = vpop.f32.mrb[0].mxu0
  %v3268 = vadd.f32 %v2799, %v3267
  %3269 = vmatprep.mubr.f32.mxu0 0.0
  %3270 = vmatmul.mubr.f32.gmra.mrb[0].mxu0 %v2619
  %v3271 = vpop.f32.mrb[0].mxu0
  %v3272 = vadd.f32 %v2803, %v3271
  %v3273 = vpop.f32.mrb[0].mxu0
  %v3274 = vadd.f32 %v2805, %v3273
  %3275 = vmatprep.mubr.f32.mxu0 0.0
  %3276 = vmatmul.mubr.f32.gmra.mrb[0].mxu0 %v2622
  %v3277 = vpop.f32.mrb[0].mxu0
  %v3278 = vadd.f32 %v2809, %v3277
  %v3279 = vpop.f32.mrb[0].mxu0
  %v3280 = vadd.f32 %v2811, %v3279
  %3281 = vmatprep.mubr.f32.mxu0 0.0
  %3282 = vmatmul.mubr.f32.gmra.mrb[0].mxu0 %v2625
  %v3283 = vpop.f32.mrb[0].mxu0
  %v3284 = vadd.f32 %v2815, %v3283
  %v3285 = vpop.f32.mrb[0].mxu0
  %v3286 = vadd.f32 %v2817, %v3285
  %3287 = vmatprep.mubr.f32.mxu0 0.0
  %3288 = vmatmul.mubr.f32.gmra.mrb[0].mxu0 %v2628
  %v3289 = vpop.f32.mrb[0].mxu0
  %v3290 = vadd.f32 %v2821, %v3289
  %v3291 = vpop.f32.mrb[0].mxu0
  %v3292 = vadd.f32 %v2823, %v3291
  %3293 = vmatprep.mubr.f32.mxu0 0.0
  %3294 = vmatmul.mubr.f32.gmra.mrb[0].mxu0 %v2631
  %v3295 = vpop.f32.mrb[0].mxu0
  %v3296 = vadd.f32 %v2827, %v3295
  %v3297 = vpop.f32.mrb[0].mxu0
  %v3298 = vadd.f32 %v2829, %v3297
  %3299 = vdwg.mxu0
  %v3301 = vsel %vm2639, %v2852, 0
  %v3304 = vsel %vm2639, %v2853, 0
  %3306 = vmatprep.subr.mxu0 %v2833
  %3307 = vmatpush1.msra.mxu0 %v2832
  %3308 = vmatprep.subr.mxu0 %v2835
  %3309 = vmatpush1.msra.mxu0 %v2834
  %3310 = vmatprep.subr.mxu0 %v2837
  %3311 = vmatpush1.msra.mxu0 %v2836
  %3312 = vmatprep.subr.mxu0 %v2839
  %3313 = vmatpush1.msra.mxu0 %v2838
  %3314 = vmatprep.subr.mxu0 %v2841
  %3315 = vmatpush1.msra.mxu0 %v2840
  %3316 = vmatprep.subr.mxu0 %v2843
  %3317 = vmatpush1.msra.mxu0 %v2842
  %3318 = vmatprep.subr.mxu0 %v2845
  %3319 = vmatpush1.msra.mxu0 %v2844
  %3320 = vmatprep.subr.mxu0 %v2847
  %3321 = vmatpush1.msra.mxu0 %v2846
  %3322 = vmatprep.subr.mxu0 %v2849
  %3323 = vmatpush1.msra.mxu0 %v2848
  %3324 = vmatprep.subr.mxu0 %v2851
  %3325 = vmatpush1.msra.mxu0 %v2850
  %3326 = vmatprep.subr.mxu0 %v3304
  %3327 = vmatpush1.msra.mxu0 %v3301
  %3328 = vmatprep.subr.mxu0 0.0
  %3329 = vmatpush1.msra.mxu0 0.0
  %3330 = vmatprep.subr.mxu0 0.0
  %3331 = vmatpush1.msra.mxu0 0.0
  %3332 = vmatprep.subr.mxu0 0.0
  %3333 = vmatpush1.msra.mxu0 0.0
  %3334 = vmatprep.subr.mxu0 0.0
  %3335 = vmatpush1.msra.mxu0 0.0
  %3336 = vmatprep.subr.mxu0 0.0
  %3337 = vmatpush1.msra.mxu0 0.0
  %3338 = vmatprep.subr.mxu0 0.0
  %3339 = vmatpush1.msra.mxu0 0.0
  %3340 = vmatprep.subr.mxu0 0.0
  %3341 = vmatpush1.msra.mxu0 0.0
  %3342 = vmatprep.subr.mxu0 0.0
  %3343 = vmatpush1.msra.mxu0 0.0
  %3344 = vmatprep.subr.mxu0 0.0
  %3345 = vmatpush1.msra.mxu0 0.0
  %3346 = vmatprep.subr.mxu0 0.0
  %3347 = vmatpush1.msra.mxu0 0.0
  %3348 = vmatprep.subr.mxu0 0.0
  %3349 = vmatpush1.msra.mxu0 0.0
  %3350 = vmatprep.subr.mxu0 0.0
  %3351 = vmatpush1.msra.mxu0 0.0
  %3352 = vmatprep.subr.mxu0 0.0
  %3353 = vmatpush1.msra.mxu0 0.0
  %3354 = vmatprep.subr.mxu0 0.0
  %3355 = vmatpush1.msra.mxu0 0.0
  %3356 = vmatprep.subr.mxu0 0.0
  %3357 = vmatpush1.msra.mxu0 0.0
  %3358 = vmatprep.subr.mxu0 0.0
  %3359 = vmatpush1.msra.mxu0 0.0
  %3360 = vmatprep.subr.mxu0 0.0
  %3361 = vmatpush1.msra.mxu0 0.0
  %3362 = vmatprep.subr.mxu0 0.0
  %3363 = vmatpush1.msra.mxu0 0.0
  %3364 = vmatprep.subr.mxu0 0.0
  %3365 = vmatpush1.msra.mxu0 0.0
  %3366 = vmatprep.subr.mxu0 0.0
  %3367 = vmatpush1.msra.mxu0 0.0
  %3368 = vmatprep.subr.mxu0 0.0
  %3369 = vmatpush1.msra.mxu0 0.0
  %3370 = vmatprep.mubr.f32.mxu0 0.0
  %3371 = vmatmul.mubr.f32.gmra.mrb[0].mxu0 %v2586
  %v3372 = vpop.f32.mrb[0].mxu0
  %v3373 = vadd.f32 %v2962, %v3372
  %v3374 = vpop.f32.mrb[0].mxu0
  %v3375 = vadd.f32 %v2964, %v3374
  %3376 = vmatprep.mubr.f32.mxu0 0.0
  %3377 = vmatmul.mubr.f32.gmra.mrb[0].mxu0 %v2589
  %v3378 = vpop.f32.mrb[0].mxu0
  %v3379 = vadd.f32 %v2968, %v3378
  %v3380 = vpop.f32.mrb[0].mxu0
  %v3381 = vadd.f32 %v2970, %v3380
  %3382 = vmatprep.mubr.f32.mxu0 0.0
  %3383 = vmatmul.mubr.f32.gmra.mrb[0].mxu0 %v2592
  %v3384 = vpop.f32.mrb[0].mxu0
  %v3385 = vadd.f32 %v2974, %v3384
  %v3386 = vpop.f32.mrb[0].mxu0
  %v3387 = vadd.f32 %v2976, %v3386
  %3388 = vmatprep.mubr.f32.mxu0 0.0
  %3389 = vmatmul.mubr.f32.gmra.mrb[0].mxu0 %v2595
  %v3390 = vpop.f32.mrb[0].mxu0
  %v3391 = vadd.f32 %v2980, %v3390
  %v3392 = vpop.f32.mrb[0].mxu0
  %v3393 = vadd.f32 %v2982, %v3392
  %3394 = vmatprep.mubr.f32.mxu0 0.0
  %3395 = vmatmul.mubr.f32.gmra.mrb[0].mxu0 %v2598
  %v3396 = vpop.f32.mrb[0].mxu0
  %v3397 = vadd.f32 %v2986, %v3396
  %v3398 = vpop.f32.mrb[0].mxu0
  %v3399 = vadd.f32 %v2988, %v3398
  %3400 = vmatprep.mubr.f32.mxu0 0.0
  %3401 = vmatmul.mubr.f32.gmra.mrb[0].mxu0 %v2601
  %v3402 = vpop.f32.mrb[0].mxu0
  %v3403 = vadd.f32 %v2992, %v3402
  %v3404 = vpop.f32.mrb[0].mxu0
  %v3405 = vadd.f32 %v2994, %v3404
  %3406 = vmatprep.mubr.f32.mxu0 0.0
  %3407 = vmatmul.mubr.f32.gmra.mrb[0].mxu0 %v2604
  %v3408 = vpop.f32.mrb[0].mxu0
  %v3409 = vadd.f32 %v2998, %v3408
  %v3410 = vpop.f32.mrb[0].mxu0
  %v3411 = vadd.f32 %v3000, %v3410
  %3412 = vmatprep.mubr.f32.mxu0 0.0
  %3413 = vmatmul.mubr.f32.gmra.mrb[0].mxu0 %v2607
  %v3414 = vpop.f32.mrb[0].mxu0
  %v3415 = vadd.f32 %v3004, %v3414
  %v3416 = vpop.f32.mrb[0].mxu0
  %v3417 = vadd.f32 %v3006, %v3416
  %3418 = vmatprep.mubr.f32.mxu0 0.0
  %3419 = vmatmul.mubr.f32.gmra.mrb[0].mxu0 %v2610
  %v3420 = vpop.f32.mrb[0].mxu0
  %v3421 = vadd.f32 %v3010, %v3420
  %v3422 = vpop.f32.mrb[0].mxu0
  %v3423 = vadd.f32 %v3012, %v3422
  %3424 = vmatprep.mubr.f32.mxu0 0.0
  %3425 = vmatmul.mubr.f32.gmra.mrb[0].mxu0 %v2613
  %v3426 = vpop.f32.mrb[0].mxu0
  %v3427 = vadd.f32 %v3016, %v3426
  %v3428 = vpop.f32.mrb[0].mxu0
  %v3429 = vadd.f32 %v3018, %v3428
  %3430 = vmatprep.mubr.f32.mxu0 0.0
  %3431 = vmatmul.mubr.f32.gmra.mrb[0].mxu0 %v2616
  %v3432 = vpop.f32.mrb[0].mxu0
  %v3433 = vadd.f32 %v3022, %v3432
  %v3434 = vpop.f32.mrb[0].mxu0
  %v3435 = vadd.f32 %v3024, %v3434
  %3436 = vmatprep.mubr.f32.mxu0 0.0
  %3437 = vmatmul.mubr.f32.gmra.mrb[0].mxu0 %v2619
  %v3438 = vpop.f32.mrb[0].mxu0
  %v3439 = vadd.f32 %v3028, %v3438
  %v3440 = vpop.f32.mrb[0].mxu0
  %v3441 = vadd.f32 %v3030, %v3440
  %3442 = vmatprep.mubr.f32.mxu0 0.0
  %3443 = vmatmul.mubr.f32.gmra.mrb[0].mxu0 %v2622
  %v3444 = vpop.f32.mrb[0].mxu0
  %v3445 = vadd.f32 %v3034, %v3444
  %v3446 = vpop.f32.mrb[0].mxu0
  %v3447 = vadd.f32 %v3036, %v3446
  %3448 = vmatprep.mubr.f32.mxu0 0.0
  %3449 = vmatmul.mubr.f32.gmra.mrb[0].mxu0 %v2625
  %v3450 = vpop.f32.mrb[0].mxu0
  %v3451 = vadd.f32 %v3040, %v3450
  %v3452 = vpop.f32.mrb[0].mxu0
  %v3453 = vadd.f32 %v3042, %v3452
  %3454 = vmatprep.mubr.f32.mxu0 0.0
  %3455 = vmatmul.mubr.f32.gmra.mrb[0].mxu0 %v2628
  %v3456 = vpop.f32.mrb[0].mxu0
  %v3457 = vadd.f32 %v3046, %v3456
  %v3458 = vpop.f32.mrb[0].mxu0
  %v3459 = vadd.f32 %v3048, %v3458
  %3460 = vmatprep.mubr.f32.mxu0 0.0
  %3461 = vmatmul.mubr.f32.gmra.mrb[0].mxu0 %v2631
  %v3462 = vpop.f32.mrb[0].mxu0
  %v3463 = vadd.f32 %v3052, %v3462
  %v3464 = vpop.f32.mrb[0].mxu0
  %v3465 = vadd.f32 %v3054, %v3464
  %3466 = vmatprep.mubr.f32.mxu0 0.0
  %3467 = vmatmul.mubr.f32.gmra.mrb[0].mxu0 %v2634
  %v3468 = vpop.f32.mrb[0].mxu0
  %v3469 = vadd.f32 %v3058, %v3468
  %v3470 = vpop.f32.mrb[0].mxu0
  %v3471 = vadd.f32 %v3060, %v3470
  %3472 = vmatprep.mubr.f32.mxu0 0.0
  %3473 = vmatmul.mubr.f32.gmra.mrb[0].mxu0 %v2637
  %v3474 = vpop.f32.mrb[0].mxu0
  %v3475 = vadd.f32 %v3064, %v3474
  %v3476 = vpop.f32.mrb[0].mxu0
  %v3477 = vadd.f32 %v3066, %v3476
  %3478 = vmatprep.mubr.f32.mxu0 0.0
  %3479 = vmatmul.mubr.f32.gmra.mrb[0].mxu0 %v2878
  %v3480 = vpop.f32.mrb[0].mxu0
  %v3481 = vadd.f32 %v3070, %v3480
  %v3482 = vpop.f32.mrb[0].mxu0
  %v3483 = vadd.f32 %v3072, %v3482
  %3484 = vmatprep.mubr.f32.mxu0 0.0
  %3485 = vmatmul.mubr.f32.gmra.mrb[0].mxu0 %v2881
  %v3486 = vpop.f32.mrb[0].mxu0
  %v3487 = vadd.f32 %v3076, %v3486
  %v3488 = vpop.f32.mrb[0].mxu0
  %v3489 = vadd.f32 %v3078, %v3488
  %3490 = vdwg.mxu0
  %v3491 = vadd.f32 %v3182, %v3373
  %v3492 = vadd.f32 %v3184, %v3375
  %v3493 = vadd.f32 %v3188, %v3379
  %v3494 = vadd.f32 %v3190, %v3381
  %v3495 = vadd.f32 %v3194, %v3385
  %v3496 = vadd.f32 %v3196, %v3387
  %v3497 = vadd.f32 %v3200, %v3391
  %v3498 = vadd.f32 %v3202, %v3393
  %v3499 = vadd.f32 %v3206, %v3397
  %v3500 = vadd.f32 %v3208, %v3399
  %v3501 = vadd.f32 %v3212, %v3403
  %v3502 = vadd.f32 %v3214, %v3405
  %v3503 = vadd.f32 %v3218, %v3409
  %v3504 = vadd.f32 %v3220, %v3411
  %v3505 = vadd.f32 %v3224, %v3415
  %v3506 = vadd.f32 %v3226, %v3417
  %v3507 = vadd.f32 %v3230, %v3421
  %v3508 = vadd.f32 %v3232, %v3423
  %v3509 = vadd.f32 %v3236, %v3427
  %v3510 = vadd.f32 %v3238, %v3429
  %v3511 = vadd.f32 %v3242, %v3433
  %v3512 = vadd.f32 %v3244, %v3435
  %v3513 = vadd.f32 %v3248, %v3439
  %v3514 = vadd.f32 %v3250, %v3441
  %v3515 = vadd.f32 %v3254, %v3445
  %v3516 = vadd.f32 %v3256, %v3447
  %v3517 = vadd.f32 %v3260, %v3451
  %v3518 = vadd.f32 %v3262, %v3453
  %v3519 = vadd.f32 %v3266, %v3457
  %v3520 = vadd.f32 %v3268, %v3459
  %v3521 = vadd.f32 %v3272, %v3463
  %v3522 = vadd.f32 %v3274, %v3465
  %v3523 = vadd.f32 %v3278, %v3469
  %v3524 = vadd.f32 %v3280, %v3471
  %v3525 = vadd.f32 %v3284, %v3475
  %v3526 = vadd.f32 %v3286, %v3477
  %v3527 = vadd.f32 %v3290, %v3481
  %v3528 = vadd.f32 %v3292, %v3483
  %v3529 = vadd.f32 %v3296, %v3487
  %v3530 = vadd.f32 %v3298, %v3489
  %v3531 = vld [vmem:[%s6] sm:$0x3]
  %v3533 = vlaneseq
  %v3534 = vshrl.u32 %v3533, 7
  %v3535 = vsub.s32 0, %v3534
  %v3536 = vrot.slane %v3531, %v3535
  %v3537 = vlaneseq
  %v3538 = vshrl.u32 %v3537, 7
  %v3539 = vsub.s32 1, %v3538
  %v3540 = vrot.slane %v3531, %v3539
  %v3544 = vsel %vm2578, %v2531, 0
  %v3547 = vsel %vm2578, %v2532, 0
  %v3550 = vsel %vm2639, %v3101, 0
  %v3553 = vsel %vm2639, %v3102, 0
  %3555 = vmatprep.subr.mxu0 %v3082
  %3556 = vmatpush1.msra.mxu0 %v3081
  %3557 = vmatprep.subr.mxu0 %v3084
  %3558 = vmatpush1.msra.mxu0 %v3083
  %3559 = vmatprep.subr.mxu0 %v3086
  %3560 = vmatpush1.msra.mxu0 %v3085
  %3561 = vmatprep.subr.mxu0 %v3088
  %3562 = vmatpush1.msra.mxu0 %v3087
  %3563 = vmatprep.subr.mxu0 %v3090
  %3564 = vmatpush1.msra.mxu0 %v3089
  %3565 = vmatprep.subr.mxu0 %v3092
  %3566 = vmatpush1.msra.mxu0 %v3091
  %3567 = vmatprep.subr.mxu0 %v3094
  %3568 = vmatpush1.msra.mxu0 %v3093
  %3569 = vmatprep.subr.mxu0 %v3096
  %3570 = vmatpush1.msra.mxu0 %v3095
  %3571 = vmatprep.subr.mxu0 %v3098
  %3572 = vmatpush1.msra.mxu0 %v3097
  %3573 = vmatprep.subr.mxu0 %v3100
  %3574 = vmatpush1.msra.mxu0 %v3099
  %3575 = vmatprep.subr.mxu0 %v3553
  %3576 = vmatpush1.msra.mxu0 %v3550
  %3577 = vmatprep.subr.mxu0 0.0
  %3578 = vmatpush1.msra.mxu0 0.0
  %3579 = vmatprep.subr.mxu0 0.0
  %3580 = vmatpush1.msra.mxu0 0.0
  %3581 = vmatprep.subr.mxu0 0.0
  %3582 = vmatpush1.msra.mxu0 0.0
  %3583 = vmatprep.subr.mxu0 0.0
  %3584 = vmatpush1.msra.mxu0 0.0
  %3585 = vmatprep.subr.mxu0 0.0
  %3586 = vmatpush1.msra.mxu0 0.0
  %3587 = vmatprep.subr.mxu0 0.0
  %3588 = vmatpush1.msra.mxu0 0.0
  %3589 = vmatprep.subr.mxu0 0.0
  %3590 = vmatpush1.msra.mxu0 0.0
  %3591 = vmatprep.subr.mxu0 0.0
  %3592 = vmatpush1.msra.mxu0 0.0
  %3593 = vmatprep.subr.mxu0 0.0
  %3594 = vmatpush1.msra.mxu0 0.0
  %3595 = vmatprep.subr.mxu0 0.0
  %3596 = vmatpush1.msra.mxu0 0.0
  %3597 = vmatprep.subr.mxu0 0.0
  %3598 = vmatpush1.msra.mxu0 0.0
  %3599 = vmatprep.subr.mxu0 0.0
  %3600 = vmatpush1.msra.mxu0 0.0
  %3601 = vmatprep.subr.mxu0 0.0
  %3602 = vmatpush1.msra.mxu0 0.0
  %3603 = vmatprep.subr.mxu0 0.0
  %3604 = vmatpush1.msra.mxu0 0.0
  %3605 = vmatprep.subr.mxu0 0.0
  %3606 = vmatpush1.msra.mxu0 0.0
  %3607 = vmatprep.subr.mxu0 0.0
  %3608 = vmatpush1.msra.mxu0 0.0
  %3609 = vmatprep.subr.mxu0 0.0
  %3610 = vmatpush1.msra.mxu0 0.0
  %3611 = vmatprep.subr.mxu0 0.0
  %3612 = vmatpush1.msra.mxu0 0.0
  %3613 = vmatprep.subr.mxu0 0.0
  %3614 = vmatpush1.msra.mxu0 0.0
  %3615 = vmatprep.subr.mxu0 0.0
  %3616 = vmatpush1.msra.mxu0 0.0
  %3617 = vmatprep.subr.mxu0 0.0
  %3618 = vmatpush1.msra.mxu0 0.0
  %3619 = vmatprep.mubr.f32.mxu0 0.0
  %3620 = vmatmul.mubr.f32.gmra.mrb[0].mxu0 %v2598
  %v3621 = vpop.f32.mrb[0].mxu0
  %v3622 = vadd.f32 %v3536, %v3621
  %v3623 = vpop.f32.mrb[0].mxu0
  %v3624 = vadd.f32 %v3540, %v3623
  %3625 = vmatprep.mubr.f32.mxu0 0.0
  %3626 = vmatmul.mubr.f32.gmra.mrb[0].mxu0 %v2601
  %v3627 = vpop.f32.mrb[0].mxu0
  %v3628 = vadd.f32 %v3536, %v3627
  %v3629 = vpop.f32.mrb[0].mxu0
  %v3630 = vadd.f32 %v3540, %v3629
  %3631 = vmatprep.mubr.f32.mxu0 0.0
  %3632 = vmatmul.mubr.f32.gmra.mrb[0].mxu0 %v2604
  %v3633 = vpop.f32.mrb[0].mxu0
  %v3634 = vadd.f32 %v3536, %v3633
  %v3635 = vpop.f32.mrb[0].mxu0
  %v3636 = vadd.f32 %v3540, %v3635
  %3637 = vmatprep.mubr.f32.mxu0 0.0
  %3638 = vmatmul.mubr.f32.gmra.mrb[0].mxu0 %v2607
  %v3639 = vpop.f32.mrb[0].mxu0
  %v3640 = vadd.f32 %v3536, %v3639
  %v3641 = vpop.f32.mrb[0].mxu0
  %v3642 = vadd.f32 %v3540, %v3641
  %3643 = vmatprep.mubr.f32.mxu0 0.0
  %3644 = vmatmul.mubr.f32.gmra.mrb[0].mxu0 %v2610
  %v3645 = vpop.f32.mrb[0].mxu0
  %v3646 = vadd.f32 %v3536, %v3645
  %v3647 = vpop.f32.mrb[0].mxu0
  %v3648 = vadd.f32 %v3540, %v3647
  %3649 = vmatprep.mubr.f32.mxu0 0.0
  %3650 = vmatmul.mubr.f32.gmra.mrb[0].mxu0 %v2613
  %v3651 = vpop.f32.mrb[0].mxu0
  %v3652 = vadd.f32 %v3536, %v3651
  %v3653 = vpop.f32.mrb[0].mxu0
  %v3654 = vadd.f32 %v3540, %v3653
  %3655 = vmatprep.mubr.f32.mxu0 0.0
  %3656 = vmatmul.mubr.f32.gmra.mrb[0].mxu0 %v2616
  %v3657 = vpop.f32.mrb[0].mxu0
  %v3658 = vadd.f32 %v3536, %v3657
  %v3659 = vpop.f32.mrb[0].mxu0
  %v3660 = vadd.f32 %v3540, %v3659
  %3661 = vmatprep.mubr.f32.mxu0 0.0
  %3662 = vmatmul.mubr.f32.gmra.mrb[0].mxu0 %v2619
  %v3663 = vpop.f32.mrb[0].mxu0
  %v3664 = vadd.f32 %v3536, %v3663
  %v3665 = vpop.f32.mrb[0].mxu0
  %v3666 = vadd.f32 %v3540, %v3665
  %3667 = vmatprep.mubr.f32.mxu0 0.0
  %3668 = vmatmul.mubr.f32.gmra.mrb[0].mxu0 %v2622
  %v3669 = vpop.f32.mrb[0].mxu0
  %v3670 = vadd.f32 %v3536, %v3669
  %v3671 = vpop.f32.mrb[0].mxu0
  %v3672 = vadd.f32 %v3540, %v3671
  %3673 = vmatprep.mubr.f32.mxu0 0.0
  %3674 = vmatmul.mubr.f32.gmra.mrb[0].mxu0 %v2625
  %v3675 = vpop.f32.mrb[0].mxu0
  %v3676 = vadd.f32 %v3536, %v3675
  %v3677 = vpop.f32.mrb[0].mxu0
  %v3678 = vadd.f32 %v3540, %v3677
  %3679 = vmatprep.mubr.f32.mxu0 0.0
  %3680 = vmatmul.mubr.f32.gmra.mrb[0].mxu0 %v2628
  %v3681 = vpop.f32.mrb[0].mxu0
  %v3682 = vadd.f32 %v3536, %v3681
  %v3683 = vpop.f32.mrb[0].mxu0
  %v3684 = vadd.f32 %v3540, %v3683
  %3685 = vmatprep.mubr.f32.mxu0 0.0
  %3686 = vmatmul.mubr.f32.gmra.mrb[0].mxu0 %v2631
  %v3687 = vpop.f32.mrb[0].mxu0
  %v3688 = vadd.f32 %v3536, %v3687
  %v3689 = vpop.f32.mrb[0].mxu0
  %v3690 = vadd.f32 %v3540, %v3689
  %3691 = vmatprep.mubr.f32.mxu0 0.0
  %3692 = vmatmul.mubr.f32.gmra.mrb[0].mxu0 %v2634
  %v3693 = vpop.f32.mrb[0].mxu0
  %v3694 = vadd.f32 %v3536, %v3693
  %v3695 = vpop.f32.mrb[0].mxu0
  %v3696 = vadd.f32 %v3540, %v3695
  %3697 = vmatprep.mubr.f32.mxu0 0.0
  %3698 = vmatmul.mubr.f32.gmra.mrb[0].mxu0 %v2637
  %v3699 = vpop.f32.mrb[0].mxu0
  %v3700 = vadd.f32 %v3536, %v3699
  %v3701 = vpop.f32.mrb[0].mxu0
  %v3702 = vadd.f32 %v3540, %v3701
  %3703 = vmatprep.mubr.f32.mxu0 0.0
  %3704 = vmatmul.mubr.f32.gmra.mrb[0].mxu0 %v2878
  %v3705 = vpop.f32.mrb[0].mxu0
  %v3706 = vadd.f32 %v3536, %v3705
  %v3707 = vpop.f32.mrb[0].mxu0
  %v3708 = vadd.f32 %v3540, %v3707
  %3709 = vmatprep.mubr.f32.mxu0 0.0
  %3710 = vmatmul.mubr.f32.gmra.mrb[0].mxu0 %v2881
  %v3711 = vpop.f32.mrb[0].mxu0
  %v3712 = vadd.f32 %v3536, %v3711
  %v3713 = vpop.f32.mrb[0].mxu0
  %v3714 = vadd.f32 %v3540, %v3713
  %3715 = vmatprep.mubr.f32.mxu0 0.0
  %3716 = vmatmul.mubr.f32.gmra.mrb[0].mxu0 %v2884
  %v3717 = vpop.f32.mrb[0].mxu0
  %v3718 = vadd.f32 %v3536, %v3717
  %v3719 = vpop.f32.mrb[0].mxu0
  %v3720 = vadd.f32 %v3540, %v3719
  %3721 = vmatprep.mubr.f32.mxu0 0.0
  %3722 = vmatmul.mubr.f32.gmra.mrb[0].mxu0 %v2887
  %v3723 = vpop.f32.mrb[0].mxu0
  %v3724 = vadd.f32 %v3536, %v3723
  %v3725 = vpop.f32.mrb[0].mxu0
  %v3726 = vadd.f32 %v3540, %v3725
  %3727 = vmatprep.mubr.f32.mxu0 0.0
  %3728 = vmatmul.mubr.f32.gmra.mrb[0].mxu0 %v3544
  %v3729 = vpop.f32.mrb[0].mxu0
  %v3730 = vadd.f32 %v3536, %v3729
  %v3731 = vpop.f32.mrb[0].mxu0
  %v3732 = vadd.f32 %v3540, %v3731
  %3733 = vmatprep.mubr.f32.mxu0 0.0
  %3734 = vmatmul.mubr.f32.gmra.mrb[0].mxu0 %v3547
  %v3735 = vpop.f32.mrb[0].mxu0
  %v3736 = vadd.f32 %v3536, %v3735
  %v3737 = vpop.f32.mrb[0].mxu0
  %v3738 = vadd.f32 %v3540, %v3737
  %3739 = vdwg.mxu0
  %v3740 = vadd.f32 %v3491, %v3622
  %v3741 = vadd.f32 %v3492, %v3624
  %v3742 = vadd.f32 %v3493, %v3628
  %v3743 = vadd.f32 %v3494, %v3630
  %v3744 = vadd.f32 %v3495, %v3634
  %v3745 = vadd.f32 %v3496, %v3636
  %v3746 = vadd.f32 %v3497, %v3640
  %v3747 = vadd.f32 %v3498, %v3642
  %v3748 = vadd.f32 %v3499, %v3646
  %v3749 = vadd.f32 %v3500, %v3648
  %v3750 = vadd.f32 %v3501, %v3652
  %v3751 = vadd.f32 %v3502, %v3654
  %v3752 = vadd.f32 %v3503, %v3658
  %v3753 = vadd.f32 %v3504, %v3660
  %v3754 = vadd.f32 %v3505, %v3664
  %v3755 = vadd.f32 %v3506, %v3666
  %v3756 = vadd.f32 %v3507, %v3670
  %v3757 = vadd.f32 %v3508, %v3672
  %v3758 = vadd.f32 %v3509, %v3676
  %v3759 = vadd.f32 %v3510, %v3678
  %v3760 = vadd.f32 %v3511, %v3682
  %v3761 = vadd.f32 %v3512, %v3684
  %v3762 = vadd.f32 %v3513, %v3688
  %v3763 = vadd.f32 %v3514, %v3690
  %v3764 = vadd.f32 %v3515, %v3694
  %v3765 = vadd.f32 %v3516, %v3696
  %v3766 = vadd.f32 %v3517, %v3700
  %v3767 = vadd.f32 %v3518, %v3702
  %v3768 = vadd.f32 %v3519, %v3706
  %v3769 = vadd.f32 %v3520, %v3708
  %v3770 = vadd.f32 %v3521, %v3712
  %v3771 = vadd.f32 %v3522, %v3714
  %v3772 = vadd.f32 %v3523, %v3718
  %v3773 = vadd.f32 %v3524, %v3720
  %v3774 = vadd.f32 %v3525, %v3724
  %v3775 = vadd.f32 %v3526, %v3726
  %v3776 = vadd.f32 %v3527, %v3730
  %v3777 = vadd.f32 %v3528, %v3732
  %v3778 = vadd.f32 %v3529, %v3736
  %v3779 = vadd.f32 %v3530, %v3738
  %v3780 = vmax.f32 %v3740, 0.0
  %v3781 = vmax.f32 %v3741, 0.0
  %v3782 = vmax.f32 %v3742, 0.0
  %v3783 = vmax.f32 %v3743, 0.0
  %v3784 = vmax.f32 %v3744, 0.0
  %v3785 = vmax.f32 %v3745, 0.0
  %v3786 = vmax.f32 %v3746, 0.0
  %v3787 = vmax.f32 %v3747, 0.0
  %v3788 = vmax.f32 %v3748, 0.0
  %v3789 = vmax.f32 %v3749, 0.0
  %v3790 = vmax.f32 %v3750, 0.0
  %v3791 = vmax.f32 %v3751, 0.0
  %v3792 = vmax.f32 %v3752, 0.0
  %v3793 = vmax.f32 %v3753, 0.0
  %v3794 = vmax.f32 %v3754, 0.0
  %v3795 = vmax.f32 %v3755, 0.0
  %v3796 = vmax.f32 %v3756, 0.0
  %v3797 = vmax.f32 %v3757, 0.0
  %v3798 = vmax.f32 %v3758, 0.0
  %v3799 = vmax.f32 %v3759, 0.0
  %v3800 = vmax.f32 %v3760, 0.0
  %v3801 = vmax.f32 %v3761, 0.0
  %v3802 = vmax.f32 %v3762, 0.0
  %v3803 = vmax.f32 %v3763, 0.0
  %v3804 = vmax.f32 %v3764, 0.0
  %v3805 = vmax.f32 %v3765, 0.0
  %v3806 = vmax.f32 %v3766, 0.0
  %v3807 = vmax.f32 %v3767, 0.0
  %v3808 = vmax.f32 %v3768, 0.0
  %v3809 = vmax.f32 %v3769, 0.0
  %v3810 = vmax.f32 %v3770, 0.0
  %v3811 = vmax.f32 %v3771, 0.0
  %v3812 = vmax.f32 %v3772, 0.0
  %v3813 = vmax.f32 %v3773, 0.0
  %v3814 = vmax.f32 %v3774, 0.0
  %v3815 = vmax.f32 %v3775, 0.0
  %v3816 = vmax.f32 %v3776, 0.0
  %v3817 = vmax.f32 %v3777, 0.0
  %v3818 = vmax.f32 %v3778, 0.0
  %v3819 = vmax.f32 %v3779, 0.0
  %v3820 = vmax.f32 %v3780, %v3784
  %v3821 = vmax.f32 %v3781, %v3785
  %v3822 = vmax.f32 %v3782, %v3786
  %v3823 = vmax.f32 %v3783, %v3787
  %v3824 = vmax.f32 %v3784, %v3788
  %v3825 = vmax.f32 %v3785, %v3789
  %v3826 = vmax.f32 %v3786, %v3790
  %v3827 = vmax.f32 %v3787, %v3791
  %v3828 = vmax.f32 %v3788, %v3792
  %v3829 = vmax.f32 %v3789, %v3793
  %v3830 = vmax.f32 %v3790, %v3794
  %v3831 = vmax.f32 %v3791, %v3795
  %v3832 = vmax.f32 %v3792, %v3796
  %v3833 = vmax.f32 %v3793, %v3797
  %v3834 = vmax.f32 %v3794, %v3798
  %v3835 = vmax.f32 %v3795, %v3799
  %v3836 = vmax.f32 %v3796, %v3800
  %v3837 = vmax.f32 %v3797, %v3801
  %v3838 = vmax.f32 %v3798, %v3802
  %v3839 = vmax.f32 %v3799, %v3803
  %v3840 = vmax.f32 %v3800, %v3804
  %v3841 = vmax.f32 %v3801, %v3805
  %v3842 = vmax.f32 %v3802, %v3806
  %v3843 = vmax.f32 %v3803, %v3807
  %v3844 = vmax.f32 %v3804, %v3808
  %v3845 = vmax.f32 %v3805, %v3809
  %v3846 = vmax.f32 %v3806, %v3810
  %v3847 = vmax.f32 %v3807, %v3811
  %v3848 = vmax.f32 %v3808, %v3812
  %v3849 = vmax.f32 %v3809, %v3813
  %v3850 = vmax.f32 %v3810, %v3814
  %v3851 = vmax.f32 %v3811, %v3815
  %v3852 = vmax.f32 %v3812, %v3816
  %v3853 = vmax.f32 %v3813, %v3817
  %v3854 = vmax.f32 %v3814, %v3818
  %v3855 = vmax.f32 %v3815, %v3819
  %v3856 = vld [vmem:[%s7] sm:$0xff]
  %v3857 = vld [vmem:[%s7 + $0x8] sm:$0xff]
  %v3858 = vld [vmem:[%s7 + $0x10] sm:$0xff]
  %v3859 = vld [vmem:[%s7 + $0x18] sm:$0xff]
  %v3860 = vld [vmem:[%s7 + $0x20] sm:$0xff]
  %v3861 = vld [vmem:[%s7 + $0x28] sm:$0xff]
  %v3862 = vld [vmem:[%s7 + $0x30] sm:$0xff]
  %v3863 = vld [vmem:[%s7 + $0x38] sm:$0xff]
  %v3864 = vld [vmem:[%s7 + $0x40] sm:$0xff]
  %v3865 = vld [vmem:[%s7 + $0x48] sm:$0xff]
  %v3866 = vld [vmem:[%s7 + $0x50] sm:$0xff]
  %v3867 = vld [vmem:[%s7 + $0x58] sm:$0xff]
  %v3868 = vld [vmem:[%s7 + $0x60] sm:$0xff]
  %v3869 = vld [vmem:[%s7 + $0x68] sm:$0xff]
  %v3870 = vld [vmem:[%s7 + $0x70] sm:$0xff]
  %v3871 = vld [vmem:[%s7 + $0x78] sm:$0xff]
  %v3872 = vld [vmem:[%s7 + $0x80] sm:$0xff]
  %v3873 = vld [vmem:[%s7 + $0x88] sm:$0xff]
  %v3874 = vld [vmem:[%s7 + $0x90] sm:$0xff]
  %v3875 = vld [vmem:[%s7 + $0x98] sm:$0xff]
  %vm3876 = vcmask 261120
  %v3878 = vsel %vm3876, %v3821, 0
  %v3881 = vsel %vm3876, %v3823, 0
  %v3884 = vsel %vm3876, %v3825, 0
  %v3887 = vsel %vm3876, %v3827, 0
  %v3890 = vsel %vm3876, %v3829, 0
  %v3893 = vsel %vm3876, %v3831, 0
  %v3896 = vsel %vm3876, %v3833, 0
  %v3899 = vsel %vm3876, %v3835, 0
  %v3902 = vsel %vm3876, %v3837, 0
  %v3905 = vsel %vm3876, %v3839, 0
  %v3908 = vsel %vm3876, %v3841, 0
  %v3911 = vsel %vm3876, %v3843, 0
  %v3914 = vsel %vm3876, %v3845, 0
  %v3917 = vsel %vm3876, %v3847, 0
  %v3920 = vsel %vm3876, %v3849, 0
  %v3923 = vsel %vm3876, %v3851, 0
  %v3926 = vsel %vm3876, %v3853, 0
  %v3929 = vsel %vm3876, %v3855, 0
  %3931 = vmatprep.subr.mxu0 0.0
  %3932 = vmatpush1.msra.mxu0 %v3856
  %3933 = vmatprep.subr.mxu0 0.0
  %3934 = vmatpush1.msra.mxu0 %v3857
  %3935 = vmatprep.subr.mxu0 0.0
  %3936 = vmatpush1.msra.mxu0 %v3858
  %3937 = vmatprep.subr.mxu0 0.0
  %3938 = vmatpush1.msra.mxu0 %v3859
  %3939 = vmatprep.subr.mxu0 0.0
  %3940 = vmatpush1.msra.mxu0 %v3860
  %3941 = vmatprep.subr.mxu0 0.0
  %3942 = vmatpush1.msra.mxu0 %v3861
  %3943 = vmatprep.subr.mxu0 0.0
  %3944 = vmatpush1.msra.mxu0 %v3862
  %3945 = vmatprep.subr.mxu0 0.0
  %3946 = vmatpush1.msra.mxu0 %v3863
  %3947 = vmatprep.subr.mxu0 0.0
  %3948 = vmatpush1.msra.mxu0 %v3864
  %3949 = vmatprep.subr.mxu0 0.0
  %3950 = vmatpush1.msra.mxu0 %v3865
  %3951 = vmatprep.subr.mxu0 0.0
  %3952 = vmatpush1.msra.mxu0 %v3866
  %3953 = vmatprep.subr.mxu0 0.0
  %3954 = vmatpush1.msra.mxu0 %v3867
  %3955 = vmatprep.subr.mxu0 0.0
  %3956 = vmatpush1.msra.mxu0 %v3868
  %3957 = vmatprep.subr.mxu0 0.0
  %3958 = vmatpush1.msra.mxu0 %v3869
  %3959 = vmatprep.subr.mxu0 0.0
  %3960 = vmatpush1.msra.mxu0 %v3870
  %3961 = vmatprep.subr.mxu0 0.0
  %3962 = vmatpush1.msra.mxu0 %v3871
  %3963 = vmatprep.subr.mxu0 0.0
  %3964 = vmatpush1.msra.mxu0 %v3872
  %3965 = vmatprep.subr.mxu0 0.0
  %3966 = vmatpush1.msra.mxu0 %v3873
  %3967 = vmatprep.subr.mxu0 0.0
  %3968 = vmatpush1.msra.mxu0 %v3874
  %3969 = vmatprep.subr.mxu0 0.0
  %3970 = vmatpush1.msra.mxu0 %v3875
  %3971 = vmatprep.subr.mxu0 0.0
  %3972 = vmatpush1.msra.mxu0 0.0
  %3973 = vmatprep.subr.mxu0 0.0
  %3974 = vmatpush1.msra.mxu0 0.0
  %3975 = vmatprep.subr.mxu0 0.0
  %3976 = vmatpush1.msra.mxu0 0.0
  %3977 = vmatprep.subr.mxu0 0.0
  %3978 = vmatpush1.msra.mxu0 0.0
  %3979 = vmatprep.subr.mxu0 0.0
  %3980 = vmatpush1.msra.mxu0 0.0
  %3981 = vmatprep.subr.mxu0 0.0
  %3982 = vmatpush1.msra.mxu0 0.0
  %3983 = vmatprep.subr.mxu0 0.0
  %3984 = vmatpush1.msra.mxu0 0.0
  %3985 = vmatprep.subr.mxu0 0.0
  %3986 = vmatpush1.msra.mxu0 0.0
  %3987 = vmatprep.subr.mxu0 0.0
  %3988 = vmatpush1.msra.mxu0 0.0
  %3989 = vmatprep.subr.mxu0 0.0
  %3990 = vmatpush1.msra.mxu0 0.0
  %3991 = vmatprep.subr.mxu0 0.0
  %3992 = vmatpush1.msra.mxu0 0.0
  %3993 = vmatprep.subr.mxu0 0.0
  %3994 = vmatpush1.msra.mxu0 0.0
  %3995 = vmatprep.mubr.f32.mxu0 %v3878
  %3996 = vmatmul.mubr.f32.gmra.mrb[0].mxu0 %v3820
  %v3997 = vpop.f32.mrb[0].mxu0
  %v3998 = vadd.f32 0.0, %v3997
  %v3999 = vpop.f32.mrb[0].mxu0
  %4000 = vmatprep.mubr.f32.mxu0 %v3881
  %4001 = vmatmul.mubr.f32.gmra.mrb[0].mxu0 %v3822
  %v4002 = vpop.f32.mrb[0].mxu0
  %v4003 = vpop.f32.mrb[0].mxu0
  %4004 = vmatprep.mubr.f32.mxu0 %v3884
  %4005 = vmatmul.mubr.f32.gmra.mrb[0].mxu0 %v3824
  %v4006 = vpop.f32.mrb[0].mxu0
  %v4007 = vpop.f32.mrb[0].mxu0
  %4008 = vmatprep.mubr.f32.mxu0 %v3887
  %4009 = vmatmul.mubr.f32.gmra.mrb[0].mxu0 %v3826
  %v4010 = vpop.f32.mrb[0].mxu0
  %v4011 = vpop.f32.mrb[0].mxu0
  %4012 = vmatprep.mubr.f32.mxu0 %v3890
  %4013 = vmatmul.mubr.f32.gmra.mrb[0].mxu0 %v3828
  %v4014 = vpop.f32.mrb[0].mxu0
  %v4015 = vadd.f32 0.0, %v4014
  %v4016 = vpop.f32.mrb[0].mxu0
  %4017 = vmatprep.mubr.f32.mxu0 %v3893
  %4018 = vmatmul.mubr.f32.gmra.mrb[0].mxu0 %v3830
  %v4019 = vpop.f32.mrb[0].mxu0
  %v4020 = vpop.f32.mrb[0].mxu0
  %4021 = vmatprep.mubr.f32.mxu0 %v3896
  %4022 = vmatmul.mubr.f32.gmra.mrb[0].mxu0 %v3832
  %v4023 = vpop.f32.mrb[0].mxu0
  %v4024 = vpop.f32.mrb[0].mxu0
  %4025 = vmatprep.mubr.f32.mxu0 %v3899
  %4026 = vmatmul.mubr.f32.gmra.mrb[0].mxu0 %v3834
  %v4027 = vpop.f32.mrb[0].mxu0
  %v4028 = vpop.f32.mrb[0].mxu0
  %4029 = vmatprep.mubr.f32.mxu0 %v3902
  %4030 = vmatmul.mubr.f32.gmra.mrb[0].mxu0 %v3836
  %v4031 = vpop.f32.mrb[0].mxu0
  %v4032 = vadd.f32 0.0, %v4031
  %v4033 = vpop.f32.mrb[0].mxu0
  %4034 = vmatprep.mubr.f32.mxu0 %v3905
  %4035 = vmatmul.mubr.f32.gmra.mrb[0].mxu0 %v3838
  %v4036 = vpop.f32.mrb[0].mxu0
  %v4037 = vpop.f32.mrb[0].mxu0
  %4038 = vmatprep.mubr.f32.mxu0 %v3908
  %4039 = vmatmul.mubr.f32.gmra.mrb[0].mxu0 %v3840
  %v4040 = vpop.f32.mrb[0].mxu0
  %v4041 = vpop.f32.mrb[0].mxu0
  %4042 = vmatprep.mubr.f32.mxu0 %v3911
  %4043 = vmatmul.mubr.f32.gmra.mrb[0].mxu0 %v3842
  %v4044 = vpop.f32.mrb[0].mxu0
  %v4045 = vpop.f32.mrb[0].mxu0
  %4046 = vmatprep.mubr.f32.mxu0 %v3914
  %4047 = vmatmul.mubr.f32.gmra.mrb[0].mxu0 %v3844
  %v4048 = vpop.f32.mrb[0].mxu0
  %v4049 = vadd.f32 0.0, %v4048
  %v4050 = vpop.f32.mrb[0].mxu0
  %4051 = vmatprep.mubr.f32.mxu0 %v3917
  %4052 = vmatmul.mubr.f32.gmra.mrb[0].mxu0 %v3846
  %v4053 = vpop.f32.mrb[0].mxu0
  %v4054 = vpop.f32.mrb[0].mxu0
  %4055 = vmatprep.mubr.f32.mxu0 %v3920
  %4056 = vmatmul.mubr.f32.gmra.mrb[0].mxu0 %v3848
  %v4057 = vpop.f32.mrb[0].mxu0
  %v4058 = vpop.f32.mrb[0].mxu0
  %4059 = vmatprep.mubr.f32.mxu0 %v3923
  %4060 = vmatmul.mubr.f32.gmra.mrb[0].mxu0 %v3850
  %v4061 = vpop.f32.mrb[0].mxu0
  %v4062 = vpop.f32.mrb[0].mxu0
  %4063 = vmatprep.mubr.f32.mxu0 %v3926
  %4064 = vmatmul.mubr.f32.gmra.mrb[0].mxu0 %v3852
  %v4065 = vpop.f32.mrb[0].mxu0
  %v4066 = vadd.f32 0.0, %v4065
  %v4067 = vpop.f32.mrb[0].mxu0
  %4068 = vmatprep.mubr.f32.mxu0 %v3929
  %4069 = vmatmul.mubr.f32.gmra.mrb[0].mxu0 %v3854
  %v4070 = vpop.f32.mrb[0].mxu0
  %v4071 = vpop.f32.mrb[0].mxu0
  %4072 = vdwg.mxu0
  %v4073 = vld [vmem:[%s8] sm:$0xff]
  %v4074 = vld [vmem:[%s8 + $0x8] sm:$0xff]
  %v4075 = vld [vmem:[%s8 + $0x10] sm:$0xff]
  %v4076 = vld [vmem:[%s8 + $0x18] sm:$0xff]
  %v4077 = vld [vmem:[%s8 + $0x20] sm:$0xff]
  %v4078 = vld [vmem:[%s8 + $0x28] sm:$0xff]
  %v4079 = vld [vmem:[%s8 + $0x30] sm:$0xff]
  %v4080 = vld [vmem:[%s8 + $0x38] sm:$0xff]
  %v4081 = vld [vmem:[%s8 + $0x40] sm:$0xff]
  %v4082 = vld [vmem:[%s8 + $0x48] sm:$0xff]
  %v4083 = vld [vmem:[%s8 + $0x50] sm:$0xff]
  %v4084 = vld [vmem:[%s8 + $0x58] sm:$0xff]
  %v4085 = vld [vmem:[%s8 + $0x60] sm:$0xff]
  %v4086 = vld [vmem:[%s8 + $0x68] sm:$0xff]
  %v4087 = vld [vmem:[%s8 + $0x70] sm:$0xff]
  %v4088 = vld [vmem:[%s8 + $0x78] sm:$0xff]
  %v4089 = vld [vmem:[%s8 + $0x80] sm:$0xff]
  %v4090 = vld [vmem:[%s8 + $0x88] sm:$0xff]
  %v4091 = vld [vmem:[%s8 + $0x90] sm:$0xff]
  %v4092 = vld [vmem:[%s8 + $0x98] sm:$0xff]
  %4093 = vmatprep.subr.mxu0 0.0
  %4094 = vmatpush1.msra.mxu0 %v4073
  %4095 = vmatprep.subr.mxu0 0.0
  %4096 = vmatpush1.msra.mxu0 %v4074
  %4097 = vmatprep.subr.mxu0 0.0
  %4098 = vmatpush1.msra.mxu0 %v4075
  %4099 = vmatprep.subr.mxu0 0.0
  %4100 = vmatpush1.msra.mxu0 %v4076
  %4101 = vmatprep.subr.mxu0 0.0
  %4102 = vmatpush1.msra.mxu0 %v4077
  %4103 = vmatprep.subr.mxu0 0.0
  %4104 = vmatpush1.msra.mxu0 %v4078
  %4105 = vmatprep.subr.mxu0 0.0
  %4106 = vmatpush1.msra.mxu0 %v4079
  %4107 = vmatprep.subr.mxu0 0.0
  %4108 = vmatpush1.msra.mxu0 %v4080
  %4109 = vmatprep.subr.mxu0 0.0
  %4110 = vmatpush1.msra.mxu0 %v4081
  %4111 = vmatprep.subr.mxu0 0.0
  %4112 = vmatpush1.msra.mxu0 %v4082
  %4113 = vmatprep.subr.mxu0 0.0
  %4114 = vmatpush1.msra.mxu0 %v4083
  %4115 = vmatprep.subr.mxu0 0.0
  %4116 = vmatpush1.msra.mxu0 %v4084
  %4117 = vmatprep.subr.mxu0 0.0
  %4118 = vmatpush1.msra.mxu0 %v4085
  %4119 = vmatprep.subr.mxu0 0.0
  %4120 = vmatpush1.msra.mxu0 %v4086
  %4121 = vmatprep.subr.mxu0 0.0
  %4122 = vmatpush1.msra.mxu0 %v4087
  %4123 = vmatprep.subr.mxu0 0.0
  %4124 = vmatpush1.msra.mxu0 %v4088
  %4125 = vmatprep.subr.mxu0 0.0
  %4126 = vmatpush1.msra.mxu0 %v4089
  %4127 = vmatprep.subr.mxu0 0.0
  %4128 = vmatpush1.msra.mxu0 %v4090
  %4129 = vmatprep.subr.mxu0 0.0
  %4130 = vmatpush1.msra.mxu0 %v4091
  %4131 = vmatprep.subr.mxu0 0.0
  %4132 = vmatpush1.msra.mxu0 %v4092
  %4133 = vmatprep.subr.mxu0 0.0
  %4134 = vmatpush1.msra.mxu0 0.0
  %4135 = vmatprep.subr.mxu0 0.0
  %4136 = vmatpush1.msra.mxu0 0.0
  %4137 = vmatprep.subr.mxu0 0.0
  %4138 = vmatpush1.msra.mxu0 0.0
  %4139 = vmatprep.subr.mxu0 0.0
  %4140 = vmatpush1.msra.mxu0 0.0
  %4141 = vmatprep.subr.mxu0 0.0
  %4142 = vmatpush1.msra.mxu0 0.0
  %4143 = vmatprep.subr.mxu0 0.0
  %4144 = vmatpush1.msra.mxu0 0.0
  %4145 = vmatprep.subr.mxu0 0.0
  %4146 = vmatpush1.msra.mxu0 0.0
  %4147 = vmatprep.subr.mxu0 0.0
  %4148 = vmatpush1.msra.mxu0 0.0
  %4149 = vmatprep.subr.mxu0 0.0
  %4150 = vmatpush1.msra.mxu0 0.0
  %4151 = vmatprep.subr.mxu0 0.0
  %4152 = vmatpush1.msra.mxu0 0.0
  %4153 = vmatprep.subr.mxu0 0.0
  %4154 = vmatpush1.msra.mxu0 0.0
  %4155 = vmatprep.subr.mxu0 0.0
  %4156 = vmatpush1.msra.mxu0 0.0
  %4157 = vmatprep.mubr.f32.mxu0 %v3878
  %4158 = vmatmul.mubr.f32.gmra.mrb[0].mxu0 %v3820
  %v4159 = vpop.f32.mrb[0].mxu0
  %v4160 = vadd.f32 0.0, %v4159
  %v4161 = vpop.f32.mrb[0].mxu0
  %4162 = vmatprep.mubr.f32.mxu0 %v3881
  %4163 = vmatmul.mubr.f32.gmra.mrb[0].mxu0 %v3822
  %v4164 = vpop.f32.mrb[0].mxu0
  %v4165 = vpop.f32.mrb[0].mxu0
  %4166 = vmatprep.mubr.f32.mxu0 %v3884
  %4167 = vmatmul.mubr.f32.gmra.mrb[0].mxu0 %v3824
  %v4168 = vpop.f32.mrb[0].mxu0
  %v4169 = vpop.f32.mrb[0].mxu0
  %4170 = vmatprep.mubr.f32.mxu0 %v3887
  %4171 = vmatmul.mubr.f32.gmra.mrb[0].mxu0 %v3826
  %v4172 = vpop.f32.mrb[0].mxu0
  %v4173 = vpop.f32.mrb[0].mxu0
  %4174 = vmatprep.mubr.f32.mxu0 %v3890
  %4175 = vmatmul.mubr.f32.gmra.mrb[0].mxu0 %v3828
  %v4176 = vpop.f32.mrb[0].mxu0
  %v4177 = vadd.f32 0.0, %v4176
  %v4178 = vpop.f32.mrb[0].mxu0
  %4179 = vmatprep.mubr.f32.mxu0 %v3893
  %4180 = vmatmul.mubr.f32.gmra.mrb[0].mxu0 %v3830
  %v4181 = vpop.f32.mrb[0].mxu0
  %v4182 = vpop.f32.mrb[0].mxu0
  %4183 = vmatprep.mubr.f32.mxu0 %v3896
  %4184 = vmatmul.mubr.f32.gmra.mrb[0].mxu0 %v3832
  %v4185 = vpop.f32.mrb[0].mxu0
  %v4186 = vpop.f32.mrb[0].mxu0
  %4187 = vmatprep.mubr.f32.mxu0 %v3899
  %4188 = vmatmul.mubr.f32.gmra.mrb[0].mxu0 %v3834
  %v4189 = vpop.f32.mrb[0].mxu0
  %v4190 = vpop.f32.mrb[0].mxu0
  %4191 = vmatprep.mubr.f32.mxu0 %v3902
  %4192 = vmatmul.mubr.f32.gmra.mrb[0].mxu0 %v3836
  %v4193 = vpop.f32.mrb[0].mxu0
  %v4194 = vadd.f32 0.0, %v4193
  %v4195 = vpop.f32.mrb[0].mxu0
  %4196 = vmatprep.mubr.f32.mxu0 %v3905
  %4197 = vmatmul.mubr.f32.gmra.mrb[0].mxu0 %v3838
  %v4198 = vpop.f32.mrb[0].mxu0
  %v4199 = vpop.f32.mrb[0].mxu0
  %4200 = vmatprep.mubr.f32.mxu0 %v3908
  %4201 = vmatmul.mubr.f32.gmra.mrb[0].mxu0 %v3840
  %v4202 = vpop.f32.mrb[0].mxu0
  %v4203 = vpop.f32.mrb[0].mxu0
  %4204 = vmatprep.mubr.f32.mxu0 %v3911
  %4205 = vmatmul.mubr.f32.gmra.mrb[0].mxu0 %v3842
  %v4206 = vpop.f32.mrb[0].mxu0
  %v4207 = vpop.f32.mrb[0].mxu0
  %4208 = vmatprep.mubr.f32.mxu0 %v3914
  %4209 = vmatmul.mubr.f32.gmra.mrb[0].mxu0 %v3844
  %v4210 = vpop.f32.mrb[0].mxu0
  %v4211 = vadd.f32 0.0, %v4210
  %v4212 = vpop.f32.mrb[0].mxu0
  %4213 = vmatprep.mubr.f32.mxu0 %v3917
  %4214 = vmatmul.mubr.f32.gmra.mrb[0].mxu0 %v3846
  %v4215 = vpop.f32.mrb[0].mxu0
  %v4216 = vpop.f32.mrb[0].mxu0
  %4217 = vmatprep.mubr.f32.mxu0 %v3920
  %4218 = vmatmul.mubr.f32.gmra.mrb[0].mxu0 %v3848
  %v4219 = vpop.f32.mrb[0].mxu0
  %v4220 = vpop.f32.mrb[0].mxu0
  %4221 = vmatprep.mubr.f32.mxu0 %v3923
  %4222 = vmatmul.mubr.f32.gmra.mrb[0].mxu0 %v3850
  %v4223 = vpop.f32.mrb[0].mxu0
  %v4224 = vpop.f32.mrb[0].mxu0
  %4225 = vmatprep.mubr.f32.mxu0 %v3926
  %4226 = vmatmul.mubr.f32.gmra.mrb[0].mxu0 %v3852
  %v4227 = vpop.f32.mrb[0].mxu0
  %v4228 = vadd.f32 0.0, %v4227
  %v4229 = vpop.f32.mrb[0].mxu0
  %4230 = vmatprep.mubr.f32.mxu0 %v3929
  %4231 = vmatmul.mubr.f32.gmra.mrb[0].mxu0 %v3854
  %v4232 = vpop.f32.mrb[0].mxu0
  %v4233 = vpop.f32.mrb[0].mxu0
  %4234 = vdwg.mxu0
  %v4235 = vmax.f32 %v3998, %v4160
  %v4236 = vmax.f32 %v4015, %v4177
  %v4237 = vmax.f32 %v4032, %v4194
  %v4238 = vmax.f32 %v4049, %v4211
  %v4239 = vmax.f32 %v4066, %v4228
  %v4240 = vld [vmem:[%s9] sm:$0xff]
  %v4241 = vld [vmem:[%s9 + $0x8] sm:$0xff]
  %v4242 = vld [vmem:[%s9 + $0x10] sm:$0xff]
  %v4243 = vld [vmem:[%s9 + $0x18] sm:$0xff]
  %v4244 = vld [vmem:[%s9 + $0x20] sm:$0xff]
  %v4245 = vld [vmem:[%s9 + $0x28] sm:$0xff]
  %v4246 = vld [vmem:[%s9 + $0x30] sm:$0xff]
  %v4247 = vld [vmem:[%s9 + $0x38] sm:$0xff]
  %v4248 = vld [vmem:[%s9 + $0x40] sm:$0xff]
  %v4249 = vld [vmem:[%s9 + $0x48] sm:$0xff]
  %s4250 = scalar_lea.vmem %s9, 80
  %v4251 = vld [vmem:[%s4250] sm:$0xff]
  %v4252 = vld [vmem:[%s4250 + $0x8] sm:$0xff]
  %v4253 = vld [vmem:[%s4250 + $0x10] sm:$0xff]
  %v4254 = vld [vmem:[%s4250 + $0x18] sm:$0xff]
  %v4255 = vld [vmem:[%s4250 + $0x20] sm:$0xff]
  %v4256 = vld [vmem:[%s4250 + $0x28] sm:$0xff]
  %v4257 = vld [vmem:[%s4250 + $0x30] sm:$0xff]
  %v4258 = vld [vmem:[%s4250 + $0x38] sm:$0xff]
  %v4259 = vld [vmem:[%s4250 + $0x40] sm:$0xff]
  %v4260 = vld [vmem:[%s4250 + $0x48] sm:$0xff]
  %vm4261 = vcmask 654336
  %v4263 = vsel %vm4261, %v4236, 0
  %4265 = vmatprep.subr.mxu0 0.0
  %4266 = vmatpush1.msra.mxu0 %v4251
  %4267 = vmatprep.subr.mxu0 0.0
  %4268 = vmatpush1.msra.mxu0 %v4252
  %4269 = vmatprep.subr.mxu0 0.0
  %4270 = vmatpush1.msra.mxu0 %v4253
  %4271 = vmatprep.subr.mxu0 0.0
  %4272 = vmatpush1.msra.mxu0 %v4254
  %4273 = vmatprep.subr.mxu0 0.0
  %4274 = vmatpush1.msra.mxu0 %v4255
  %4275 = vmatprep.subr.mxu0 0.0
  %4276 = vmatpush1.msra.mxu0 %v4256
  %4277 = vmatprep.subr.mxu0 0.0
  %4278 = vmatpush1.msra.mxu0 %v4257
  %4279 = vmatprep.subr.mxu0 0.0
  %4280 = vmatpush1.msra.mxu0 %v4258
  %4281 = vmatprep.subr.mxu0 0.0
  %4282 = vmatpush1.msra.mxu0 %v4259
  %4283 = vmatprep.subr.mxu0 0.0
  %4284 = vmatpush1.msra.mxu0 %v4260
  %4285 = vmatprep.subr.mxu0 0.0
  %4286 = vmatpush1.msra.mxu0 0.0
  %4287 = vmatprep.subr.mxu0 0.0
  %4288 = vmatpush1.msra.mxu0 0.0
  %4289 = vmatprep.subr.mxu0 0.0
  %4290 = vmatpush1.msra.mxu0 0.0
  %4291 = vmatprep.subr.mxu0 0.0
  %4292 = vmatpush1.msra.mxu0 0.0
  %4293 = vmatprep.subr.mxu0 0.0
  %4294 = vmatpush1.msra.mxu0 0.0
  %4295 = vmatprep.subr.mxu0 0.0
  %4296 = vmatpush1.msra.mxu0 0.0
  %4297 = vmatprep.subr.mxu0 0.0
  %4298 = vmatpush1.msra.mxu0 0.0
  %4299 = vmatprep.subr.mxu0 0.0
  %4300 = vmatpush1.msra.mxu0 0.0
  %4301 = vmatprep.subr.mxu0 0.0
  %4302 = vmatpush1.msra.mxu0 0.0
  %4303 = vmatprep.subr.mxu0 0.0
  %4304 = vmatpush1.msra.mxu0 0.0
  %4305 = vmatprep.subr.mxu0 0.0
  %4306 = vmatpush1.msra.mxu0 0.0
  %4307 = vmatprep.subr.mxu0 0.0
  %4308 = vmatpush1.msra.mxu0 0.0
  %4309 = vmatprep.subr.mxu0 0.0
  %4310 = vmatpush1.msra.mxu0 0.0
  %4311 = vmatprep.subr.mxu0 0.0
  %4312 = vmatpush1.msra.mxu0 0.0
  %4313 = vmatprep.subr.mxu0 0.0
  %4314 = vmatpush1.msra.mxu0 0.0
  %4315 = vmatprep.subr.mxu0 0.0
  %4316 = vmatpush1.msra.mxu0 0.0
  %4317 = vmatprep.subr.mxu0 0.0
  %4318 = vmatpush1.msra.mxu0 0.0
  %4319 = vmatprep.subr.mxu0 0.0
  %4320 = vmatpush1.msra.mxu0 0.0
  %4321 = vmatprep.subr.mxu0 0.0
  %4322 = vmatpush1.msra.mxu0 0.0
  %4323 = vmatprep.subr.mxu0 0.0
  %4324 = vmatpush1.msra.mxu0 0.0
  %4325 = vmatprep.subr.mxu0 0.0
  %4326 = vmatpush1.msra.mxu0 0.0
  %4327 = vmatprep.subr.mxu0 0.0
  %4328 = vmatpush1.msra.mxu0 0.0
  %4329 = vmatprep.mubr.f32.mxu0 0.0
  %4330 = vmatmul.mubr.f32.gmra.mrb[0].mxu0 %v4263
  %v4331 = vpop.f32.mrb[0].mxu0
  %v4332 = vadd.f32 0.0, %v4331
  %v4333 = vpop.f32.mrb[0].mxu0
  %4334 = vdwg.mxu0
  %s4335 = scalar_lea.vmem %s9, 160
  %v4336 = vld [vmem:[%s4335] sm:$0xff]
  %v4337 = vld [vmem:[%s4335 + $0x8] sm:$0xff]
  %v4338 = vld [vmem:[%s4335 + $0x10] sm:$0xff]
  %v4339 = vld [vmem:[%s4335 + $0x18] sm:$0xff]
  %v4340 = vld [vmem:[%s4335 + $0x20] sm:$0xff]
  %v4341 = vld [vmem:[%s4335 + $0x28] sm:$0xff]
  %v4342 = vld [vmem:[%s4335 + $0x30] sm:$0xff]
  %v4343 = vld [vmem:[%s4335 + $0x38] sm:$0xff]
  %v4344 = vld [vmem:[%s4335 + $0x40] sm:$0xff]
  %v4345 = vld [vmem:[%s4335 + $0x48] sm:$0xff]
  %s4346 = scalar_lea.vmem %s9, 240
  %v4347 = vld [vmem:[%s4346] sm:$0xff]
  %v4348 = vld [vmem:[%s4346 + $0x8] sm:$0xff]
  %v4349 = vld [vmem:[%s4346 + $0x10] sm:$0xff]
  %v4350 = vld [vmem:[%s4346 + $0x18] sm:$0xff]
  %v4351 = vld [vmem:[%s4346 + $0x20] sm:$0xff]
  %v4352 = vld [vmem:[%s4346 + $0x28] sm:$0xff]
  %v4353 = vld [vmem:[%s4346 + $0x30] sm:$0xff]
  %v4354 = vld [vmem:[%s4346 + $0x38] sm:$0xff]
  %v4355 = vld [vmem:[%s4346 + $0x40] sm:$0xff]
  %v4356 = vld [vmem:[%s4346 + $0x48] sm:$0xff]
  %v4358 = vsel %vm4261, %v4238, 0
  %4360 = vmatprep.subr.mxu0 0.0
  %4361 = vmatpush1.msra.mxu0 %v4347
  %4362 = vmatprep.subr.mxu0 0.0
  %4363 = vmatpush1.msra.mxu0 %v4348
  %4364 = vmatprep.subr.mxu0 0.0
  %4365 = vmatpush1.msra.mxu0 %v4349
  %4366 = vmatprep.subr.mxu0 0.0
  %4367 = vmatpush1.msra.mxu0 %v4350
  %4368 = vmatprep.subr.mxu0 0.0
  %4369 = vmatpush1.msra.mxu0 %v4351
  %4370 = vmatprep.subr.mxu0 0.0
  %4371 = vmatpush1.msra.mxu0 %v4352
  %4372 = vmatprep.subr.mxu0 0.0
  %4373 = vmatpush1.msra.mxu0 %v4353
  %4374 = vmatprep.subr.mxu0 0.0
  %4375 = vmatpush1.msra.mxu0 %v4354
  %4376 = vmatprep.subr.mxu0 0.0
  %4377 = vmatpush1.msra.mxu0 %v4355
  %4378 = vmatprep.subr.mxu0 0.0
  %4379 = vmatpush1.msra.mxu0 %v4356
  %4380 = vmatprep.subr.mxu0 0.0
  %4381 = vmatpush1.msra.mxu0 0.0
  %4382 = vmatprep.subr.mxu0 0.0
  %4383 = vmatpush1.msra.mxu0 0.0
  %4384 = vmatprep.subr.mxu0 0.0
  %4385 = vmatpush1.msra.mxu0 0.0
  %4386 = vmatprep.subr.mxu0 0.0
  %4387 = vmatpush1.msra.mxu0 0.0
  %4388 = vmatprep.subr.mxu0 0.0
  %4389 = vmatpush1.msra.mxu0 0.0
  %4390 = vmatprep.subr.mxu0 0.0
  %4391 = vmatpush1.msra.mxu0 0.0
  %4392 = vmatprep.subr.mxu0 0.0
  %4393 = vmatpush1.msra.mxu0 0.0
  %4394 = vmatprep.subr.mxu0 0.0
  %4395 = vmatpush1.msra.mxu0 0.0
  %4396 = vmatprep.subr.mxu0 0.0
  %4397 = vmatpush1.msra.mxu0 0.0
  %4398 = vmatprep.subr.mxu0 0.0
  %4399 = vmatpush1.msra.mxu0 0.0
  %4400 = vmatprep.subr.mxu0 0.0
  %4401 = vmatpush1.msra.mxu0 0.0
  %4402 = vmatprep.subr.mxu0 0.0
  %4403 = vmatpush1.msra.mxu0 0.0
  %4404 = vmatprep.subr.mxu0 0.0
  %4405 = vmatpush1.msra.mxu0 0.0
  %4406 = vmatprep.subr.mxu0 0.0
  %4407 = vmatpush1.msra.mxu0 0.0
  %4408 = vmatprep.subr.mxu0 0.0
  %4409 = vmatpush1.msra.mxu0 0.0
  %4410 = vmatprep.subr.mxu0 0.0
  %4411 = vmatpush1.msra.mxu0 0.0
  %4412 = vmatprep.subr.mxu0 0.0
  %4413 = vmatpush1.msra.mxu0 0.0
  %4414 = vmatprep.subr.mxu0 0.0
  %4415 = vmatpush1.msra.mxu0 0.0
  %4416 = vmatprep.subr.mxu0 0.0
  %4417 = vmatpush1.msra.mxu0 0.0
  %4418 = vmatprep.subr.mxu0 0.0
  %4419 = vmatpush1.msra.mxu0 0.0
  %4420 = vmatprep.subr.mxu0 0.0
  %4421 = vmatpush1.msra.mxu0 0.0
  %4422 = vmatprep.subr.mxu0 0.0
  %4423 = vmatpush1.msra.mxu0 0.0
  %4424 = vmatprep.mubr.f32.mxu0 0.0
  %4425 = vmatmul.mubr.f32.gmra.mrb[0].mxu0 %v4358
  %v4426 = vpop.f32.mrb[0].mxu0
  %v4427 = vadd.f32 0.0, %v4426
  %v4428 = vpop.f32.mrb[0].mxu0
  %4429 = vdwg.mxu0
  %s4430 = scalar_lea.vmem %s9, 320
  %v4431 = vld [vmem:[%s4430] sm:$0xff]
  %v4432 = vld [vmem:[%s4430 + $0x8] sm:$0xff]
  %v4433 = vld [vmem:[%s4430 + $0x10] sm:$0xff]
  %v4434 = vld [vmem:[%s4430 + $0x18] sm:$0xff]
  %v4435 = vld [vmem:[%s4430 + $0x20] sm:$0xff]
  %v4436 = vld [vmem:[%s4430 + $0x28] sm:$0xff]
  %v4437 = vld [vmem:[%s4430 + $0x30] sm:$0xff]
  %v4438 = vld [vmem:[%s4430 + $0x38] sm:$0xff]
  %v4439 = vld [vmem:[%s4430 + $0x40] sm:$0xff]
  %v4440 = vld [vmem:[%s4430 + $0x48] sm:$0xff]
  %v4442 = vsel %vm4261, %v4235, 0
  %4444 = vmatprep.subr.mxu0 0.0
  %4445 = vmatpush1.msra.mxu0 %v4240
  %4446 = vmatprep.subr.mxu0 0.0
  %4447 = vmatpush1.msra.mxu0 %v4241
  %4448 = vmatprep.subr.mxu0 0.0
  %4449 = vmatpush1.msra.mxu0 %v4242
  %4450 = vmatprep.subr.mxu0 0.0
  %4451 = vmatpush1.msra.mxu0 %v4243
  %4452 = vmatprep.subr.mxu0 0.0
  %4453 = vmatpush1.msra.mxu0 %v4244
  %4454 = vmatprep.subr.mxu0 0.0
  %4455 = vmatpush1.msra.mxu0 %v4245
  %4456 = vmatprep.subr.mxu0 0.0
  %4457 = vmatpush1.msra.mxu0 %v4246
  %4458 = vmatprep.subr.mxu0 0.0
  %4459 = vmatpush1.msra.mxu0 %v4247
  %4460 = vmatprep.subr.mxu0 0.0
  %4461 = vmatpush1.msra.mxu0 %v4248
  %4462 = vmatprep.subr.mxu0 0.0
  %4463 = vmatpush1.msra.mxu0 %v4249
  %4464 = vmatprep.subr.mxu0 0.0
  %4465 = vmatpush1.msra.mxu0 0.0
  %4466 = vmatprep.subr.mxu0 0.0
  %4467 = vmatpush1.msra.mxu0 0.0
  %4468 = vmatprep.subr.mxu0 0.0
  %4469 = vmatpush1.msra.mxu0 0.0
  %4470 = vmatprep.subr.mxu0 0.0
  %4471 = vmatpush1.msra.mxu0 0.0
  %4472 = vmatprep.subr.mxu0 0.0
  %4473 = vmatpush1.msra.mxu0 0.0
  %4474 = vmatprep.subr.mxu0 0.0
  %4475 = vmatpush1.msra.mxu0 0.0
  %4476 = vmatprep.subr.mxu0 0.0
  %4477 = vmatpush1.msra.mxu0 0.0
  %4478 = vmatprep.subr.mxu0 0.0
  %4479 = vmatpush1.msra.mxu0 0.0
  %4480 = vmatprep.subr.mxu0 0.0
  %4481 = vmatpush1.msra.mxu0 0.0
  %4482 = vmatprep.subr.mxu0 0.0
  %4483 = vmatpush1.msra.mxu0 0.0
  %4484 = vmatprep.subr.mxu0 0.0
  %4485 = vmatpush1.msra.mxu0 0.0
  %4486 = vmatprep.subr.mxu0 0.0
  %4487 = vmatpush1.msra.mxu0 0.0
  %4488 = vmatprep.subr.mxu0 0.0
  %4489 = vmatpush1.msra.mxu0 0.0
  %4490 = vmatprep.subr.mxu0 0.0
  %4491 = vmatpush1.msra.mxu0 0.0
  %4492 = vmatprep.subr.mxu0 0.0
  %4493 = vmatpush1.msra.mxu0 0.0
  %4494 = vmatprep.subr.mxu0 0.0
  %4495 = vmatpush1.msra.mxu0 0.0
  %4496 = vmatprep.subr.mxu0 0.0
  %4497 = vmatpush1.msra.mxu0 0.0
  %4498 = vmatprep.subr.mxu0 0.0
  %4499 = vmatpush1.msra.mxu0 0.0
  %4500 = vmatprep.subr.mxu0 0.0
  %4501 = vmatpush1.msra.mxu0 0.0
  %4502 = vmatprep.subr.mxu0 0.0
  %4503 = vmatpush1.msra.mxu0 0.0
  %4504 = vmatprep.subr.mxu0 0.0
  %4505 = vmatpush1.msra.mxu0 0.0
  %4506 = vmatprep.subr.mxu0 0.0
  %4507 = vmatpush1.msra.mxu0 0.0
  %4508 = vmatprep.mubr.f32.mxu0 0.0
  %4509 = vmatmul.mubr.f32.gmra.mrb[0].mxu0 %v4442
  %v4510 = vpop.f32.mrb[0].mxu0
  %v4511 = vadd.f32 %v4332, %v4510
  %v4512 = vpop.f32.mrb[0].mxu0
  %4513 = vdwg.mxu0
  %v4515 = vsel %vm4261, %v4237, 0
  %4517 = vmatprep.subr.mxu0 0.0
  %4518 = vmatpush1.msra.mxu0 %v4336
  %4519 = vmatprep.subr.mxu0 0.0
  %4520 = vmatpush1.msra.mxu0 %v4337
  %4521 = vmatprep.subr.mxu0 0.0
  %4522 = vmatpush1.msra.mxu0 %v4338
  %4523 = vmatprep.subr.mxu0 0.0
  %4524 = vmatpush1.msra.mxu0 %v4339
  %4525 = vmatprep.subr.mxu0 0.0
  %4526 = vmatpush1.msra.mxu0 %v4340
  %4527 = vmatprep.subr.mxu0 0.0
  %4528 = vmatpush1.msra.mxu0 %v4341
  %4529 = vmatprep.subr.mxu0 0.0
  %4530 = vmatpush1.msra.mxu0 %v4342
  %4531 = vmatprep.subr.mxu0 0.0
  %4532 = vmatpush1.msra.mxu0 %v4343
  %4533 = vmatprep.subr.mxu0 0.0
  %4534 = vmatpush1.msra.mxu0 %v4344
  %4535 = vmatprep.subr.mxu0 0.0
  %4536 = vmatpush1.msra.mxu0 %v4345
  %4537 = vmatprep.subr.mxu0 0.0
  %4538 = vmatpush1.msra.mxu0 0.0
  %4539 = vmatprep.subr.mxu0 0.0
  %4540 = vmatpush1.msra.mxu0 0.0
  %4541 = vmatprep.subr.mxu0 0.0
  %4542 = vmatpush1.msra.mxu0 0.0
  %4543 = vmatprep.subr.mxu0 0.0
  %4544 = vmatpush1.msra.mxu0 0.0
  %4545 = vmatprep.subr.mxu0 0.0
  %4546 = vmatpush1.msra.mxu0 0.0
  %4547 = vmatprep.subr.mxu0 0.0
  %4548 = vmatpush1.msra.mxu0 0.0
  %4549 = vmatprep.subr.mxu0 0.0
  %4550 = vmatpush1.msra.mxu0 0.0
  %4551 = vmatprep.subr.mxu0 0.0
  %4552 = vmatpush1.msra.mxu0 0.0
  %4553 = vmatprep.subr.mxu0 0.0
  %4554 = vmatpush1.msra.mxu0 0.0
  %4555 = vmatprep.subr.mxu0 0.0
  %4556 = vmatpush1.msra.mxu0 0.0
  %4557 = vmatprep.subr.mxu0 0.0
  %4558 = vmatpush1.msra.mxu0 0.0
  %4559 = vmatprep.subr.mxu0 0.0
  %4560 = vmatpush1.msra.mxu0 0.0
  %4561 = vmatprep.subr.mxu0 0.0
  %4562 = vmatpush1.msra.mxu0 0.0
  %4563 = vmatprep.subr.mxu0 0.0
  %4564 = vmatpush1.msra.mxu0 0.0
  %4565 = vmatprep.subr.mxu0 0.0
  %4566 = vmatpush1.msra.mxu0 0.0
  %4567 = vmatprep.subr.mxu0 0.0
  %4568 = vmatpush1.msra.mxu0 0.0
  %4569 = vmatprep.subr.mxu0 0.0
  %4570 = vmatpush1.msra.mxu0 0.0
  %4571 = vmatprep.subr.mxu0 0.0
  %4572 = vmatpush1.msra.mxu0 0.0
  %4573 = vmatprep.subr.mxu0 0.0
  %4574 = vmatpush1.msra.mxu0 0.0
  %4575 = vmatprep.subr.mxu0 0.0
  %4576 = vmatpush1.msra.mxu0 0.0
  %4577 = vmatprep.subr.mxu0 0.0
  %4578 = vmatpush1.msra.mxu0 0.0
  %4579 = vmatprep.subr.mxu0 0.0
  %4580 = vmatpush1.msra.mxu0 0.0
  %4581 = vmatprep.mubr.f32.mxu0 0.0
  %4582 = vmatmul.mubr.f32.gmra.mrb[0].mxu0 %v4515
  %v4583 = vpop.f32.mrb[0].mxu0
  %v4584 = vadd.f32 %v4427, %v4583
  %v4585 = vpop.f32.mrb[0].mxu0
  %4586 = vdwg.mxu0
  %v4587 = vadd.f32 %v4511, %v4584
  %v4588 = vld [vmem:[%s10] sm:$0x1]
  %v4590 = vlaneseq
  %v4591 = vshrl.u32 %v4590, 7
  %v4592 = vsub.s32 0, %v4591
  %v4593 = vrot.slane %v4588, %v4592
  %v4596 = vsel %vm4261, %v4239, 0
  %4598 = vmatprep.subr.mxu0 0.0
  %4599 = vmatpush1.msra.mxu0 %v4431
  %4600 = vmatprep.subr.mxu0 0.0
  %4601 = vmatpush1.msra.mxu0 %v4432
  %4602 = vmatprep.subr.mxu0 0.0
  %4603 = vmatpush1.msra.mxu0 %v4433
  %4604 = vmatprep.subr.mxu0 0.0
  %4605 = vmatpush1.msra.mxu0 %v4434
  %4606 = vmatprep.subr.mxu0 0.0
  %4607 = vmatpush1.msra.mxu0 %v4435
  %4608 = vmatprep.subr.mxu0 0.0
  %4609 = vmatpush1.msra.mxu0 %v4436
  %4610 = vmatprep.subr.mxu0 0.0
  %4611 = vmatpush1.msra.mxu0 %v4437
  %4612 = vmatprep.subr.mxu0 0.0
  %4613 = vmatpush1.msra.mxu0 %v4438
  %4614 = vmatprep.subr.mxu0 0.0
  %4615 = vmatpush1.msra.mxu0 %v4439
  %4616 = vmatprep.subr.mxu0 0.0
  %4617 = vmatpush1.msra.mxu0 %v4440
  %4618 = vmatprep.subr.mxu0 0.0
  %4619 = vmatpush1.msra.mxu0 0.0
  %4620 = vmatprep.subr.mxu0 0.0
  %4621 = vmatpush1.msra.mxu0 0.0
  %4622 = vmatprep.subr.mxu0 0.0
  %4623 = vmatpush1.msra.mxu0 0.0
  %4624 = vmatprep.subr.mxu0 0.0
  %4625 = vmatpush1.msra.mxu0 0.0
  %4626 = vmatprep.subr.mxu0 0.0
  %4627 = vmatpush1.msra.mxu0 0.0
  %4628 = vmatprep.subr.mxu0 0.0
  %4629 = vmatpush1.msra.mxu0 0.0
  %4630 = vmatprep.subr.mxu0 0.0
  %4631 = vmatpush1.msra.mxu0 0.0
  %4632 = vmatprep.subr.mxu0 0.0
  %4633 = vmatpush1.msra.mxu0 0.0
  %4634 = vmatprep.subr.mxu0 0.0
  %4635 = vmatpush1.msra.mxu0 0.0
  %4636 = vmatprep.subr.mxu0 0.0
  %4637 = vmatpush1.msra.mxu0 0.0
  %4638 = vmatprep.subr.mxu0 0.0
  %4639 = vmatpush1.msra.mxu0 0.0
  %4640 = vmatprep.subr.mxu0 0.0
  %4641 = vmatpush1.msra.mxu0 0.0
  %4642 = vmatprep.subr.mxu0 0.0
  %4643 = vmatpush1.msra.mxu0 0.0
  %4644 = vmatprep.subr.mxu0 0.0
  %4645 = vmatpush1.msra.mxu0 0.0
  %4646 = vmatprep.subr.mxu0 0.0
  %4647 = vmatpush1.msra.mxu0 0.0
  %4648 = vmatprep.subr.mxu0 0.0
  %4649 = vmatpush1.msra.mxu0 0.0
  %4650 = vmatprep.subr.mxu0 0.0
  %4651 = vmatpush1.msra.mxu0 0.0
  %4652 = vmatprep.subr.mxu0 0.0
  %4653 = vmatpush1.msra.mxu0 0.0
  %4654 = vmatprep.subr.mxu0 0.0
  %4655 = vmatpush1.msra.mxu0 0.0
  %4656 = vmatprep.subr.mxu0 0.0
  %4657 = vmatpush1.msra.mxu0 0.0
  %4658 = vmatprep.subr.mxu0 0.0
  %4659 = vmatpush1.msra.mxu0 0.0
  %4660 = vmatprep.subr.mxu0 0.0
  %4661 = vmatpush1.msra.mxu0 0.0
  %4662 = vmatprep.mubr.f32.mxu0 0.0
  %4663 = vmatmul.mubr.f32.gmra.mrb[0].mxu0 %v4596
  %v4664 = vpop.f32.mrb[0].mxu0
  %v4665 = vadd.f32 %v4593, %v4664
  %v4666 = vpop.f32.mrb[0].mxu0
  %4667 = vdwg.mxu0
  %v4668 = vadd.f32 %v4587, %v4665
  %v4669 = vmax.f32 %v4668, 0.0
  %v4670 = vld [vmem:[%s11] sm:$0xff]
  %v4671 = vld [vmem:[%s11 + $0x8] sm:$0xff]
  %v4672 = vld [vmem:[%s11 + $0x10] sm:$0xff]
  %v4673 = vld [vmem:[%s11 + $0x18] sm:$0xff]
  %v4674 = vld [vmem:[%s11 + $0x20] sm:$0xff]
  %v4675 = vld [vmem:[%s11 + $0x28] sm:$0xff]
  %v4676 = vld [vmem:[%s11 + $0x30] sm:$0xff]
  %v4677 = vld [vmem:[%s11 + $0x38] sm:$0xff]
  %v4678 = vld [vmem:[%s11 + $0x40] sm:$0xff]
  %v4679 = vld [vmem:[%s11 + $0x48] sm:$0xff]
  %v4680 = vld [vmem:[%s11 + $0x50] sm:$0xff]
  %v4681 = vld [vmem:[%s11 + $0x58] sm:$0xff]
  %v4682 = vld [vmem:[%s11 + $0x60] sm:$0xff]
  %v4683 = vld [vmem:[%s11 + $0x68] sm:$0xff]
  %v4684 = vld [vmem:[%s11 + $0x70] sm:$0xff]
  %v4685 = vld [vmem:[%s11 + $0x78] sm:$0xff]
  %v4686 = vld [vmem:[%s12] sm:$0x1]
  %v4688 = vlaneseq
  %v4689 = vshrl.u32 %v4688, 7
  %v4690 = vsub.s32 0, %v4689
  %v4691 = vrot.slane %v4686, %v4690
  %4693 = vmatprep.subr.mxu0 0.0
  %4694 = vmatpush1.msra.mxu0 %v4670
  %4695 = vmatprep.subr.mxu0 0.0
  %4696 = vmatpush1.msra.mxu0 %v4671
  %4697 = vmatprep.subr.mxu0 0.0
  %4698 = vmatpush1.msra.mxu0 %v4672
  %4699 = vmatprep.subr.mxu0 0.0
  %4700 = vmatpush1.msra.mxu0 %v4673
  %4701 = vmatprep.subr.mxu0 0.0
  %4702 = vmatpush1.msra.mxu0 %v4674
  %4703 = vmatprep.subr.mxu0 0.0
  %4704 = vmatpush1.msra.mxu0 %v4675
  %4705 = vmatprep.subr.mxu0 0.0
  %4706 = vmatpush1.msra.mxu0 %v4676
  %4707 = vmatprep.subr.mxu0 0.0
  %4708 = vmatpush1.msra.mxu0 %v4677
  %4709 = vmatprep.subr.mxu0 0.0
  %4710 = vmatpush1.msra.mxu0 %v4678
  %4711 = vmatprep.subr.mxu0 0.0
  %4712 = vmatpush1.msra.mxu0 %v4679
  %4713 = vmatprep.subr.mxu0 0.0
  %4714 = vmatpush1.msra.mxu0 %v4680
  %4715 = vmatprep.subr.mxu0 0.0
  %4716 = vmatpush1.msra.mxu0 %v4681
  %4717 = vmatprep.subr.mxu0 0.0
  %4718 = vmatpush1.msra.mxu0 %v4682
  %4719 = vmatprep.subr.mxu0 0.0
  %4720 = vmatpush1.msra.mxu0 %v4683
  %4721 = vmatprep.subr.mxu0 0.0
  %4722 = vmatpush1.msra.mxu0 %v4684
  %4723 = vmatprep.subr.mxu0 0.0
  %4724 = vmatpush1.msra.mxu0 %v4685
  %4725 = vmatprep.subr.mxu0 0.0
  %4726 = vmatpush1.msra.mxu0 0.0
  %4727 = vmatprep.subr.mxu0 0.0
  %4728 = vmatpush1.msra.mxu0 0.0
  %4729 = vmatprep.subr.mxu0 0.0
  %4730 = vmatpush1.msra.mxu0 0.0
  %4731 = vmatprep.subr.mxu0 0.0
  %4732 = vmatpush1.msra.mxu0 0.0
  %4733 = vmatprep.subr.mxu0 0.0
  %4734 = vmatpush1.msra.mxu0 0.0
  %4735 = vmatprep.subr.mxu0 0.0
  %4736 = vmatpush1.msra.mxu0 0.0
  %4737 = vmatprep.subr.mxu0 0.0
  %4738 = vmatpush1.msra.mxu0 0.0
  %4739 = vmatprep.subr.mxu0 0.0
  %4740 = vmatpush1.msra.mxu0 0.0
  %4741 = vmatprep.subr.mxu0 0.0
  %4742 = vmatpush1.msra.mxu0 0.0
  %4743 = vmatprep.subr.mxu0 0.0
  %4744 = vmatpush1.msra.mxu0 0.0
  %4745 = vmatprep.subr.mxu0 0.0
  %4746 = vmatpush1.msra.mxu0 0.0
  %4747 = vmatprep.subr.mxu0 0.0
  %4748 = vmatpush1.msra.mxu0 0.0
  %4749 = vmatprep.subr.mxu0 0.0
  %4750 = vmatpush1.msra.mxu0 0.0
  %4751 = vmatprep.subr.mxu0 0.0
  %4752 = vmatpush1.msra.mxu0 0.0
  %4753 = vmatprep.subr.mxu0 0.0
  %4754 = vmatpush1.msra.mxu0 0.0
  %4755 = vmatprep.subr.mxu0 0.0
  %4756 = vmatpush1.msra.mxu0 0.0
  %4757 = vmatprep.mubr.f32.mxu0 0.0
  %4758 = vmatmul.mubr.f32.gmra.mrb[0].mxu0 %v4669
  %v4759 = vpop.f32.mrb[0].mxu0
  %v4760 = vadd.f32 %v4691, %v4759
  %v4761 = vpop.f32.mrb[0].mxu0
  %4762 = vdwg.mxu0
  %v4763 = vmax.f32 %v4760, 0.0
  %v4764 = vld [vmem:[%s13] sm:$0xff]
  %v4765 = vld [vmem:[%s13 + $0x8] sm:$0xff]
  %v4766 = vld [vmem:[%s13 + $0x10] sm:$0xff]
  %v4767 = vld [vmem:[%s13 + $0x18] sm:$0xff]
  %v4768 = vld [vmem:[%s13 + $0x20] sm:$0xff]
  %v4769 = vld [vmem:[%s13 + $0x28] sm:$0xff]
  %v4770 = vld [vmem:[%s13 + $0x30] sm:$0xff]
  %v4771 = vld [vmem:[%s13 + $0x38] sm:$0xff]
  %v4772 = vld [vmem:[%s13 + $0x40] sm:$0xff]
  %v4773 = vld [vmem:[%s13 + $0x48] sm:$0xff]
  %v4774 = vld [vmem:[%s13 + $0x50] sm:$0xff]
  %v4775 = vld [vmem:[%s13 + $0x58] sm:$0xff]
  %v4776 = vld [vmem:[%s13 + $0x60] sm:$0xff]
  %v4777 = vld [vmem:[%s13 + $0x68] sm:$0xff]
  %v4778 = vld [vmem:[%s13 + $0x70] sm:$0xff]
  %v4779 = vld [vmem:[%s13 + $0x78] sm:$0xff]
  %v4780 = vld [vmem:[%s14] sm:$0x1]
  %v4782 = vlaneseq
  %v4783 = vshrl.u32 %v4782, 7
  %v4784 = vsub.s32 0, %v4783
  %v4785 = vrot.slane %v4780, %v4784
  %4787 = vmatprep.subr.mxu0 0.0
  %4788 = vmatpush1.msra.mxu0 %v4764
  %4789 = vmatprep.subr.mxu0 0.0
  %4790 = vmatpush1.msra.mxu0 %v4765
  %4791 = vmatprep.subr.mxu0 0.0
  %4792 = vmatpush1.msra.mxu0 %v4766
  %4793 = vmatprep.subr.mxu0 0.0
  %4794 = vmatpush1.msra.mxu0 %v4767
  %4795 = vmatprep.subr.mxu0 0.0
  %4796 = vmatpush1.msra.mxu0 %v4768
  %4797 = vmatprep.subr.mxu0 0.0
  %4798 = vmatpush1.msra.mxu0 %v4769
  %4799 = vmatprep.subr.mxu0 0.0
  %4800 = vmatpush1.msra.mxu0 %v4770
  %4801 = vmatprep.subr.mxu0 0.0
  %4802 = vmatpush1.msra.mxu0 %v4771
  %4803 = vmatprep.subr.mxu0 0.0
  %4804 = vmatpush1.msra.mxu0 %v4772
  %4805 = vmatprep.subr.mxu0 0.0
  %4806 = vmatpush1.msra.mxu0 %v4773
  %4807 = vmatprep.subr.mxu0 0.0
  %4808 = vmatpush1.msra.mxu0 %v4774
  %4809 = vmatprep.subr.mxu0 0.0
  %4810 = vmatpush1.msra.mxu0 %v4775
  %4811 = vmatprep.subr.mxu0 0.0
  %4812 = vmatpush1.msra.mxu0 %v4776
  %4813 = vmatprep.subr.mxu0 0.0
  %4814 = vmatpush1.msra.mxu0 %v4777
  %4815 = vmatprep.subr.mxu0 0.0
  %4816 = vmatpush1.msra.mxu0 %v4778
  %4817 = vmatprep.subr.mxu0 0.0
  %4818 = vmatpush1.msra.mxu0 %v4779
  %4819 = vmatprep.subr.mxu0 0.0
  %4820 = vmatpush1.msra.mxu0 0.0
  %4821 = vmatprep.subr.mxu0 0.0
  %4822 = vmatpush1.msra.mxu0 0.0
  %4823 = vmatprep.subr.mxu0 0.0
  %4824 = vmatpush1.msra.mxu0 0.0
  %4825 = vmatprep.subr.mxu0 0.0
  %4826 = vmatpush1.msra.mxu0 0.0
  %4827 = vmatprep.subr.mxu0 0.0
  %4828 = vmatpush1.msra.mxu0 0.0
  %4829 = vmatprep.subr.mxu0 0.0
  %4830 = vmatpush1.msra.mxu0 0.0
  %4831 = vmatprep.subr.mxu0 0.0
  %4832 = vmatpush1.msra.mxu0 0.0
  %4833 = vmatprep.subr.mxu0 0.0
  %4834 = vmatpush1.msra.mxu0 0.0
  %4835 = vmatprep.subr.mxu0 0.0
  %4836 = vmatpush1.msra.mxu0 0.0
  %4837 = vmatprep.subr.mxu0 0.0
  %4838 = vmatpush1.msra.mxu0 0.0
  %4839 = vmatprep.subr.mxu0 0.0
  %4840 = vmatpush1.msra.mxu0 0.0
  %4841 = vmatprep.subr.mxu0 0.0
  %4842 = vmatpush1.msra.mxu0 0.0
  %4843 = vmatprep.subr.mxu0 0.0
  %4844 = vmatpush1.msra.mxu0 0.0
  %4845 = vmatprep.subr.mxu0 0.0
  %4846 = vmatpush1.msra.mxu0 0.0
  %4847 = vmatprep.subr.mxu0 0.0
  %4848 = vmatpush1.msra.mxu0 0.0
  %4849 = vmatprep.subr.mxu0 0.0
  %4850 = vmatpush1.msra.mxu0 0.0
  %4851 = vmatprep.mubr.f32.mxu0 0.0
  %4852 = vmatmul.mubr.f32.gmra.mrb[0].mxu0 %v4763
  %v4853 = vpop.f32.mrb[0].mxu0
  %v4854 = vadd.f32 %v4785, %v4853
  %v4855 = vpop.f32.mrb[0].mxu0
  %4856 = vdwg.mxu0
  %4857 = vst [vmem:[%s15] sm:$0xff] %v4854
  // Predicated region
  $region62: #{convnet_forward.1} parent=0 // pred_check
    _
  $region63: #{convnet_forward.1} parent=0 // pred_check_branch
    %4859 = sbr.rel (0) target = $region65
  $region64: #{convnet_forward.1} parent=0 // pred_region
    _
  $region65: #{convnet_forward.1} parent=0 // pred_fallthru
    _
  // Predicated region
  $region66: #{convnet_forward.1} parent=0 // pred_check
    _
  $region67: #{convnet_forward.1} parent=0 // pred_check_branch
    %4861 = sbr.rel (0) target = $region69
  $region68: #{convnet_forward.1} parent=0 // pred_region
    _
  $region69: #{convnet_forward.1} parent=0 // pred_fallthru
    _

</llo_original>
